<compile_context>
chip_gen: v7x
topology: tpu7x:2x2x1
jax: 0.10.0
libtpu: 0.0.40
codegen_flags: <defaults>
</compile_context>

<pallas_src>
import functools

import jax
import jax.numpy as jnp
from jax.experimental import pallas as pl
from jax.experimental.pallas import tpu as pltpu


def _choose_spatial_tile(C, S):
    """Lane tile: multiple of 128, ~1 MiB f32 per (1, C, ts) block, clamped [512, 4096].

    Returns the full extent S when S is small enough for a single block (a block equal
    to the full array dim is always layout-legal).
    """
    target = max(1, (1 << 20) // (4 * C))                # ~1 MiB / row-bytes
    ts = ((min(max(target, 512), 4096) + 127) // 128) * 128
    if ts >= S:
        return S
    return ts


# ----------------------------------------------------------------------------
# Kernel 1: fused global avg+max pool  +  excitation MLP  +  sigmoid.
#   x3: (N, C, S); grid = (N, ceil(S/ts)).
#   Output scale (N, C, 1) is a resident VMEM block across the spatial
#   ("arbitrary") axis, written only in the finalize step.
# ----------------------------------------------------------------------------
def _pool_mlp_kernel(x_ref, w1_ref, w2_ref, scale_ref, sum_sc, max_sc,
                     *, S, ts, lane_acc, inv_S):
    s = pl.program_id(1)
    last = pl.num_programs(1) - 1
    x = x_ref[0]                                         # (C, ts) f32
    nchunks = ts // lane_acc                             # ts % lane_acc == 0 by construction

    def partial(xz, xn):
        # Chunked VPU reduction of (C, ts) -> (C, lane_acc); static, lane-aligned slices.
        ps = xz[:, 0:lane_acc]
        pm = xn[:, 0:lane_acc]
        for i in range(1, nchunks):
            lo, hi = i * lane_acc, (i + 1) * lane_acc
            ps = ps + xz[:, lo:hi]
            pm = jnp.maximum(pm, xn[:, lo:hi])
        return ps, pm

    def accum(ps, pm):
        @pl.when(s == 0)
        def _():
            sum_sc[...] = ps
            max_sc[...] = pm

        @pl.when(s > 0)
        def _():
            sum_sc[...] = sum_sc[...] + ps
            max_sc[...] = jnp.maximum(max_sc[...], pm)

    has_tail = (S % ts) != 0                             # static Python check
    if has_tail:
        # Full tiles: no mask, pure VPU adds/maxes.
        @pl.when(s != last)
        def _():
            ps, pm = partial(x, x)
            accum(ps, pm)

        # Tail tile only: mask the OOB lanes (0 for sum, -inf for max).
        @pl.when(s == last)
        def _():
            lane = jax.lax.broadcasted_iota(jnp.int32, x.shape, 1) + s * ts
            valid = lane < S
            ps, pm = partial(jnp.where(valid, x, 0.0),
                             jnp.where(valid, x, -jnp.inf))
            accum(ps, pm)
    else:
        ps, pm = partial(x, x)
        accum(ps, pm)

    # Finalize: cross-lane reduce once per batch element, then the full excitation MLP
    # for both branches + add + sigmoid, all in f32 (launch-bound; f32 is free here).
    @pl.when(s == last)
    def _():
        avg = jnp.sum(sum_sc[...], axis=-1, keepdims=True) * inv_S   # (C, 1)
        mx = jnp.max(max_sc[...], axis=-1, keepdims=True)            # (C, 1)
        w1 = w1_ref[...]                                             # (Cr, C)
        w2 = w2_ref[...]                                             # (C, Cr)
        ha = jnp.maximum(jnp.dot(w1, avg, preferred_element_type=jnp.float32), 0.0)
        hm = jnp.maximum(jnp.dot(w1, mx, preferred_element_type=jnp.float32), 0.0)
        logit = (jnp.dot(w2, ha, preferred_element_type=jnp.float32)
                 + jnp.dot(w2, hm, preferred_element_type=jnp.float32))
        scale_ref[0] = jax.nn.sigmoid(logit)                         # (C, 1)


def pooled_excitation(x3, w1, w2):
    """x3: (N, C, S) f32; w1: (Cr, C); w2: (C, Cr) -> sigmoid scale (N, C, 1) f32."""
    N, C, S = x3.shape
    Cr = w1.shape[0]
    ts = _choose_spatial_tile(C, S)
    lane_acc = 128 if ts % 128 == 0 else ts
    kernel = functools.partial(_pool_mlp_kernel, S=S, ts=ts,
                               lane_acc=lane_acc, inv_S=1.0 / S)
    return pl.pallas_call(
        kernel,
        out_shape=jax.ShapeDtypeStruct((N, C, 1), jnp.float32),
        grid=(N, pl.cdiv(S, ts)),
        in_specs=[pl.BlockSpec((1, C, ts), lambda n, s: (n, 0, s)),
                  pl.BlockSpec((Cr, C), lambda n, s: (0, 0)),
                  pl.BlockSpec((C, Cr), lambda n, s: (0, 0))],
        out_specs=pl.BlockSpec((1, C, 1), lambda n, s: (n, 0, 0)),
        scratch_shapes=[pltpu.VMEM((C, lane_acc), jnp.float32),
                        pltpu.VMEM((C, lane_acc), jnp.float32)],
        compiler_params=pltpu.CompilerParams(
            dimension_semantics=("parallel", "arbitrary")),
    )(x3, w1, w2)


# ----------------------------------------------------------------------------
# Kernel 2: apply the per-channel attention scale (lane-dense output tiles).
# ----------------------------------------------------------------------------
def _apply_kernel(x_ref, s_ref, o_ref):
    o_ref[0] = x_ref[0] * s_ref[0]                       # (C, ts) * (C, 1)


def ca_apply(x3, scale):
    """x3: (N, C, S); scale: (N, C, 1) -> x3 * scale (broadcast over S)."""
    N, C, S = x3.shape
    ts = _choose_spatial_tile(C, S)
    return pl.pallas_call(
        _apply_kernel,
        out_shape=jax.ShapeDtypeStruct((N, C, S), jnp.float32),
        grid=(N, pl.cdiv(S, ts)),
        in_specs=[pl.BlockSpec((1, C, ts), lambda n, s: (n, 0, s)),
                  pl.BlockSpec((1, C, 1), lambda n, s: (n, 0, 0))],
        out_specs=pl.BlockSpec((1, C, ts), lambda n, s: (n, 0, s)),
        compiler_params=pltpu.CompilerParams(
            dimension_semantics=("parallel", "parallel")),
    )(x3, scale)


# ----------------------------------------------------------------------------
# Module forward
# ----------------------------------------------------------------------------
def channel_attention(params, x):
    """x: (N, C, D, H, W) f32 (PyTorch NCDHW). Returns x * sigmoid(fc(avg)+fc(max))."""
    N, C = x.shape[:2]
    S = x.shape[2] * x.shape[3] * x.shape[4]
    x3 = x.reshape(N, C, S)                               # free reshape, no transpose
    # torch Conv3d(..., 1, bias=False) weights: pure reshapes, no transpose/cast needed.
    w1 = params['fc1_w'].reshape(-1, C)                   # (C//r, C)
    w2 = params['fc2_w'].reshape(C, -1)                   # (C, C//r)
    scale = pooled_excitation(x3, w1, w2)                 # (N, C, 1)
    y3 = ca_apply(x3, scale)
    return y3.reshape(x.shape)


# Pure-JAX reference for correctness checking.
def channel_attention_ref(params, x):
    N, C = x.shape[:2]
    xs = x.reshape(N, C, -1)
    avg = xs.mean(-1)
    mx = xs.max(-1)
    w1 = params['fc1_w'].reshape(-1, C)                   # (C//r, C)
    w2 = params['fc2_w'].reshape(C, -1)                   # (C, C//r)

    def fc(v):
        return jnp.maximum(v @ w1.T, 0.0) @ w2.T

    s = jax.nn.sigmoid(fc(avg) + fc(mx))
    return x * s[:, :, None, None, None]


if __name__ == "__main__":
    key = jax.random.PRNGKey(0)
    kx, k1, k2 = jax.random.split(key, 3)

    # Small shapes consistent with the module (default ratio=16 needs C >= 16).
    N, C, D, H, W = 2, 128, 8, 16, 16
    ratio = 16
    Cr = C // ratio

    params = {
        # torch layout: Conv3d(C, C//r, 1, bias=False) and Conv3d(C//r, C, 1, bias=False)
        'fc1_w': (2.0 / C) ** 0.5 * jax.random.normal(k1, (Cr, C, 1, 1, 1), jnp.float32),
        'fc2_w': (2.0 / Cr) ** 0.5 * jax.random.normal(k2, (C, Cr, 1, 1, 1), jnp.float32),
    }
    x = jax.random.normal(kx, (N, C, D, H, W), jnp.float32)

    fwd = jax.jit(channel_attention)
    y = jax.block_until_ready(fwd(params, x))

    y_ref = channel_attention_ref(params, x)
    assert y.shape == (N, C, D, H, W)
    assert bool(jnp.all(jnp.isfinite(y)))
    max_err = float(jnp.max(jnp.abs(y - y_ref)))
    assert max_err < 2e-2, f"max abs error {max_err}"
    print("KERNEL_OK")
</pallas_src>

<mosaic_0001>
module attributes {stable_mosaic.version = 11 : i64} {
  func.func @_apply_kernel(%arg0: i32, %arg1: i32, %arg2: memref<1x128x2048xf32, #tpu.memory_space<vmem>>, %arg3: memref<1x128x1xf32, #tpu.memory_space<vmem>>, %arg4: memref<1x128x2048xf32, #tpu.memory_space<vmem>>) attributes {dimension_semantics = [#tpu.dimension_semantics<parallel>, #tpu.dimension_semantics<parallel>], iteration_bounds = array<i64: 2, 1>, scalar_prefetch = 0 : i64, scratch_operands = 0 : i64, tpu.core_type = #tpu.core_type<tc>, window_params = [{transform_indices = @transform_0, window_bounds = array<i64: 1, 128, 2048>}, {transform_indices = @transform_1, window_bounds = array<i64: 1, 128, 1>}, {transform_indices = @transform_2, window_bounds = array<i64: 1, 128, 2048>}]} {
    %c0 = arith.constant 0 : index
    %c0_0 = arith.constant 0 : index
    %c0_1 = arith.constant 0 : index
    %0 = vector.load %arg2[%c0, %c0_0, %c0_1] : memref<1x128x2048xf32, #tpu.memory_space<vmem>>, vector<1x128x2048xf32>
    %1 = vector.shape_cast %0 : vector<1x128x2048xf32> to vector<128x2048xf32>
    %c0_2 = arith.constant 0 : index
    %c0_3 = arith.constant 0 : index
    %c0_4 = arith.constant 0 : index
    %2 = vector.load %arg3[%c0_2, %c0_3, %c0_4] : memref<1x128x1xf32, #tpu.memory_space<vmem>>, vector<1x128x1xf32>
    %3 = vector.shape_cast %2 : vector<1x128x1xf32> to vector<128x1xf32>
    %4 = vector.broadcast %3 : vector<128x1xf32> to vector<128x2048xf32>
    %5 = arith.mulf %1, %4 : vector<128x2048xf32>
    %c0_5 = arith.constant 0 : index
    %c0_6 = arith.constant 0 : index
    %c0_7 = arith.constant 0 : index
    %6 = vector.load %arg4[%c0_5, %c0_6, %c0_7] : memref<1x128x2048xf32, #tpu.memory_space<vmem>>, vector<1x128x2048xf32>
    %7 = vector.shape_cast %6 : vector<1x128x2048xf32> to vector<128x2048xf32>
    %8 = vector.shape_cast %5 : vector<128x2048xf32> to vector<1x128x2048xf32>
    tpu.vector_store %arg4[%c0_5, %c0_6, %c0_7], %8 {strides = array<i32>} : memref<1x128x2048xf32, #tpu.memory_space<vmem>>, vector<1x128x2048xf32>,
    return
  }
  func.func @transform_0(%arg0: i32, %arg1: i32) -> (i32, i32, i32) {
    %c0_i32 = arith.constant 0 : i32
    %c0_i32_0 = arith.constant 0 : i32
    return %arg0, %c0_i32, %arg1 : i32, i32, i32
  }
  func.func @transform_1(%arg0: i32, %arg1: i32) -> (i32, i32, i32) {
    %c0_i32 = arith.constant 0 : i32
    %c0_i32_0 = arith.constant 0 : i32
    %c0_i32_1 = arith.constant 0 : i32
    return %arg0, %c0_i32, %c0_i32_0 : i32, i32, i32
  }
  func.func @transform_2(%arg0: i32, %arg1: i32) -> (i32, i32, i32) {
    %c0_i32 = arith.constant 0 : i32
    %c0_i32_0 = arith.constant 0 : i32
    return %arg0, %c0_i32, %arg1 : i32, i32, i32
  }
}

module attributes {stable_mosaic.version = 11 : i64} {
  func.func @_pool_mlp_kernel(%arg0: i32, %arg1: i32, %arg2: memref<1x128x2048xf32, #tpu.memory_space<vmem>>, %arg3: memref<8x128xf32, #tpu.memory_space<vmem>>, %arg4: memref<128x8xf32, #tpu.memory_space<vmem>>, %arg5: memref<1x128x1xf32, #tpu.memory_space<vmem>>, %arg6: memref<128x128xf32, #tpu.memory_space<vmem>>, %arg7: memref<128x128xf32, #tpu.memory_space<vmem>>) attributes {dimension_semantics = [#tpu.dimension_semantics<parallel>, #tpu.dimension_semantics<arbitrary>], iteration_bounds = array<i64: 2, 1>, scalar_prefetch = 0 : i64, scratch_operands = 2 : i64, tpu.core_type = #tpu.core_type<tc>, window_params = [{transform_indices = @transform_0, window_bounds = array<i64: 1, 128, 2048>}, {pipeline_mode = #tpu.pipeline_mode<synchronous>, transform_indices = @transform_1, window_bounds = array<i64: 8, 128>}, {pipeline_mode = #tpu.pipeline_mode<synchronous>, transform_indices = @transform_2, window_bounds = array<i64: 128, 8>}, {transform_indices = @transform_3, window_bounds = array<i64: 1, 128, 1>}]} {
    %c0 = arith.constant 0 : index
    %c0_0 = arith.constant 0 : index
    %c0_1 = arith.constant 0 : index
    %0 = vector.load %arg2[%c0, %c0_0, %c0_1] : memref<1x128x2048xf32, #tpu.memory_space<vmem>>, vector<1x128x2048xf32>
    %1 = vector.shape_cast %0 : vector<1x128x2048xf32> to vector<128x2048xf32>
    %2 = vector.extract_strided_slice %1 {offsets = [0, 0], sizes = [128, 128], strides = [1, 1]} : vector<128x2048xf32> to vector<128x128xf32>
    %3 = vector.extract_strided_slice %1 {offsets = [0, 0], sizes = [128, 128], strides = [1, 1]} : vector<128x2048xf32> to vector<128x128xf32>
    %4 = vector.extract_strided_slice %1 {offsets = [0, 128], sizes = [128, 128], strides = [1, 1]} : vector<128x2048xf32> to vector<128x128xf32>
    %5 = arith.addf %2, %4 : vector<128x128xf32>
    %6 = vector.extract_strided_slice %1 {offsets = [0, 128], sizes = [128, 128], strides = [1, 1]} : vector<128x2048xf32> to vector<128x128xf32>
    %7 = arith.maximumf %3, %6 : vector<128x128xf32>
    %8 = vector.extract_strided_slice %1 {offsets = [0, 256], sizes = [128, 128], strides = [1, 1]} : vector<128x2048xf32> to vector<128x128xf32>
    %9 = arith.addf %5, %8 : vector<128x128xf32>
    %10 = vector.extract_strided_slice %1 {offsets = [0, 256], sizes = [128, 128], strides = [1, 1]} : vector<128x2048xf32> to vector<128x128xf32>
    %11 = arith.maximumf %7, %10 : vector<128x128xf32>
    %12 = vector.extract_strided_slice %1 {offsets = [0, 384], sizes = [128, 128], strides = [1, 1]} : vector<128x2048xf32> to vector<128x128xf32>
    %13 = arith.addf %9, %12 : vector<128x128xf32>
    %14 = vector.extract_strided_slice %1 {offsets = [0, 384], sizes = [128, 128], strides = [1, 1]} : vector<128x2048xf32> to vector<128x128xf32>
    %15 = arith.maximumf %11, %14 : vector<128x128xf32>
    %16 = vector.extract_strided_slice %1 {offsets = [0, 512], sizes = [128, 128], strides = [1, 1]} : vector<128x2048xf32> to vector<128x128xf32>
    %17 = arith.addf %13, %16 : vector<128x128xf32>
    %18 = vector.extract_strided_slice %1 {offsets = [0, 512], sizes = [128, 128], strides = [1, 1]} : vector<128x2048xf32> to vector<128x128xf32>
    %19 = arith.maximumf %15, %18 : vector<128x128xf32>
    %20 = vector.extract_strided_slice %1 {offsets = [0, 640], sizes = [128, 128], strides = [1, 1]} : vector<128x2048xf32> to vector<128x128xf32>
    %21 = arith.addf %17, %20 : vector<128x128xf32>
    %22 = vector.extract_strided_slice %1 {offsets = [0, 640], sizes = [128, 128], strides = [1, 1]} : vector<128x2048xf32> to vector<128x128xf32>
    %23 = arith.maximumf %19, %22 : vector<128x128xf32>
    %24 = vector.extract_strided_slice %1 {offsets = [0, 768], sizes = [128, 128], strides = [1, 1]} : vector<128x2048xf32> to vector<128x128xf32>
    %25 = arith.addf %21, %24 : vector<128x128xf32>
    %26 = vector.extract_strided_slice %1 {offsets = [0, 768], sizes = [128, 128], strides = [1, 1]} : vector<128x2048xf32> to vector<128x128xf32>
    %27 = arith.maximumf %23, %26 : vector<128x128xf32>
    %28 = vector.extract_strided_slice %1 {offsets = [0, 896], sizes = [128, 128], strides = [1, 1]} : vector<128x2048xf32> to vector<128x128xf32>
    %29 = arith.addf %25, %28 : vector<128x128xf32>
    %30 = vector.extract_strided_slice %1 {offsets = [0, 896], sizes = [128, 128], strides = [1, 1]} : vector<128x2048xf32> to vector<128x128xf32>
    %31 = arith.maximumf %27, %30 : vector<128x128xf32>
    %32 = vector.extract_strided_slice %1 {offsets = [0, 1024], sizes = [128, 128], strides = [1, 1]} : vector<128x2048xf32> to vector<128x128xf32>
    %33 = arith.addf %29, %32 : vector<128x128xf32>
    %34 = vector.extract_strided_slice %1 {offsets = [0, 1024], sizes = [128, 128], strides = [1, 1]} : vector<128x2048xf32> to vector<128x128xf32>
    %35 = arith.maximumf %31, %34 : vector<128x128xf32>
    %36 = vector.extract_strided_slice %1 {offsets = [0, 1152], sizes = [128, 128], strides = [1, 1]} : vector<128x2048xf32> to vector<128x128xf32>
    %37 = arith.addf %33, %36 : vector<128x128xf32>
    %38 = vector.extract_strided_slice %1 {offsets = [0, 1152], sizes = [128, 128], strides = [1, 1]} : vector<128x2048xf32> to vector<128x128xf32>
    %39 = arith.maximumf %35, %38 : vector<128x128xf32>
    %40 = vector.extract_strided_slice %1 {offsets = [0, 1280], sizes = [128, 128], strides = [1, 1]} : vector<128x2048xf32> to vector<128x128xf32>
    %41 = arith.addf %37, %40 : vector<128x128xf32>
    %42 = vector.extract_strided_slice %1 {offsets = [0, 1280], sizes = [128, 128], strides = [1, 1]} : vector<128x2048xf32> to vector<128x128xf32>
    %43 = arith.maximumf %39, %42 : vector<128x128xf32>
    %44 = vector.extract_strided_slice %1 {offsets = [0, 1408], sizes = [128, 128], strides = [1, 1]} : vector<128x2048xf32> to vector<128x128xf32>
    %45 = arith.addf %41, %44 : vector<128x128xf32>
    %46 = vector.extract_strided_slice %1 {offsets = [0, 1408], sizes = [128, 128], strides = [1, 1]} : vector<128x2048xf32> to vector<128x128xf32>
    %47 = arith.maximumf %43, %46 : vector<128x128xf32>
    %48 = vector.extract_strided_slice %1 {offsets = [0, 1536], sizes = [128, 128], strides = [1, 1]} : vector<128x2048xf32> to vector<128x128xf32>
    %49 = arith.addf %45, %48 : vector<128x128xf32>
    %50 = vector.extract_strided_slice %1 {offsets = [0, 1536], sizes = [128, 128], strides = [1, 1]} : vector<128x2048xf32> to vector<128x128xf32>
    %51 = arith.maximumf %47, %50 : vector<128x128xf32>
    %52 = vector.extract_strided_slice %1 {offsets = [0, 1664], sizes = [128, 128], strides = [1, 1]} : vector<128x2048xf32> to vector<128x128xf32>
    %53 = arith.addf %49, %52 : vector<128x128xf32>
    %54 = vector.extract_strided_slice %1 {offsets = [0, 1664], sizes = [128, 128], strides = [1, 1]} : vector<128x2048xf32> to vector<128x128xf32>
    %55 = arith.maximumf %51, %54 : vector<128x128xf32>
    %56 = vector.extract_strided_slice %1 {offsets = [0, 1792], sizes = [128, 128], strides = [1, 1]} : vector<128x2048xf32> to vector<128x128xf32>
    %57 = arith.addf %53, %56 : vector<128x128xf32>
    %58 = vector.extract_strided_slice %1 {offsets = [0, 1792], sizes = [128, 128], strides = [1, 1]} : vector<128x2048xf32> to vector<128x128xf32>
    %59 = arith.maximumf %55, %58 : vector<128x128xf32>
    %60 = vector.extract_strided_slice %1 {offsets = [0, 1920], sizes = [128, 128], strides = [1, 1]} : vector<128x2048xf32> to vector<128x128xf32>
    %61 = arith.addf %57, %60 : vector<128x128xf32>
    %62 = vector.extract_strided_slice %1 {offsets = [0, 1920], sizes = [128, 128], strides = [1, 1]} : vector<128x2048xf32> to vector<128x128xf32>
    %63 = arith.maximumf %59, %62 : vector<128x128xf32>
    %c0_i32 = arith.constant 0 : i32
    %64 = arith.cmpi eq, %arg1, %c0_i32 : i32
    %65 = arith.extui %64 : i1 to i32
    %c0_i32_2 = arith.constant 0 : i32
    %66 = arith.cmpi ne, %65, %c0_i32_2 : i32
    scf.if %66 {
      %c0_7 = arith.constant 0 : index
      %c0_8 = arith.constant 0 : index
      %73 = vector.load %arg6[%c0_7, %c0_8] : memref<128x128xf32, #tpu.memory_space<vmem>>, vector<128x128xf32>
      tpu.vector_store %arg6[%c0_7, %c0_8], %61 {strides = array<i32>} : memref<128x128xf32, #tpu.memory_space<vmem>>, vector<128x128xf32>,
      %c0_9 = arith.constant 0 : index
      %c0_10 = arith.constant 0 : index
      %74 = vector.load %arg7[%c0_9, %c0_10] : memref<128x128xf32, #tpu.memory_space<vmem>>, vector<128x128xf32>
      tpu.vector_store %arg7[%c0_9, %c0_10], %63 {strides = array<i32>} : memref<128x128xf32, #tpu.memory_space<vmem>>, vector<128x128xf32>,
    } else {
    }
    %c0_i32_3 = arith.constant 0 : i32
    %67 = arith.cmpi sgt, %arg1, %c0_i32_3 : i32
    %68 = arith.extui %67 : i1 to i32
    %c0_i32_4 = arith.constant 0 : i32
    %69 = arith.cmpi ne, %68, %c0_i32_4 : i32
    scf.if %69 {
      %c0_7 = arith.constant 0 : index
      %c0_8 = arith.constant 0 : index
      %73 = vector.load %arg6[%c0_7, %c0_8] : memref<128x128xf32, #tpu.memory_space<vmem>>, vector<128x128xf32>
      %74 = arith.addf %73, %61 : vector<128x128xf32>
      %c0_9 = arith.constant 0 : index
      %c0_10 = arith.constant 0 : index
      %75 = vector.load %arg6[%c0_9, %c0_10] : memref<128x128xf32, #tpu.memory_space<vmem>>, vector<128x128xf32>
      tpu.vector_store %arg6[%c0_9, %c0_10], %74 {strides = array<i32>} : memref<128x128xf32, #tpu.memory_space<vmem>>, vector<128x128xf32>,
      %c0_11 = arith.constant 0 : index
      %c0_12 = arith.constant 0 : index
      %76 = vector.load %arg7[%c0_11, %c0_12] : memref<128x128xf32, #tpu.memory_space<vmem>>, vector<128x128xf32>
      %77 = arith.maximumf %76, %63 : vector<128x128xf32>
      %c0_13 = arith.constant 0 : index
      %c0_14 = arith.constant 0 : index
      %78 = vector.load %arg7[%c0_13, %c0_14] : memref<128x128xf32, #tpu.memory_space<vmem>>, vector<128x128xf32>
      tpu.vector_store %arg7[%c0_13, %c0_14], %77 {strides = array<i32>} : memref<128x128xf32, #tpu.memory_space<vmem>>, vector<128x128xf32>,
    } else {
    }
    %c0_i32_5 = arith.constant 0 : i32
    %70 = arith.cmpi eq, %arg1, %c0_i32_5 : i32
    %71 = arith.extui %70 : i1 to i32
    %c0_i32_6 = arith.constant 0 : i32
    %72 = arith.cmpi ne, %71, %c0_i32_6 : i32
    scf.if %72 {
      %c0_7 = arith.constant 0 : index
      %c0_8 = arith.constant 0 : index
      %73 = vector.load %arg6[%c0_7, %c0_8] : memref<128x128xf32, #tpu.memory_space<vmem>>, vector<128x128xf32>
      %cst = arith.constant dense<0.000000e+00> : vector<128xf32>
      %74 = vector.multi_reduction <add>, %73, %cst [1] : vector<128x128xf32> to vector<128xf32>
      %75 = vector.shape_cast %74 : vector<128xf32> to vector<128x1xf32>
      %cst_9 = arith.constant 4.8828125E-4 : f32
      %76 = vector.broadcast %cst_9 : f32 to vector<128x1xf32>
      %77 = arith.mulf %75, %76 : vector<128x1xf32>
      %c0_10 = arith.constant 0 : index
      %c0_11 = arith.constant 0 : index
      %78 = vector.load %arg7[%c0_10, %c0_11] : memref<128x128xf32, #tpu.memory_space<vmem>>, vector<128x128xf32>
      %cst_12 = arith.constant dense<0xFF800000> : vector<128xf32>
      %79 = vector.multi_reduction <maximumf>, %78, %cst_12 [1] : vector<128x128xf32> to vector<128xf32>
      %80 = vector.shape_cast %79 : vector<128xf32> to vector<128x1xf32>
      %c0_13 = arith.constant 0 : index
      %c0_14 = arith.constant 0 : index
      %81 = vector.load %arg3[%c0_13, %c0_14] : memref<8x128xf32, #tpu.memory_space<vmem>>, vector<8x128xf32>
      %c0_15 = arith.constant 0 : index
      %c0_16 = arith.constant 0 : index
      %82 = vector.load %arg4[%c0_15, %c0_16] : memref<128x8xf32, #tpu.memory_space<vmem>>, vector<128x8xf32>
      %cst_17 = arith.constant dense<0.000000e+00> : vector<8x1xf32>
      %83 = tpu.matmul %81, %77, %cst_17 {dimension_numbers = #tpu.dot_dimension_numbers<[1], [0], [0], [1], [0, 0, 1, 1], [], []>} : vector<8x128xf32>, vector<128x1xf32>, vector<8x1xf32> -> vector<8x1xf32>
      %cst_18 = arith.constant 0.000000e+00 : f32
      %84 = vector.broadcast %cst_18 : f32 to vector<8x1xf32>
      %85 = arith.maximumf %83, %84 : vector<8x1xf32>
      %cst_19 = arith.constant dense<0.000000e+00> : vector<8x1xf32>
      %86 = tpu.matmul %81, %80, %cst_19 {dimension_numbers = #tpu.dot_dimension_numbers<[1], [0], [0], [1], [0, 0, 1, 1], [], []>} : vector<8x128xf32>, vector<128x1xf32>, vector<8x1xf32> -> vector<8x1xf32>
      %cst_20 = arith.constant 0.000000e+00 : f32
      %87 = vector.broadcast %cst_20 : f32 to vector<8x1xf32>
      %88 = arith.maximumf %86, %87 : vector<8x1xf32>
      %cst_21 = arith.constant dense<0.000000e+00> : vector<128x1xf32>
      %89 = tpu.matmul %82, %85, %cst_21 {dimension_numbers = #tpu.dot_dimension_numbers<[1], [0], [0], [1], [0, 0, 1, 1], [], []>} : vector<128x8xf32>, vector<8x1xf32>, vector<128x1xf32> -> vector<128x1xf32>
      %cst_22 = arith.constant dense<0.000000e+00> : vector<128x1xf32>
      %90 = tpu.matmul %82, %88, %cst_22 {dimension_numbers = #tpu.dot_dimension_numbers<[1], [0], [0], [1], [0, 0, 1, 1], [], []>} : vector<128x8xf32>, vector<8x1xf32>, vector<128x1xf32> -> vector<128x1xf32>
      %91 = arith.addf %89, %90 : vector<128x1xf32>
      %92 = arith.negf %91 : vector<128x1xf32>
      %93 = math.exp %92 : vector<128x1xf32>
      %cst_23 = arith.constant 1.000000e+00 : f32
      %94 = vector.broadcast %cst_23 : f32 to vector<128x1xf32>
      %95 = arith.addf %94, %93 : vector<128x1xf32>
      %96 = arith.divf %94, %95 : vector<128x1xf32>
      %c0_24 = arith.constant 0 : index
      %c0_25 = arith.constant 0 : index
      %c0_26 = arith.constant 0 : index
      %97 = vector.load %arg5[%c0_24, %c0_25, %c0_26] : memref<1x128x1xf32, #tpu.memory_space<vmem>>, vector<1x128x1xf32>
      %98 = vector.shape_cast %97 : vector<1x128x1xf32> to vector<128x1xf32>
      %99 = vector.shape_cast %96 : vector<128x1xf32> to vector<1x128x1xf32>
      tpu.vector_store %arg5[%c0_24, %c0_25, %c0_26], %99 {strides = array<i32>} : memref<1x128x1xf32, #tpu.memory_space<vmem>>, vector<1x128x1xf32>,
    } else {
    }
    return
  }
  func.func @transform_0(%arg0: i32, %arg1: i32) -> (i32, i32, i32) {
    %c0_i32 = arith.constant 0 : i32
    %c0_i32_0 = arith.constant 0 : i32
    return %arg0, %c0_i32, %arg1 : i32, i32, i32
  }
  func.func @transform_1(%arg0: i32, %arg1: i32) -> (i32, i32) {
    %c0_i32 = arith.constant 0 : i32
    %c0_i32_0 = arith.constant 0 : i32
    %c0_i32_1 = arith.constant 0 : i32
    return %c0_i32, %c0_i32_0 : i32, i32
  }
  func.func @transform_2(%arg0: i32, %arg1: i32) -> (i32, i32) {
    %c0_i32 = arith.constant 0 : i32
    %c0_i32_0 = arith.constant 0 : i32
    %c0_i32_1 = arith.constant 0 : i32
    return %c0_i32, %c0_i32_0 : i32, i32
  }
  func.func @transform_3(%arg0: i32, %arg1: i32) -> (i32, i32, i32) {
    %c0_i32 = arith.constant 0 : i32
    %c0_i32_0 = arith.constant 0 : i32
    %c0_i32_1 = arith.constant 0 : i32
    return %arg0, %c0_i32, %c0_i32_0 : i32, i32, i32
  }
}

</mosaic_0001>

<llo_original>
// kernel: channel_attention.3
$region0: #{channel_attention.3}
  #allocation0 [shape = 'u32[]', space=smem, size = 0x4, offset = 0x4, fixed_abs, tag = 'smem constant byte address 0x4 - core index']
  #allocation1 [shape = 'u32[144,128]{1,0:T(1,128)}', space=vmem, size = 0x12000, scoped, tag = 'internal scratch']
  %s0 = inlined_call_operand.vmem [shape: f32[2,128,2048], index: 0, kind: input, shape index: {}]
  %s1 = inlined_call_operand.vmem [shape: f32[2,128,1], index: 1, kind: input, shape index: {}]
  %s2 = inlined_call_operand.vmem [shape: f32[2,128,2048], index: 2, kind: output, shape index: {}]
  %s3 = sld [smem:[#allocation0]]
  $region41: #{channel_attention.3} parent=0
    _
  %s5 = ssub.s32 1, %s3
  %s6 = scalar_select 0, %s5, %s3
  loop: start=0, step=1, limit=4
  $region2: #{channel_attention.3} parent=0 // loop_pre_header
    _
  $region3: #{channel_attention.3} parent=0 // loop_header
    %s8 = sphi 0, %s12
    %p9 = scmp.ge.s32.totalorder %s8, 4
    %s15 = sphi 0, %s27
    %s16 = sphi 0, %s23
    %s17 = sphi 0, %s15
    %s18 = sphi 0, %s16
    %s19 = sphi 0, %s17
    %s20 = sphi 0, %s18
    %s32 = sphi 0, %s34
    %s35 = sphi 0, %s32
    %s36 = sphi 0, %s35
    %s52 = sphi 0, %s36
    %s58 = sphi 0, %s60
    %s61 = sphi 0, %s58
    %s62 = sphi 0, %s61
    %s78 = sphi 0, %s62
    %s86 = sphi 0, %s88
    %s89 = sphi 0, %s86
    %s90 = sphi 0, %s89
    %s106 = sphi 0, %s90
  $region4: #{channel_attention.3} parent=0 // loop_header_branch
    %11 = sbr.rel (%p9) target = $region8
  $region5: #{channel_attention.3} parent=0 // loop_body
    %s13 = ssub.s32 %s8, 1
    %s14 = ssub.s32 %s8, 2
    %s21 = sadd.s32 1, %s16
    %p22 = scmp.ge.s32.totalorder %s21, 1
    %s23 = scalar_select %p22, 0, %s21
    %s24 = sadd.s32 1, %s15
    %s25 = scalar_select %p22, %s24, %s15
    %p26 = scmp.ge.s32.totalorder %s25, 2
    %s27 = scalar_select %p26, 0, %s25
    %s28 = ssub.s32 %s15, %s27
    %s29 = ssub.s32 %s16, %s23
    %s30 = sor.u32 %s28, %s29
    %p31 = scmp.eq.s32.totalorder %s30, 0
    %s33 = sadd.s32 %s32, 1
    %s34 = scalar_select %p31, %s32, %s33
    %p37 = pneg %p31
    %p38 = scmp.eq.s32.totalorder %s8, 1
    %p39 = por %p37, %p38
    %p40 = scmp.ne.s32.totalorder %s32, %s35
    %p41 = scmp.eq.s32.totalorder %s8, 0
    %p42 = por %p40, %p41
    %p43 = scmp.ne.s32.totalorder %s32, %s35
    %p44 = scmp.eq.s32.totalorder %s13, 1
    %p45 = por %p43, %p44
    %p46 = scmp.ne.s32.totalorder %s35, %s36
    %p47 = scmp.eq.s32.totalorder %s13, 0
    %p48 = por %p46, %p47
    %p49 = scmp.ne.s32.totalorder %s35, %s36
    %p50 = scmp.eq.s32.totalorder %s14, 1
    %p51 = por %p49, %p50
    %p53 = scmp.ne.s32.totalorder %s36, %s52
    %p54 = scmp.eq.s32.totalorder %s14, 0
    %p55 = por %p53, %p54
    %s56 = ssub.s32 %s15, %s27
    %p57 = scmp.eq.s32.totalorder %s56, 0
    %s59 = sadd.s32 %s58, 1
    %s60 = scalar_select %p57, %s58, %s59
    %p63 = pneg %p57
    %p64 = scmp.eq.s32.totalorder %s8, 1
    %p65 = por %p63, %p64
    %p66 = scmp.ne.s32.totalorder %s58, %s61
    %p67 = scmp.eq.s32.totalorder %s8, 0
    %p68 = por %p66, %p67
    %p69 = scmp.ne.s32.totalorder %s58, %s61
    %p70 = scmp.eq.s32.totalorder %s13, 1
    %p71 = por %p69, %p70
    %p72 = scmp.ne.s32.totalorder %s61, %s62
    %p73 = scmp.eq.s32.totalorder %s13, 0
    %p74 = por %p72, %p73
    %p75 = scmp.ne.s32.totalorder %s61, %s62
    %p76 = scmp.eq.s32.totalorder %s14, 1
    %p77 = por %p75, %p76
    %p79 = scmp.ne.s32.totalorder %s62, %s78
    %p80 = scmp.eq.s32.totalorder %s14, 0
    %p81 = por %p79, %p80
    %s82 = ssub.s32 %s15, %s27
    %s83 = ssub.s32 %s16, %s23
    %s84 = sor.u32 %s82, %s83
    %p85 = scmp.eq.s32.totalorder %s84, 0
    %s87 = sadd.s32 %s86, 1
    %s88 = scalar_select %p85, %s86, %s87
    %p91 = pneg %p85
    %p92 = scmp.eq.s32.totalorder %s8, 1
    %p93 = por %p91, %p92
    %p94 = scmp.ne.s32.totalorder %s86, %s89
    %p95 = scmp.eq.s32.totalorder %s8, 0
    %p96 = por %p94, %p95
    %p97 = scmp.ne.s32.totalorder %s86, %s89
    %p98 = scmp.eq.s32.totalorder %s13, 1
    %p99 = por %p97, %p98
    %p100 = scmp.ne.s32.totalorder %s89, %s90
    %p101 = scmp.eq.s32.totalorder %s13, 0
    %p102 = por %p100, %p101
    %p103 = scmp.ne.s32.totalorder %s89, %s90
    %p104 = scmp.eq.s32.totalorder %s14, 1
    %p105 = por %p103, %p104
    %p107 = scmp.ne.s32.totalorder %s90, %s106
    %p108 = scmp.eq.s32.totalorder %s14, 0
    %p109 = por %p107, %p108
    %p110 = scmp.le.s32.totalorder 1, %s8
    %p111 = scmp.lt.s32.totalorder %s8, 3
    %p112 = pnand %p110, %p111
    %p113 = pneg %p112
    // Predicated region
    $region9: #{channel_attention.3} parent=5 // pred_check
      _
    $region10: #{channel_attention.3} parent=5 // pred_check_branch
      %115 = sbr.rel (%p112) target = $region12
    $region11: #{channel_attention.3} parent=5 // pred_region
      %s116 = ssub.s32 %s8, 1
    $region12: #{channel_attention.3} parent=5 // pred_fallthru
      _
    %p117 = scmp.lt.s32.totalorder %s8, 2
    // Predicated region
    $region13: #{channel_attention.3} parent=5 // pred_check
      %p118 = pneg %p117
    $region14: #{channel_attention.3} parent=5 // pred_check_branch
      %120 = sbr.rel (%p118) target = $region16
    $region15: #{channel_attention.3} parent=5 // pred_region
      // Predicated region
      $region17: #{channel_attention.3} parent=15 // pred_check
        %p121 = pneg %p42
      $region18: #{channel_attention.3} parent=15 // pred_check_branch
        %123 = sbr.rel (%p121) target = $region20
      $region19: #{channel_attention.3} parent=15 // pred_region
        %s124 = smul.u32 16, %s16
        %p125 = scmp.lt.s32.totalorder %s15, 1
        %s126 = scalar_select %p125, %s15, 1
        %p127 = scmp.lt.s32.totalorder %s124, 15
        %s128 = scalar_select %p127, %s124, 15
        %s129 = smul.addr %s126, 256
        %s130 = sadd.s32 %s128, %s129
        %s131 = smul.addr %s130, 8
        %s132 = scalar_lea.vmem %s0, %s131
        %s133 = smul.u32 16, %s16
      $region20: #{channel_attention.3} parent=15 // pred_fallthru
        _
      // Predicated region
      $region21: #{channel_attention.3} parent=15 // pred_check
        %p134 = pneg %p68
      $region22: #{channel_attention.3} parent=15 // pred_check_branch
        %136 = sbr.rel (%p134) target = $region24
      $region23: #{channel_attention.3} parent=15 // pred_region
        %p137 = scmp.lt.s32.totalorder %s15, 1
        %s138 = scalar_select %p137, %s15, 1
        %s139 = smul.addr %s138, 16
        %s140 = smul.addr %s139, 8
        %s141 = scalar_lea.vmem %s1, %s140
      $region24: #{channel_attention.3} parent=15 // pred_fallthru
        _
    $region16: #{channel_attention.3} parent=5 // pred_fallthru
      _
    %p142 = scmp.le.s32.totalorder 1, %s8
    %p143 = scmp.lt.s32.totalorder %s8, 3
    %p144 = pnand %p142, %p143
    %p145 = pneg %p144
    // Predicated region
    $region25: #{channel_attention.3} parent=5 // pred_check
      _
    $region26: #{channel_attention.3} parent=5 // pred_check_branch
      %147 = sbr.rel (%p144) target = $region28
    $region27: #{channel_attention.3} parent=5 // pred_region
      %s148 = ssub.s32 %s8, 1
      %s149 = smul.u32 16, %s18
      %p150 = scmp.lt.s32.totalorder %s17, 1
      %s151 = scalar_select %p150, %s17, 1
      %p152 = scmp.lt.s32.totalorder %s149, 15
      %s153 = scalar_select %p152, %s149, 15
      %s154 = smul.addr %s151, 256
      %s155 = sadd.s32 %s153, %s154
      %s156 = smul.addr %s155, 8
      %s157 = scalar_lea.vmem %s0, %s156
      %p158 = pneg %p48
      %p159 = pneg %p45
      %p160 = scmp.lt.s32.totalorder %s17, 1
      %s161 = scalar_select %p160, %s17, 1
      %s162 = smul.addr %s161, 16
      %s163 = smul.addr %s162, 8
      %s164 = scalar_lea.vmem %s1, %s163
      %p165 = pneg %p74
      %p166 = pneg %p71
      %p167 = pneg %p102
      %p168 = pneg %p99
      %s169 = smul.u32 16, %s18
      %p170 = scmp.lt.s32.totalorder %s17, 1
      %s171 = scalar_select %p170, %s17, 1
      %p172 = scmp.lt.s32.totalorder %s169, 15
      %s173 = scalar_select %p172, %s169, 15
      %s174 = smul.addr %s171, 256
      %s175 = sadd.s32 %s173, %s174
      %s176 = smul.addr %s175, 8
      %s177 = scalar_lea.vmem %s2, %s176
      %s178 = smul.u32 16, %s18
      %p179 = scmp.lt.s32.totalorder %s17, 1
      %s180 = scalar_select %p179, %s17, 1
      %p181 = scmp.lt.s32.totalorder %s178, 15
      %s182 = scalar_select %p181, %s178, 15
      %s183 = smul.addr %s180, 256
      %s184 = sadd.s32 %s182, %s183
      %s185 = smul.addr %s184, 8
      %s186 = scalar_lea.vmem %s0, %s185
      %s187 = smul.u32 16, %s18
      %p188 = scmp.lt.s32.totalorder %s17, 1
      %s189 = scalar_select %p188, %s17, 1
      %s190 = smul.addr %s189, 16
      %s191 = smul.addr %s190, 8
      %s192 = scalar_lea.vmem %s1, %s191
      %s193 = smul.u32 16, %s18
      %p194 = scmp.lt.s32.totalorder %s17, 1
      %s195 = scalar_select %p194, %s17, 1
      %p196 = scmp.lt.s32.totalorder %s193, 15
      %s197 = scalar_select %p196, %s193, 15
      %s198 = smul.addr %s195, 256
      %s199 = sadd.s32 %s197, %s198
      %s200 = smul.addr %s199, 8
      %s201 = scalar_lea.vmem %s2, %s200
      %s202 = smul.u32 16, %s18
      %v203 = vld [vmem:[%s186] sm:$0xff]
      %v204 = vld [vmem:[%s186 + $0x8] sm:$0xff]
      %v205 = vld [vmem:[%s186 + $0x10] sm:$0xff]
      %v206 = vld [vmem:[%s186 + $0x18] sm:$0xff]
      %v207 = vld [vmem:[%s186 + $0x20] sm:$0xff]
      %v208 = vld [vmem:[%s186 + $0x28] sm:$0xff]
      %v209 = vld [vmem:[%s186 + $0x30] sm:$0xff]
      %v210 = vld [vmem:[%s186 + $0x38] sm:$0xff]
      %v211 = vld [vmem:[%s186 + $0x40] sm:$0xff]
      %v212 = vld [vmem:[%s186 + $0x48] sm:$0xff]
      %v213 = vld [vmem:[%s186 + $0x50] sm:$0xff]
      %v214 = vld [vmem:[%s186 + $0x58] sm:$0xff]
      %v215 = vld [vmem:[%s186 + $0x60] sm:$0xff]
      %v216 = vld [vmem:[%s186 + $0x68] sm:$0xff]
      %v217 = vld [vmem:[%s186 + $0x70] sm:$0xff]
      %v218 = vld [vmem:[%s186 + $0x78] sm:$0xff]
      %v219 = vld [vmem:[%s186 + $0x80] sm:$0xff]
      %v220 = vld [vmem:[%s186 + $0x88] sm:$0xff]
      %v221 = vld [vmem:[%s186 + $0x90] sm:$0xff]
      %v222 = vld [vmem:[%s186 + $0x98] sm:$0xff]
      %v223 = vld [vmem:[%s186 + $0xa0] sm:$0xff]
      %v224 = vld [vmem:[%s186 + $0xa8] sm:$0xff]
      %v225 = vld [vmem:[%s186 + $0xb0] sm:$0xff]
      %v226 = vld [vmem:[%s186 + $0xb8] sm:$0xff]
      %v227 = vld [vmem:[%s186 + $0xc0] sm:$0xff]
      %v228 = vld [vmem:[%s186 + $0xc8] sm:$0xff]
      %v229 = vld [vmem:[%s186 + $0xd0] sm:$0xff]
      %v230 = vld [vmem:[%s186 + $0xd8] sm:$0xff]
      %v231 = vld [vmem:[%s186 + $0xe0] sm:$0xff]
      %v232 = vld [vmem:[%s186 + $0xe8] sm:$0xff]
      %v233 = vld [vmem:[%s186 + $0xf0] sm:$0xff]
      %v234 = vld [vmem:[%s186 + $0xf8] sm:$0xff]
      %v235 = vld [vmem:[%s186 + $0x100] sm:$0xff]
      %v236 = vld [vmem:[%s186 + $0x108] sm:$0xff]
      %v237 = vld [vmem:[%s186 + $0x110] sm:$0xff]
      %v238 = vld [vmem:[%s186 + $0x118] sm:$0xff]
      %v239 = vld [vmem:[%s186 + $0x120] sm:$0xff]
      %v240 = vld [vmem:[%s186 + $0x128] sm:$0xff]
      %v241 = vld [vmem:[%s186 + $0x130] sm:$0xff]
      %v242 = vld [vmem:[%s186 + $0x138] sm:$0xff]
      %v243 = vld [vmem:[%s186 + $0x140] sm:$0xff]
      %v244 = vld [vmem:[%s186 + $0x148] sm:$0xff]
      %v245 = vld [vmem:[%s186 + $0x150] sm:$0xff]
      %v246 = vld [vmem:[%s186 + $0x158] sm:$0xff]
      %v247 = vld [vmem:[%s186 + $0x160] sm:$0xff]
      %v248 = vld [vmem:[%s186 + $0x168] sm:$0xff]
      %v249 = vld [vmem:[%s186 + $0x170] sm:$0xff]
      %v250 = vld [vmem:[%s186 + $0x178] sm:$0xff]
      %v251 = vld [vmem:[%s186 + $0x180] sm:$0xff]
      %v252 = vld [vmem:[%s186 + $0x188] sm:$0xff]
      %v253 = vld [vmem:[%s186 + $0x190] sm:$0xff]
      %v254 = vld [vmem:[%s186 + $0x198] sm:$0xff]
      %v255 = vld [vmem:[%s186 + $0x1a0] sm:$0xff]
      %v256 = vld [vmem:[%s186 + $0x1a8] sm:$0xff]
      %v257 = vld [vmem:[%s186 + $0x1b0] sm:$0xff]
      %v258 = vld [vmem:[%s186 + $0x1b8] sm:$0xff]
      %v259 = vld [vmem:[%s186 + $0x1c0] sm:$0xff]
      %v260 = vld [vmem:[%s186 + $0x1c8] sm:$0xff]
      %v261 = vld [vmem:[%s186 + $0x1d0] sm:$0xff]
      %v262 = vld [vmem:[%s186 + $0x1d8] sm:$0xff]
      %v263 = vld [vmem:[%s186 + $0x1e0] sm:$0xff]
      %v264 = vld [vmem:[%s186 + $0x1e8] sm:$0xff]
      %v265 = vld [vmem:[%s186 + $0x1f0] sm:$0xff]
      %v266 = vld [vmem:[%s186 + $0x1f8] sm:$0xff]
      %v267 = vld [vmem:[%s186 + $0x200] sm:$0xff]
      %v268 = vld [vmem:[%s186 + $0x208] sm:$0xff]
      %v269 = vld [vmem:[%s186 + $0x210] sm:$0xff]
      %v270 = vld [vmem:[%s186 + $0x218] sm:$0xff]
      %v271 = vld [vmem:[%s186 + $0x220] sm:$0xff]
      %v272 = vld [vmem:[%s186 + $0x228] sm:$0xff]
      %v273 = vld [vmem:[%s186 + $0x230] sm:$0xff]
      %v274 = vld [vmem:[%s186 + $0x238] sm:$0xff]
      %v275 = vld [vmem:[%s186 + $0x240] sm:$0xff]
      %v276 = vld [vmem:[%s186 + $0x248] sm:$0xff]
      %v277 = vld [vmem:[%s186 + $0x250] sm:$0xff]
      %v278 = vld [vmem:[%s186 + $0x258] sm:$0xff]
      %v279 = vld [vmem:[%s186 + $0x260] sm:$0xff]
      %v280 = vld [vmem:[%s186 + $0x268] sm:$0xff]
      %v281 = vld [vmem:[%s186 + $0x270] sm:$0xff]
      %v282 = vld [vmem:[%s186 + $0x278] sm:$0xff]
      %v283 = vld [vmem:[%s186 + $0x280] sm:$0xff]
      %v284 = vld [vmem:[%s186 + $0x288] sm:$0xff]
      %v285 = vld [vmem:[%s186 + $0x290] sm:$0xff]
      %v286 = vld [vmem:[%s186 + $0x298] sm:$0xff]
      %v287 = vld [vmem:[%s186 + $0x2a0] sm:$0xff]
      %v288 = vld [vmem:[%s186 + $0x2a8] sm:$0xff]
      %v289 = vld [vmem:[%s186 + $0x2b0] sm:$0xff]
      %v290 = vld [vmem:[%s186 + $0x2b8] sm:$0xff]
      %v291 = vld [vmem:[%s186 + $0x2c0] sm:$0xff]
      %v292 = vld [vmem:[%s186 + $0x2c8] sm:$0xff]
      %v293 = vld [vmem:[%s186 + $0x2d0] sm:$0xff]
      %v294 = vld [vmem:[%s186 + $0x2d8] sm:$0xff]
      %v295 = vld [vmem:[%s186 + $0x2e0] sm:$0xff]
      %v296 = vld [vmem:[%s186 + $0x2e8] sm:$0xff]
      %v297 = vld [vmem:[%s186 + $0x2f0] sm:$0xff]
      %v298 = vld [vmem:[%s186 + $0x2f8] sm:$0xff]
      %v299 = vld [vmem:[%s186 + $0x300] sm:$0xff]
      %v300 = vld [vmem:[%s186 + $0x308] sm:$0xff]
      %v301 = vld [vmem:[%s186 + $0x310] sm:$0xff]
      %v302 = vld [vmem:[%s186 + $0x318] sm:$0xff]
      %v303 = vld [vmem:[%s186 + $0x320] sm:$0xff]
      %v304 = vld [vmem:[%s186 + $0x328] sm:$0xff]
      %v305 = vld [vmem:[%s186 + $0x330] sm:$0xff]
      %v306 = vld [vmem:[%s186 + $0x338] sm:$0xff]
      %v307 = vld [vmem:[%s186 + $0x340] sm:$0xff]
      %v308 = vld [vmem:[%s186 + $0x348] sm:$0xff]
      %v309 = vld [vmem:[%s186 + $0x350] sm:$0xff]
      %v310 = vld [vmem:[%s186 + $0x358] sm:$0xff]
      %v311 = vld [vmem:[%s186 + $0x360] sm:$0xff]
      %v312 = vld [vmem:[%s186 + $0x368] sm:$0xff]
      %v313 = vld [vmem:[%s186 + $0x370] sm:$0xff]
      %v314 = vld [vmem:[%s186 + $0x378] sm:$0xff]
      %v315 = vld [vmem:[%s186 + $0x380] sm:$0xff]
      %v316 = vld [vmem:[%s186 + $0x388] sm:$0xff]
      %v317 = vld [vmem:[%s186 + $0x390] sm:$0xff]
      %v318 = vld [vmem:[%s186 + $0x398] sm:$0xff]
      %v319 = vld [vmem:[%s186 + $0x3a0] sm:$0xff]
      %v320 = vld [vmem:[%s186 + $0x3a8] sm:$0xff]
      %v321 = vld [vmem:[%s186 + $0x3b0] sm:$0xff]
      %v322 = vld [vmem:[%s186 + $0x3b8] sm:$0xff]
      %v323 = vld [vmem:[%s186 + $0x3c0] sm:$0xff]
      %v324 = vld [vmem:[%s186 + $0x3c8] sm:$0xff]
      %v325 = vld [vmem:[%s186 + $0x3d0] sm:$0xff]
      %v326 = vld [vmem:[%s186 + $0x3d8] sm:$0xff]
      %v327 = vld [vmem:[%s186 + $0x3e0] sm:$0xff]
      %v328 = vld [vmem:[%s186 + $0x3e8] sm:$0xff]
      %v329 = vld [vmem:[%s186 + $0x3f0] sm:$0xff]
      %v330 = vld [vmem:[%s186 + $0x3f8] sm:$0xff]
      %v331 = vld [vmem:[%s186 + $0x400] sm:$0xff]
      %v332 = vld [vmem:[%s186 + $0x408] sm:$0xff]
      %v333 = vld [vmem:[%s186 + $0x410] sm:$0xff]
      %v334 = vld [vmem:[%s186 + $0x418] sm:$0xff]
      %v335 = vld [vmem:[%s186 + $0x420] sm:$0xff]
      %v336 = vld [vmem:[%s186 + $0x428] sm:$0xff]
      %v337 = vld [vmem:[%s186 + $0x430] sm:$0xff]
      %v338 = vld [vmem:[%s186 + $0x438] sm:$0xff]
      %v339 = vld [vmem:[%s186 + $0x440] sm:$0xff]
      %v340 = vld [vmem:[%s186 + $0x448] sm:$0xff]
      %v341 = vld [vmem:[%s186 + $0x450] sm:$0xff]
      %v342 = vld [vmem:[%s186 + $0x458] sm:$0xff]
      %v343 = vld [vmem:[%s186 + $0x460] sm:$0xff]
      %v344 = vld [vmem:[%s186 + $0x468] sm:$0xff]
      %v345 = vld [vmem:[%s186 + $0x470] sm:$0xff]
      %v346 = vld [vmem:[%s186 + $0x478] sm:$0xff]
      %v347 = vld [vmem:[%s186 + $0x480] sm:$0xff]
      %v348 = vld [vmem:[%s186 + $0x488] sm:$0xff]
      %v349 = vld [vmem:[%s186 + $0x490] sm:$0xff]
      %v350 = vld [vmem:[%s186 + $0x498] sm:$0xff]
      %v351 = vld [vmem:[%s186 + $0x4a0] sm:$0xff]
      %v352 = vld [vmem:[%s186 + $0x4a8] sm:$0xff]
      %v353 = vld [vmem:[%s186 + $0x4b0] sm:$0xff]
      %v354 = vld [vmem:[%s186 + $0x4b8] sm:$0xff]
      %v355 = vld [vmem:[%s186 + $0x4c0] sm:$0xff]
      %v356 = vld [vmem:[%s186 + $0x4c8] sm:$0xff]
      %v357 = vld [vmem:[%s186 + $0x4d0] sm:$0xff]
      %v358 = vld [vmem:[%s186 + $0x4d8] sm:$0xff]
      %v359 = vld [vmem:[%s186 + $0x4e0] sm:$0xff]
      %v360 = vld [vmem:[%s186 + $0x4e8] sm:$0xff]
      %v361 = vld [vmem:[%s186 + $0x4f0] sm:$0xff]
      %v362 = vld [vmem:[%s186 + $0x4f8] sm:$0xff]
      %v363 = vld [vmem:[%s186 + $0x500] sm:$0xff]
      %v364 = vld [vmem:[%s186 + $0x508] sm:$0xff]
      %v365 = vld [vmem:[%s186 + $0x510] sm:$0xff]
      %v366 = vld [vmem:[%s186 + $0x518] sm:$0xff]
      %v367 = vld [vmem:[%s186 + $0x520] sm:$0xff]
      %v368 = vld [vmem:[%s186 + $0x528] sm:$0xff]
      %v369 = vld [vmem:[%s186 + $0x530] sm:$0xff]
      %v370 = vld [vmem:[%s186 + $0x538] sm:$0xff]
      %v371 = vld [vmem:[%s186 + $0x540] sm:$0xff]
      %v372 = vld [vmem:[%s186 + $0x548] sm:$0xff]
      %v373 = vld [vmem:[%s186 + $0x550] sm:$0xff]
      %v374 = vld [vmem:[%s186 + $0x558] sm:$0xff]
      %v375 = vld [vmem:[%s186 + $0x560] sm:$0xff]
      %v376 = vld [vmem:[%s186 + $0x568] sm:$0xff]
      %v377 = vld [vmem:[%s186 + $0x570] sm:$0xff]
      %v378 = vld [vmem:[%s186 + $0x578] sm:$0xff]
      %v379 = vld [vmem:[%s186 + $0x580] sm:$0xff]
      %v380 = vld [vmem:[%s186 + $0x588] sm:$0xff]
      %v381 = vld [vmem:[%s186 + $0x590] sm:$0xff]
      %v382 = vld [vmem:[%s186 + $0x598] sm:$0xff]
      %v383 = vld [vmem:[%s186 + $0x5a0] sm:$0xff]
      %v384 = vld [vmem:[%s186 + $0x5a8] sm:$0xff]
      %v385 = vld [vmem:[%s186 + $0x5b0] sm:$0xff]
      %v386 = vld [vmem:[%s186 + $0x5b8] sm:$0xff]
      %v387 = vld [vmem:[%s186 + $0x5c0] sm:$0xff]
      %v388 = vld [vmem:[%s186 + $0x5c8] sm:$0xff]
      %v389 = vld [vmem:[%s186 + $0x5d0] sm:$0xff]
      %v390 = vld [vmem:[%s186 + $0x5d8] sm:$0xff]
      %v391 = vld [vmem:[%s186 + $0x5e0] sm:$0xff]
      %v392 = vld [vmem:[%s186 + $0x5e8] sm:$0xff]
      %v393 = vld [vmem:[%s186 + $0x5f0] sm:$0xff]
      %v394 = vld [vmem:[%s186 + $0x5f8] sm:$0xff]
      %v395 = vld [vmem:[%s186 + $0x600] sm:$0xff]
      %v396 = vld [vmem:[%s186 + $0x608] sm:$0xff]
      %v397 = vld [vmem:[%s186 + $0x610] sm:$0xff]
      %v398 = vld [vmem:[%s186 + $0x618] sm:$0xff]
      %v399 = vld [vmem:[%s186 + $0x620] sm:$0xff]
      %v400 = vld [vmem:[%s186 + $0x628] sm:$0xff]
      %v401 = vld [vmem:[%s186 + $0x630] sm:$0xff]
      %v402 = vld [vmem:[%s186 + $0x638] sm:$0xff]
      %v403 = vld [vmem:[%s186 + $0x640] sm:$0xff]
      %v404 = vld [vmem:[%s186 + $0x648] sm:$0xff]
      %v405 = vld [vmem:[%s186 + $0x650] sm:$0xff]
      %v406 = vld [vmem:[%s186 + $0x658] sm:$0xff]
      %v407 = vld [vmem:[%s186 + $0x660] sm:$0xff]
      %v408 = vld [vmem:[%s186 + $0x668] sm:$0xff]
      %v409 = vld [vmem:[%s186 + $0x670] sm:$0xff]
      %v410 = vld [vmem:[%s186 + $0x678] sm:$0xff]
      %v411 = vld [vmem:[%s186 + $0x680] sm:$0xff]
      %v412 = vld [vmem:[%s186 + $0x688] sm:$0xff]
      %v413 = vld [vmem:[%s186 + $0x690] sm:$0xff]
      %v414 = vld [vmem:[%s186 + $0x698] sm:$0xff]
      %v415 = vld [vmem:[%s186 + $0x6a0] sm:$0xff]
      %v416 = vld [vmem:[%s186 + $0x6a8] sm:$0xff]
      %v417 = vld [vmem:[%s186 + $0x6b0] sm:$0xff]
      %v418 = vld [vmem:[%s186 + $0x6b8] sm:$0xff]
      %v419 = vld [vmem:[%s186 + $0x6c0] sm:$0xff]
      %v420 = vld [vmem:[%s186 + $0x6c8] sm:$0xff]
      %v421 = vld [vmem:[%s186 + $0x6d0] sm:$0xff]
      %v422 = vld [vmem:[%s186 + $0x6d8] sm:$0xff]
      %v423 = vld [vmem:[%s186 + $0x6e0] sm:$0xff]
      %v424 = vld [vmem:[%s186 + $0x6e8] sm:$0xff]
      %v425 = vld [vmem:[%s186 + $0x6f0] sm:$0xff]
      %v426 = vld [vmem:[%s186 + $0x6f8] sm:$0xff]
      %v427 = vld [vmem:[%s186 + $0x700] sm:$0xff]
      %v428 = vld [vmem:[%s186 + $0x708] sm:$0xff]
      %v429 = vld [vmem:[%s186 + $0x710] sm:$0xff]
      %v430 = vld [vmem:[%s186 + $0x718] sm:$0xff]
      %v431 = vld [vmem:[%s186 + $0x720] sm:$0xff]
      %v432 = vld [vmem:[%s186 + $0x728] sm:$0xff]
      %v433 = vld [vmem:[%s186 + $0x730] sm:$0xff]
      %v434 = vld [vmem:[%s186 + $0x738] sm:$0xff]
      %v435 = vld [vmem:[%s186 + $0x740] sm:$0xff]
      %v436 = vld [vmem:[%s186 + $0x748] sm:$0xff]
      %v437 = vld [vmem:[%s186 + $0x750] sm:$0xff]
      %v438 = vld [vmem:[%s186 + $0x758] sm:$0xff]
      %v439 = vld [vmem:[%s186 + $0x760] sm:$0xff]
      %v440 = vld [vmem:[%s186 + $0x768] sm:$0xff]
      %v441 = vld [vmem:[%s186 + $0x770] sm:$0xff]
      %v442 = vld [vmem:[%s186 + $0x778] sm:$0xff]
      %v443 = vld [vmem:[%s186 + $0x780] sm:$0xff]
      %v444 = vld [vmem:[%s186 + $0x788] sm:$0xff]
      %v445 = vld [vmem:[%s186 + $0x790] sm:$0xff]
      %v446 = vld [vmem:[%s186 + $0x798] sm:$0xff]
      %v447 = vld [vmem:[%s186 + $0x7a0] sm:$0xff]
      %v448 = vld [vmem:[%s186 + $0x7a8] sm:$0xff]
      %v449 = vld [vmem:[%s186 + $0x7b0] sm:$0xff]
      %v450 = vld [vmem:[%s186 + $0x7b8] sm:$0xff]
      %v451 = vld [vmem:[%s186 + $0x7c0] sm:$0xff]
      %v452 = vld [vmem:[%s186 + $0x7c8] sm:$0xff]
      %v453 = vld [vmem:[%s186 + $0x7d0] sm:$0xff]
      %v454 = vld [vmem:[%s186 + $0x7d8] sm:$0xff]
      %v455 = vld [vmem:[%s186 + $0x7e0] sm:$0xff]
      %v456 = vld [vmem:[%s186 + $0x7e8] sm:$0xff]
      %v457 = vld [vmem:[%s186 + $0x7f0] sm:$0xff]
      %v458 = vld [vmem:[%s186 + $0x7f8] sm:$0xff]
      %v459 = vld [vmem:[%s192] sm:$0xff]
      %v460 = vld [vmem:[%s192 + $0x8] sm:$0xff]
      %v461 = vld [vmem:[%s192 + $0x10] sm:$0xff]
      %v462 = vld [vmem:[%s192 + $0x18] sm:$0xff]
      %v463 = vld [vmem:[%s192 + $0x20] sm:$0xff]
      %v464 = vld [vmem:[%s192 + $0x28] sm:$0xff]
      %v465 = vld [vmem:[%s192 + $0x30] sm:$0xff]
      %v466 = vld [vmem:[%s192 + $0x38] sm:$0xff]
      %v467 = vld [vmem:[%s192 + $0x40] sm:$0xff]
      %v468 = vld [vmem:[%s192 + $0x48] sm:$0xff]
      %v469 = vld [vmem:[%s192 + $0x50] sm:$0xff]
      %v470 = vld [vmem:[%s192 + $0x58] sm:$0xff]
      %v471 = vld [vmem:[%s192 + $0x60] sm:$0xff]
      %v472 = vld [vmem:[%s192 + $0x68] sm:$0xff]
      %v473 = vld [vmem:[%s192 + $0x70] sm:$0xff]
      %v474 = vld [vmem:[%s192 + $0x78] sm:$0xff]
      %476 = vset.pattern.permute.xlu0 0
      %477 = vperm.xlu0 %476, %v459
      %v478 = vpop.permute.xlu0 %477
      %481 = vset.pattern.permute.xlu0 0
      %482 = vperm.xlu0 %481, %v460
      %v483 = vpop.permute.xlu0 %482
      %486 = vset.pattern.permute.xlu0 0
      %487 = vperm.xlu0 %486, %v461
      %v488 = vpop.permute.xlu0 %487
      %491 = vset.pattern.permute.xlu0 0
      %492 = vperm.xlu0 %491, %v462
      %v493 = vpop.permute.xlu0 %492
      %496 = vset.pattern.permute.xlu0 0
      %497 = vperm.xlu0 %496, %v463
      %v498 = vpop.permute.xlu0 %497
      %501 = vset.pattern.permute.xlu0 0
      %502 = vperm.xlu0 %501, %v464
      %v503 = vpop.permute.xlu0 %502
      %506 = vset.pattern.permute.xlu0 0
      %507 = vperm.xlu0 %506, %v465
      %v508 = vpop.permute.xlu0 %507
      %511 = vset.pattern.permute.xlu0 0
      %512 = vperm.xlu0 %511, %v466
      %v513 = vpop.permute.xlu0 %512
      %516 = vset.pattern.permute.xlu0 0
      %517 = vperm.xlu0 %516, %v467
      %v518 = vpop.permute.xlu0 %517
      %521 = vset.pattern.permute.xlu0 0
      %522 = vperm.xlu0 %521, %v468
      %v523 = vpop.permute.xlu0 %522
      %526 = vset.pattern.permute.xlu0 0
      %527 = vperm.xlu0 %526, %v469
      %v528 = vpop.permute.xlu0 %527
      %531 = vset.pattern.permute.xlu0 0
      %532 = vperm.xlu0 %531, %v470
      %v533 = vpop.permute.xlu0 %532
      %536 = vset.pattern.permute.xlu0 0
      %537 = vperm.xlu0 %536, %v471
      %v538 = vpop.permute.xlu0 %537
      %541 = vset.pattern.permute.xlu0 0
      %542 = vperm.xlu0 %541, %v472
      %v543 = vpop.permute.xlu0 %542
      %546 = vset.pattern.permute.xlu0 0
      %547 = vperm.xlu0 %546, %v473
      %v548 = vpop.permute.xlu0 %547
      %551 = vset.pattern.permute.xlu0 0
      %552 = vperm.xlu0 %551, %v474
      %v553 = vpop.permute.xlu0 %552
      %v555 = vmul.f32 %v203, %v478
      %v556 = vmul.f32 %v204, %v478
      %v557 = vmul.f32 %v205, %v478
      %v558 = vmul.f32 %v206, %v478
      %v559 = vmul.f32 %v207, %v478
      %v560 = vmul.f32 %v208, %v478
      %v561 = vmul.f32 %v209, %v478
      %v562 = vmul.f32 %v210, %v478
      %v563 = vmul.f32 %v211, %v478
      %v564 = vmul.f32 %v212, %v478
      %v565 = vmul.f32 %v213, %v478
      %v566 = vmul.f32 %v214, %v478
      %v567 = vmul.f32 %v215, %v478
      %v568 = vmul.f32 %v216, %v478
      %v569 = vmul.f32 %v217, %v478
      %v570 = vmul.f32 %v218, %v478
      %v571 = vmul.f32 %v219, %v483
      %v572 = vmul.f32 %v220, %v483
      %v573 = vmul.f32 %v221, %v483
      %v574 = vmul.f32 %v222, %v483
      %v575 = vmul.f32 %v223, %v483
      %v576 = vmul.f32 %v224, %v483
      %v577 = vmul.f32 %v225, %v483
      %v578 = vmul.f32 %v226, %v483
      %v579 = vmul.f32 %v227, %v483
      %v580 = vmul.f32 %v228, %v483
      %v581 = vmul.f32 %v229, %v483
      %v582 = vmul.f32 %v230, %v483
      %v583 = vmul.f32 %v231, %v483
      %v584 = vmul.f32 %v232, %v483
      %v585 = vmul.f32 %v233, %v483
      %v586 = vmul.f32 %v234, %v483
      %v587 = vmul.f32 %v235, %v488
      %v588 = vmul.f32 %v236, %v488
      %v589 = vmul.f32 %v237, %v488
      %v590 = vmul.f32 %v238, %v488
      %v591 = vmul.f32 %v239, %v488
      %v592 = vmul.f32 %v240, %v488
      %v593 = vmul.f32 %v241, %v488
      %v594 = vmul.f32 %v242, %v488
      %v595 = vmul.f32 %v243, %v488
      %v596 = vmul.f32 %v244, %v488
      %v597 = vmul.f32 %v245, %v488
      %v598 = vmul.f32 %v246, %v488
      %v599 = vmul.f32 %v247, %v488
      %v600 = vmul.f32 %v248, %v488
      %v601 = vmul.f32 %v249, %v488
      %v602 = vmul.f32 %v250, %v488
      %v603 = vmul.f32 %v251, %v493
      %v604 = vmul.f32 %v252, %v493
      %v605 = vmul.f32 %v253, %v493
      %v606 = vmul.f32 %v254, %v493
      %v607 = vmul.f32 %v255, %v493
      %v608 = vmul.f32 %v256, %v493
      %v609 = vmul.f32 %v257, %v493
      %v610 = vmul.f32 %v258, %v493
      %v611 = vmul.f32 %v259, %v493
      %v612 = vmul.f32 %v260, %v493
      %v613 = vmul.f32 %v261, %v493
      %v614 = vmul.f32 %v262, %v493
      %v615 = vmul.f32 %v263, %v493
      %v616 = vmul.f32 %v264, %v493
      %v617 = vmul.f32 %v265, %v493
      %v618 = vmul.f32 %v266, %v493
      %v619 = vmul.f32 %v267, %v498
      %v620 = vmul.f32 %v268, %v498
      %v621 = vmul.f32 %v269, %v498
      %v622 = vmul.f32 %v270, %v498
      %v623 = vmul.f32 %v271, %v498
      %v624 = vmul.f32 %v272, %v498
      %v625 = vmul.f32 %v273, %v498
      %v626 = vmul.f32 %v274, %v498
      %v627 = vmul.f32 %v275, %v498
      %v628 = vmul.f32 %v276, %v498
      %v629 = vmul.f32 %v277, %v498
      %v630 = vmul.f32 %v278, %v498
      %v631 = vmul.f32 %v279, %v498
      %v632 = vmul.f32 %v280, %v498
      %v633 = vmul.f32 %v281, %v498
      %v634 = vmul.f32 %v282, %v498
      %v635 = vmul.f32 %v283, %v503
      %v636 = vmul.f32 %v284, %v503
      %v637 = vmul.f32 %v285, %v503
      %v638 = vmul.f32 %v286, %v503
      %v639 = vmul.f32 %v287, %v503
      %v640 = vmul.f32 %v288, %v503
      %v641 = vmul.f32 %v289, %v503
      %v642 = vmul.f32 %v290, %v503
      %v643 = vmul.f32 %v291, %v503
      %v644 = vmul.f32 %v292, %v503
      %v645 = vmul.f32 %v293, %v503
      %v646 = vmul.f32 %v294, %v503
      %v647 = vmul.f32 %v295, %v503
      %v648 = vmul.f32 %v296, %v503
      %v649 = vmul.f32 %v297, %v503
      %v650 = vmul.f32 %v298, %v503
      %v651 = vmul.f32 %v299, %v508
      %v652 = vmul.f32 %v300, %v508
      %v653 = vmul.f32 %v301, %v508
      %v654 = vmul.f32 %v302, %v508
      %v655 = vmul.f32 %v303, %v508
      %v656 = vmul.f32 %v304, %v508
      %v657 = vmul.f32 %v305, %v508
      %v658 = vmul.f32 %v306, %v508
      %v659 = vmul.f32 %v307, %v508
      %v660 = vmul.f32 %v308, %v508
      %v661 = vmul.f32 %v309, %v508
      %v662 = vmul.f32 %v310, %v508
      %v663 = vmul.f32 %v311, %v508
      %v664 = vmul.f32 %v312, %v508
      %v665 = vmul.f32 %v313, %v508
      %v666 = vmul.f32 %v314, %v508
      %v667 = vmul.f32 %v315, %v513
      %v668 = vmul.f32 %v316, %v513
      %v669 = vmul.f32 %v317, %v513
      %v670 = vmul.f32 %v318, %v513
      %v671 = vmul.f32 %v319, %v513
      %v672 = vmul.f32 %v320, %v513
      %v673 = vmul.f32 %v321, %v513
      %v674 = vmul.f32 %v322, %v513
      %v675 = vmul.f32 %v323, %v513
      %v676 = vmul.f32 %v324, %v513
      %v677 = vmul.f32 %v325, %v513
      %v678 = vmul.f32 %v326, %v513
      %v679 = vmul.f32 %v327, %v513
      %v680 = vmul.f32 %v328, %v513
      %v681 = vmul.f32 %v329, %v513
      %v682 = vmul.f32 %v330, %v513
      %v683 = vmul.f32 %v331, %v518
      %v684 = vmul.f32 %v332, %v518
      %v685 = vmul.f32 %v333, %v518
      %v686 = vmul.f32 %v334, %v518
      %v687 = vmul.f32 %v335, %v518
      %v688 = vmul.f32 %v336, %v518
      %v689 = vmul.f32 %v337, %v518
      %v690 = vmul.f32 %v338, %v518
      %v691 = vmul.f32 %v339, %v518
      %v692 = vmul.f32 %v340, %v518
      %v693 = vmul.f32 %v341, %v518
      %v694 = vmul.f32 %v342, %v518
      %v695 = vmul.f32 %v343, %v518
      %v696 = vmul.f32 %v344, %v518
      %v697 = vmul.f32 %v345, %v518
      %v698 = vmul.f32 %v346, %v518
      %v699 = vmul.f32 %v347, %v523
      %v700 = vmul.f32 %v348, %v523
      %v701 = vmul.f32 %v349, %v523
      %v702 = vmul.f32 %v350, %v523
      %v703 = vmul.f32 %v351, %v523
      %v704 = vmul.f32 %v352, %v523
      %v705 = vmul.f32 %v353, %v523
      %v706 = vmul.f32 %v354, %v523
      %v707 = vmul.f32 %v355, %v523
      %v708 = vmul.f32 %v356, %v523
      %v709 = vmul.f32 %v357, %v523
      %v710 = vmul.f32 %v358, %v523
      %v711 = vmul.f32 %v359, %v523
      %v712 = vmul.f32 %v360, %v523
      %v713 = vmul.f32 %v361, %v523
      %v714 = vmul.f32 %v362, %v523
      %v715 = vmul.f32 %v363, %v528
      %v716 = vmul.f32 %v364, %v528
      %v717 = vmul.f32 %v365, %v528
      %v718 = vmul.f32 %v366, %v528
      %v719 = vmul.f32 %v367, %v528
      %v720 = vmul.f32 %v368, %v528
      %v721 = vmul.f32 %v369, %v528
      %v722 = vmul.f32 %v370, %v528
      %v723 = vmul.f32 %v371, %v528
      %v724 = vmul.f32 %v372, %v528
      %v725 = vmul.f32 %v373, %v528
      %v726 = vmul.f32 %v374, %v528
      %v727 = vmul.f32 %v375, %v528
      %v728 = vmul.f32 %v376, %v528
      %v729 = vmul.f32 %v377, %v528
      %v730 = vmul.f32 %v378, %v528
      %v731 = vmul.f32 %v379, %v533
      %v732 = vmul.f32 %v380, %v533
      %v733 = vmul.f32 %v381, %v533
      %v734 = vmul.f32 %v382, %v533
      %v735 = vmul.f32 %v383, %v533
      %v736 = vmul.f32 %v384, %v533
      %v737 = vmul.f32 %v385, %v533
      %v738 = vmul.f32 %v386, %v533
      %v739 = vmul.f32 %v387, %v533
      %v740 = vmul.f32 %v388, %v533
      %v741 = vmul.f32 %v389, %v533
      %v742 = vmul.f32 %v390, %v533
      %v743 = vmul.f32 %v391, %v533
      %v744 = vmul.f32 %v392, %v533
      %v745 = vmul.f32 %v393, %v533
      %v746 = vmul.f32 %v394, %v533
      %v747 = vmul.f32 %v395, %v538
      %v748 = vmul.f32 %v396, %v538
      %v749 = vmul.f32 %v397, %v538
      %v750 = vmul.f32 %v398, %v538
      %v751 = vmul.f32 %v399, %v538
      %v752 = vmul.f32 %v400, %v538
      %v753 = vmul.f32 %v401, %v538
      %v754 = vmul.f32 %v402, %v538
      %v755 = vmul.f32 %v403, %v538
      %v756 = vmul.f32 %v404, %v538
      %v757 = vmul.f32 %v405, %v538
      %v758 = vmul.f32 %v406, %v538
      %v759 = vmul.f32 %v407, %v538
      %v760 = vmul.f32 %v408, %v538
      %v761 = vmul.f32 %v409, %v538
      %v762 = vmul.f32 %v410, %v538
      %v763 = vmul.f32 %v411, %v543
      %v764 = vmul.f32 %v412, %v543
      %v765 = vmul.f32 %v413, %v543
      %v766 = vmul.f32 %v414, %v543
      %v767 = vmul.f32 %v415, %v543
      %v768 = vmul.f32 %v416, %v543
      %v769 = vmul.f32 %v417, %v543
      %v770 = vmul.f32 %v418, %v543
      %v771 = vmul.f32 %v419, %v543
      %v772 = vmul.f32 %v420, %v543
      %v773 = vmul.f32 %v421, %v543
      %v774 = vmul.f32 %v422, %v543
      %v775 = vmul.f32 %v423, %v543
      %v776 = vmul.f32 %v424, %v543
      %v777 = vmul.f32 %v425, %v543
      %v778 = vmul.f32 %v426, %v543
      %v779 = vmul.f32 %v427, %v548
      %v780 = vmul.f32 %v428, %v548
      %v781 = vmul.f32 %v429, %v548
      %v782 = vmul.f32 %v430, %v548
      %v783 = vmul.f32 %v431, %v548
      %v784 = vmul.f32 %v432, %v548
      %v785 = vmul.f32 %v433, %v548
      %v786 = vmul.f32 %v434, %v548
      %v787 = vmul.f32 %v435, %v548
      %v788 = vmul.f32 %v436, %v548
      %v789 = vmul.f32 %v437, %v548
      %v790 = vmul.f32 %v438, %v548
      %v791 = vmul.f32 %v439, %v548
      %v792 = vmul.f32 %v440, %v548
      %v793 = vmul.f32 %v441, %v548
      %v794 = vmul.f32 %v442, %v548
      %v795 = vmul.f32 %v443, %v553
      %v796 = vmul.f32 %v444, %v553
      %v797 = vmul.f32 %v445, %v553
      %v798 = vmul.f32 %v446, %v553
      %v799 = vmul.f32 %v447, %v553
      %v800 = vmul.f32 %v448, %v553
      %v801 = vmul.f32 %v449, %v553
      %v802 = vmul.f32 %v450, %v553
      %v803 = vmul.f32 %v451, %v553
      %v804 = vmul.f32 %v452, %v553
      %v805 = vmul.f32 %v453, %v553
      %v806 = vmul.f32 %v454, %v553
      %v807 = vmul.f32 %v455, %v553
      %v808 = vmul.f32 %v456, %v553
      %v809 = vmul.f32 %v457, %v553
      %v810 = vmul.f32 %v458, %v553
      %811 = vst [vmem:[%s201] sm:$0xff] %v555
      %812 = vst [vmem:[%s201 + $0x8] sm:$0xff] %v556
      %813 = vst [vmem:[%s201 + $0x10] sm:$0xff] %v557
      %814 = vst [vmem:[%s201 + $0x18] sm:$0xff] %v558
      %815 = vst [vmem:[%s201 + $0x20] sm:$0xff] %v559
      %816 = vst [vmem:[%s201 + $0x28] sm:$0xff] %v560
      %817 = vst [vmem:[%s201 + $0x30] sm:$0xff] %v561
      %818 = vst [vmem:[%s201 + $0x38] sm:$0xff] %v562
      %819 = vst [vmem:[%s201 + $0x40] sm:$0xff] %v563
      %820 = vst [vmem:[%s201 + $0x48] sm:$0xff] %v564
      %821 = vst [vmem:[%s201 + $0x50] sm:$0xff] %v565
      %822 = vst [vmem:[%s201 + $0x58] sm:$0xff] %v566
      %823 = vst [vmem:[%s201 + $0x60] sm:$0xff] %v567
      %824 = vst [vmem:[%s201 + $0x68] sm:$0xff] %v568
      %825 = vst [vmem:[%s201 + $0x70] sm:$0xff] %v569
      %826 = vst [vmem:[%s201 + $0x78] sm:$0xff] %v570
      %827 = vst [vmem:[%s201 + $0x80] sm:$0xff] %v571
      %828 = vst [vmem:[%s201 + $0x88] sm:$0xff] %v572
      %829 = vst [vmem:[%s201 + $0x90] sm:$0xff] %v573
      %830 = vst [vmem:[%s201 + $0x98] sm:$0xff] %v574
      %831 = vst [vmem:[%s201 + $0xa0] sm:$0xff] %v575
      %832 = vst [vmem:[%s201 + $0xa8] sm:$0xff] %v576
      %833 = vst [vmem:[%s201 + $0xb0] sm:$0xff] %v577
      %834 = vst [vmem:[%s201 + $0xb8] sm:$0xff] %v578
      %835 = vst [vmem:[%s201 + $0xc0] sm:$0xff] %v579
      %836 = vst [vmem:[%s201 + $0xc8] sm:$0xff] %v580
      %837 = vst [vmem:[%s201 + $0xd0] sm:$0xff] %v581
      %838 = vst [vmem:[%s201 + $0xd8] sm:$0xff] %v582
      %839 = vst [vmem:[%s201 + $0xe0] sm:$0xff] %v583
      %840 = vst [vmem:[%s201 + $0xe8] sm:$0xff] %v584
      %841 = vst [vmem:[%s201 + $0xf0] sm:$0xff] %v585
      %842 = vst [vmem:[%s201 + $0xf8] sm:$0xff] %v586
      %843 = vst [vmem:[%s201 + $0x100] sm:$0xff] %v587
      %844 = vst [vmem:[%s201 + $0x108] sm:$0xff] %v588
      %845 = vst [vmem:[%s201 + $0x110] sm:$0xff] %v589
      %846 = vst [vmem:[%s201 + $0x118] sm:$0xff] %v590
      %847 = vst [vmem:[%s201 + $0x120] sm:$0xff] %v591
      %848 = vst [vmem:[%s201 + $0x128] sm:$0xff] %v592
      %849 = vst [vmem:[%s201 + $0x130] sm:$0xff] %v593
      %850 = vst [vmem:[%s201 + $0x138] sm:$0xff] %v594
      %851 = vst [vmem:[%s201 + $0x140] sm:$0xff] %v595
      %852 = vst [vmem:[%s201 + $0x148] sm:$0xff] %v596
      %853 = vst [vmem:[%s201 + $0x150] sm:$0xff] %v597
      %854 = vst [vmem:[%s201 + $0x158] sm:$0xff] %v598
      %855 = vst [vmem:[%s201 + $0x160] sm:$0xff] %v599
      %856 = vst [vmem:[%s201 + $0x168] sm:$0xff] %v600
      %857 = vst [vmem:[%s201 + $0x170] sm:$0xff] %v601
      %858 = vst [vmem:[%s201 + $0x178] sm:$0xff] %v602
      %859 = vst [vmem:[%s201 + $0x180] sm:$0xff] %v603
      %860 = vst [vmem:[%s201 + $0x188] sm:$0xff] %v604
      %861 = vst [vmem:[%s201 + $0x190] sm:$0xff] %v605
      %862 = vst [vmem:[%s201 + $0x198] sm:$0xff] %v606
      %863 = vst [vmem:[%s201 + $0x1a0] sm:$0xff] %v607
      %864 = vst [vmem:[%s201 + $0x1a8] sm:$0xff] %v608
      %865 = vst [vmem:[%s201 + $0x1b0] sm:$0xff] %v609
      %866 = vst [vmem:[%s201 + $0x1b8] sm:$0xff] %v610
      %867 = vst [vmem:[%s201 + $0x1c0] sm:$0xff] %v611
      %868 = vst [vmem:[%s201 + $0x1c8] sm:$0xff] %v612
      %869 = vst [vmem:[%s201 + $0x1d0] sm:$0xff] %v613
      %870 = vst [vmem:[%s201 + $0x1d8] sm:$0xff] %v614
      %871 = vst [vmem:[%s201 + $0x1e0] sm:$0xff] %v615
      %872 = vst [vmem:[%s201 + $0x1e8] sm:$0xff] %v616
      %873 = vst [vmem:[%s201 + $0x1f0] sm:$0xff] %v617
      %874 = vst [vmem:[%s201 + $0x1f8] sm:$0xff] %v618
      %875 = vst [vmem:[%s201 + $0x200] sm:$0xff] %v619
      %876 = vst [vmem:[%s201 + $0x208] sm:$0xff] %v620
      %877 = vst [vmem:[%s201 + $0x210] sm:$0xff] %v621
      %878 = vst [vmem:[%s201 + $0x218] sm:$0xff] %v622
      %879 = vst [vmem:[%s201 + $0x220] sm:$0xff] %v623
      %880 = vst [vmem:[%s201 + $0x228] sm:$0xff] %v624
      %881 = vst [vmem:[%s201 + $0x230] sm:$0xff] %v625
      %882 = vst [vmem:[%s201 + $0x238] sm:$0xff] %v626
      %883 = vst [vmem:[%s201 + $0x240] sm:$0xff] %v627
      %884 = vst [vmem:[%s201 + $0x248] sm:$0xff] %v628
      %885 = vst [vmem:[%s201 + $0x250] sm:$0xff] %v629
      %886 = vst [vmem:[%s201 + $0x258] sm:$0xff] %v630
      %887 = vst [vmem:[%s201 + $0x260] sm:$0xff] %v631
      %888 = vst [vmem:[%s201 + $0x268] sm:$0xff] %v632
      %889 = vst [vmem:[%s201 + $0x270] sm:$0xff] %v633
      %890 = vst [vmem:[%s201 + $0x278] sm:$0xff] %v634
      %891 = vst [vmem:[%s201 + $0x280] sm:$0xff] %v635
      %892 = vst [vmem:[%s201 + $0x288] sm:$0xff] %v636
      %893 = vst [vmem:[%s201 + $0x290] sm:$0xff] %v637
      %894 = vst [vmem:[%s201 + $0x298] sm:$0xff] %v638
      %895 = vst [vmem:[%s201 + $0x2a0] sm:$0xff] %v639
      %896 = vst [vmem:[%s201 + $0x2a8] sm:$0xff] %v640
      %897 = vst [vmem:[%s201 + $0x2b0] sm:$0xff] %v641
      %898 = vst [vmem:[%s201 + $0x2b8] sm:$0xff] %v642
      %899 = vst [vmem:[%s201 + $0x2c0] sm:$0xff] %v643
      %900 = vst [vmem:[%s201 + $0x2c8] sm:$0xff] %v644
      %901 = vst [vmem:[%s201 + $0x2d0] sm:$0xff] %v645
      %902 = vst [vmem:[%s201 + $0x2d8] sm:$0xff] %v646
      %903 = vst [vmem:[%s201 + $0x2e0] sm:$0xff] %v647
      %904 = vst [vmem:[%s201 + $0x2e8] sm:$0xff] %v648
      %905 = vst [vmem:[%s201 + $0x2f0] sm:$0xff] %v649
      %906 = vst [vmem:[%s201 + $0x2f8] sm:$0xff] %v650
      %907 = vst [vmem:[%s201 + $0x300] sm:$0xff] %v651
      %908 = vst [vmem:[%s201 + $0x308] sm:$0xff] %v652
      %909 = vst [vmem:[%s201 + $0x310] sm:$0xff] %v653
      %910 = vst [vmem:[%s201 + $0x318] sm:$0xff] %v654
      %911 = vst [vmem:[%s201 + $0x320] sm:$0xff] %v655
      %912 = vst [vmem:[%s201 + $0x328] sm:$0xff] %v656
      %913 = vst [vmem:[%s201 + $0x330] sm:$0xff] %v657
      %914 = vst [vmem:[%s201 + $0x338] sm:$0xff] %v658
      %915 = vst [vmem:[%s201 + $0x340] sm:$0xff] %v659
      %916 = vst [vmem:[%s201 + $0x348] sm:$0xff] %v660
      %917 = vst [vmem:[%s201 + $0x350] sm:$0xff] %v661
      %918 = vst [vmem:[%s201 + $0x358] sm:$0xff] %v662
      %919 = vst [vmem:[%s201 + $0x360] sm:$0xff] %v663
      %920 = vst [vmem:[%s201 + $0x368] sm:$0xff] %v664
      %921 = vst [vmem:[%s201 + $0x370] sm:$0xff] %v665
      %922 = vst [vmem:[%s201 + $0x378] sm:$0xff] %v666
      %923 = vst [vmem:[%s201 + $0x380] sm:$0xff] %v667
      %924 = vst [vmem:[%s201 + $0x388] sm:$0xff] %v668
      %925 = vst [vmem:[%s201 + $0x390] sm:$0xff] %v669
      %926 = vst [vmem:[%s201 + $0x398] sm:$0xff] %v670
      %927 = vst [vmem:[%s201 + $0x3a0] sm:$0xff] %v671
      %928 = vst [vmem:[%s201 + $0x3a8] sm:$0xff] %v672
      %929 = vst [vmem:[%s201 + $0x3b0] sm:$0xff] %v673
      %930 = vst [vmem:[%s201 + $0x3b8] sm:$0xff] %v674
      %931 = vst [vmem:[%s201 + $0x3c0] sm:$0xff] %v675
      %932 = vst [vmem:[%s201 + $0x3c8] sm:$0xff] %v676
      %933 = vst [vmem:[%s201 + $0x3d0] sm:$0xff] %v677
      %934 = vst [vmem:[%s201 + $0x3d8] sm:$0xff] %v678
      %935 = vst [vmem:[%s201 + $0x3e0] sm:$0xff] %v679
      %936 = vst [vmem:[%s201 + $0x3e8] sm:$0xff] %v680
      %937 = vst [vmem:[%s201 + $0x3f0] sm:$0xff] %v681
      %938 = vst [vmem:[%s201 + $0x3f8] sm:$0xff] %v682
      %939 = vst [vmem:[%s201 + $0x400] sm:$0xff] %v683
      %940 = vst [vmem:[%s201 + $0x408] sm:$0xff] %v684
      %941 = vst [vmem:[%s201 + $0x410] sm:$0xff] %v685
      %942 = vst [vmem:[%s201 + $0x418] sm:$0xff] %v686
      %943 = vst [vmem:[%s201 + $0x420] sm:$0xff] %v687
      %944 = vst [vmem:[%s201 + $0x428] sm:$0xff] %v688
      %945 = vst [vmem:[%s201 + $0x430] sm:$0xff] %v689
      %946 = vst [vmem:[%s201 + $0x438] sm:$0xff] %v690
      %947 = vst [vmem:[%s201 + $0x440] sm:$0xff] %v691
      %948 = vst [vmem:[%s201 + $0x448] sm:$0xff] %v692
      %949 = vst [vmem:[%s201 + $0x450] sm:$0xff] %v693
      %950 = vst [vmem:[%s201 + $0x458] sm:$0xff] %v694
      %951 = vst [vmem:[%s201 + $0x460] sm:$0xff] %v695
      %952 = vst [vmem:[%s201 + $0x468] sm:$0xff] %v696
      %953 = vst [vmem:[%s201 + $0x470] sm:$0xff] %v697
      %954 = vst [vmem:[%s201 + $0x478] sm:$0xff] %v698
      %955 = vst [vmem:[%s201 + $0x480] sm:$0xff] %v699
      %956 = vst [vmem:[%s201 + $0x488] sm:$0xff] %v700
      %957 = vst [vmem:[%s201 + $0x490] sm:$0xff] %v701
      %958 = vst [vmem:[%s201 + $0x498] sm:$0xff] %v702
      %959 = vst [vmem:[%s201 + $0x4a0] sm:$0xff] %v703
      %960 = vst [vmem:[%s201 + $0x4a8] sm:$0xff] %v704
      %961 = vst [vmem:[%s201 + $0x4b0] sm:$0xff] %v705
      %962 = vst [vmem:[%s201 + $0x4b8] sm:$0xff] %v706
      %963 = vst [vmem:[%s201 + $0x4c0] sm:$0xff] %v707
      %964 = vst [vmem:[%s201 + $0x4c8] sm:$0xff] %v708
      %965 = vst [vmem:[%s201 + $0x4d0] sm:$0xff] %v709
      %966 = vst [vmem:[%s201 + $0x4d8] sm:$0xff] %v710
      %967 = vst [vmem:[%s201 + $0x4e0] sm:$0xff] %v711
      %968 = vst [vmem:[%s201 + $0x4e8] sm:$0xff] %v712
      %969 = vst [vmem:[%s201 + $0x4f0] sm:$0xff] %v713
      %970 = vst [vmem:[%s201 + $0x4f8] sm:$0xff] %v714
      %971 = vst [vmem:[%s201 + $0x500] sm:$0xff] %v715
      %972 = vst [vmem:[%s201 + $0x508] sm:$0xff] %v716
      %973 = vst [vmem:[%s201 + $0x510] sm:$0xff] %v717
      %974 = vst [vmem:[%s201 + $0x518] sm:$0xff] %v718
      %975 = vst [vmem:[%s201 + $0x520] sm:$0xff] %v719
      %976 = vst [vmem:[%s201 + $0x528] sm:$0xff] %v720
      %977 = vst [vmem:[%s201 + $0x530] sm:$0xff] %v721
      %978 = vst [vmem:[%s201 + $0x538] sm:$0xff] %v722
      %979 = vst [vmem:[%s201 + $0x540] sm:$0xff] %v723
      %980 = vst [vmem:[%s201 + $0x548] sm:$0xff] %v724
      %981 = vst [vmem:[%s201 + $0x550] sm:$0xff] %v725
      %982 = vst [vmem:[%s201 + $0x558] sm:$0xff] %v726
      %983 = vst [vmem:[%s201 + $0x560] sm:$0xff] %v727
      %984 = vst [vmem:[%s201 + $0x568] sm:$0xff] %v728
      %985 = vst [vmem:[%s201 + $0x570] sm:$0xff] %v729
      %986 = vst [vmem:[%s201 + $0x578] sm:$0xff] %v730
      %987 = vst [vmem:[%s201 + $0x580] sm:$0xff] %v731
      %988 = vst [vmem:[%s201 + $0x588] sm:$0xff] %v732
      %989 = vst [vmem:[%s201 + $0x590] sm:$0xff] %v733
      %990 = vst [vmem:[%s201 + $0x598] sm:$0xff] %v734
      %991 = vst [vmem:[%s201 + $0x5a0] sm:$0xff] %v735
      %992 = vst [vmem:[%s201 + $0x5a8] sm:$0xff] %v736
      %993 = vst [vmem:[%s201 + $0x5b0] sm:$0xff] %v737
      %994 = vst [vmem:[%s201 + $0x5b8] sm:$0xff] %v738
      %995 = vst [vmem:[%s201 + $0x5c0] sm:$0xff] %v739
      %996 = vst [vmem:[%s201 + $0x5c8] sm:$0xff] %v740
      %997 = vst [vmem:[%s201 + $0x5d0] sm:$0xff] %v741
      %998 = vst [vmem:[%s201 + $0x5d8] sm:$0xff] %v742
      %999 = vst [vmem:[%s201 + $0x5e0] sm:$0xff] %v743
      %1000 = vst [vmem:[%s201 + $0x5e8] sm:$0xff] %v744
      %1001 = vst [vmem:[%s201 + $0x5f0] sm:$0xff] %v745
      %1002 = vst [vmem:[%s201 + $0x5f8] sm:$0xff] %v746
      %1003 = vst [vmem:[%s201 + $0x600] sm:$0xff] %v747
      %1004 = vst [vmem:[%s201 + $0x608] sm:$0xff] %v748
      %1005 = vst [vmem:[%s201 + $0x610] sm:$0xff] %v749
      %1006 = vst [vmem:[%s201 + $0x618] sm:$0xff] %v750
      %1007 = vst [vmem:[%s201 + $0x620] sm:$0xff] %v751
      %1008 = vst [vmem:[%s201 + $0x628] sm:$0xff] %v752
      %1009 = vst [vmem:[%s201 + $0x630] sm:$0xff] %v753
      %1010 = vst [vmem:[%s201 + $0x638] sm:$0xff] %v754
      %1011 = vst [vmem:[%s201 + $0x640] sm:$0xff] %v755
      %1012 = vst [vmem:[%s201 + $0x648] sm:$0xff] %v756
      %1013 = vst [vmem:[%s201 + $0x650] sm:$0xff] %v757
      %1014 = vst [vmem:[%s201 + $0x658] sm:$0xff] %v758
      %1015 = vst [vmem:[%s201 + $0x660] sm:$0xff] %v759
      %1016 = vst [vmem:[%s201 + $0x668] sm:$0xff] %v760
      %1017 = vst [vmem:[%s201 + $0x670] sm:$0xff] %v761
      %1018 = vst [vmem:[%s201 + $0x678] sm:$0xff] %v762
      %1019 = vst [vmem:[%s201 + $0x680] sm:$0xff] %v763
      %1020 = vst [vmem:[%s201 + $0x688] sm:$0xff] %v764
      %1021 = vst [vmem:[%s201 + $0x690] sm:$0xff] %v765
      %1022 = vst [vmem:[%s201 + $0x698] sm:$0xff] %v766
      %1023 = vst [vmem:[%s201 + $0x6a0] sm:$0xff] %v767
      %1024 = vst [vmem:[%s201 + $0x6a8] sm:$0xff] %v768
      %1025 = vst [vmem:[%s201 + $0x6b0] sm:$0xff] %v769
      %1026 = vst [vmem:[%s201 + $0x6b8] sm:$0xff] %v770
      %1027 = vst [vmem:[%s201 + $0x6c0] sm:$0xff] %v771
      %1028 = vst [vmem:[%s201 + $0x6c8] sm:$0xff] %v772
      %1029 = vst [vmem:[%s201 + $0x6d0] sm:$0xff] %v773
      %1030 = vst [vmem:[%s201 + $0x6d8] sm:$0xff] %v774
      %1031 = vst [vmem:[%s201 + $0x6e0] sm:$0xff] %v775
      %1032 = vst [vmem:[%s201 + $0x6e8] sm:$0xff] %v776
      %1033 = vst [vmem:[%s201 + $0x6f0] sm:$0xff] %v777
      %1034 = vst [vmem:[%s201 + $0x6f8] sm:$0xff] %v778
      %1035 = vst [vmem:[%s201 + $0x700] sm:$0xff] %v779
      %1036 = vst [vmem:[%s201 + $0x708] sm:$0xff] %v780
      %1037 = vst [vmem:[%s201 + $0x710] sm:$0xff] %v781
      %1038 = vst [vmem:[%s201 + $0x718] sm:$0xff] %v782
      %1039 = vst [vmem:[%s201 + $0x720] sm:$0xff] %v783
      %1040 = vst [vmem:[%s201 + $0x728] sm:$0xff] %v784
      %1041 = vst [vmem:[%s201 + $0x730] sm:$0xff] %v785
      %1042 = vst [vmem:[%s201 + $0x738] sm:$0xff] %v786
      %1043 = vst [vmem:[%s201 + $0x740] sm:$0xff] %v787
      %1044 = vst [vmem:[%s201 + $0x748] sm:$0xff] %v788
      %1045 = vst [vmem:[%s201 + $0x750] sm:$0xff] %v789
      %1046 = vst [vmem:[%s201 + $0x758] sm:$0xff] %v790
      %1047 = vst [vmem:[%s201 + $0x760] sm:$0xff] %v791
      %1048 = vst [vmem:[%s201 + $0x768] sm:$0xff] %v792
      %1049 = vst [vmem:[%s201 + $0x770] sm:$0xff] %v793
      %1050 = vst [vmem:[%s201 + $0x778] sm:$0xff] %v794
      %1051 = vst [vmem:[%s201 + $0x780] sm:$0xff] %v795
      %1052 = vst [vmem:[%s201 + $0x788] sm:$0xff] %v796
      %1053 = vst [vmem:[%s201 + $0x790] sm:$0xff] %v797
      %1054 = vst [vmem:[%s201 + $0x798] sm:$0xff] %v798
      %1055 = vst [vmem:[%s201 + $0x7a0] sm:$0xff] %v799
      %1056 = vst [vmem:[%s201 + $0x7a8] sm:$0xff] %v800
      %1057 = vst [vmem:[%s201 + $0x7b0] sm:$0xff] %v801
      %1058 = vst [vmem:[%s201 + $0x7b8] sm:$0xff] %v802
      %1059 = vst [vmem:[%s201 + $0x7c0] sm:$0xff] %v803
      %1060 = vst [vmem:[%s201 + $0x7c8] sm:$0xff] %v804
      %1061 = vst [vmem:[%s201 + $0x7d0] sm:$0xff] %v805
      %1062 = vst [vmem:[%s201 + $0x7d8] sm:$0xff] %v806
      %1063 = vst [vmem:[%s201 + $0x7e0] sm:$0xff] %v807
      %1064 = vst [vmem:[%s201 + $0x7e8] sm:$0xff] %v808
      %1065 = vst [vmem:[%s201 + $0x7f0] sm:$0xff] %v809
      %1066 = vst [vmem:[%s201 + $0x7f8] sm:$0xff] %v810
      %s1067 = smul.u32 16, %s18
      %p1068 = scmp.lt.s32.totalorder %s17, 1
      %s1069 = scalar_select %p1068, %s17, 1
      %p1070 = scmp.lt.s32.totalorder %s1067, 15
      %s1071 = scalar_select %p1070, %s1067, 15
      %s1072 = smul.addr %s1069, 256
      %s1073 = sadd.s32 %s1071, %s1072
      %s1074 = smul.addr %s1073, 8
      %s1075 = scalar_lea.vmem %s2, %s1074
      // Predicated region
      $region29: #{channel_attention.3} parent=27 // pred_check
        %p1076 = pneg %p99
      $region30: #{channel_attention.3} parent=27 // pred_check_branch
        %1078 = sbr.rel (%p1076) target = $region32
      $region31: #{channel_attention.3} parent=27 // pred_region
        %s1079 = smul.u32 16, %s18
      $region32: #{channel_attention.3} parent=27 // pred_fallthru
        _
    $region28: #{channel_attention.3} parent=5 // pred_fallthru
      _
    %p1080 = scmp.le.s32.totalorder 2, %s8
    // Predicated region
    $region33: #{channel_attention.3} parent=5 // pred_check
      %p1081 = pneg %p1080
    $region34: #{channel_attention.3} parent=5 // pred_check_branch
      %1083 = sbr.rel (%p1081) target = $region36
    $region35: #{channel_attention.3} parent=5 // pred_region
      %s1084 = ssub.s32 %s8, 2
      // Predicated region
      $region37: #{channel_attention.3} parent=35 // pred_check
        %p1085 = pneg %p105
      $region38: #{channel_attention.3} parent=35 // pred_check_branch
        %1087 = sbr.rel (%p1085) target = $region40
      $region39: #{channel_attention.3} parent=35 // pred_region
        %s1088 = smul.u32 16, %s20
        %p1089 = scmp.lt.s32.totalorder %s19, 1
        %s1090 = scalar_select %p1089, %s19, 1
        %p1091 = scmp.lt.s32.totalorder %s1088, 15
        %s1092 = scalar_select %p1091, %s1088, 15
        %s1093 = smul.addr %s1090, 256
        %s1094 = sadd.s32 %s1092, %s1093
        %s1095 = smul.addr %s1094, 8
        %s1096 = scalar_lea.vmem %s2, %s1095
      $region40: #{channel_attention.3} parent=35 // pred_fallthru
        _
    $region36: #{channel_attention.3} parent=5 // pred_fallthru
      _
  $region6: #{channel_attention.3} parent=0 // loop_footer
    %s12 = sadd.s32 1, %s8
  $region7: #{channel_attention.3} parent=0 // loop_footer_branch
    %7 = sbr.rel target = $region3
  $region8: #{channel_attention.3} parent=0 // loop_exit
    _

// kernel: channel_attention.2
$region0: #{channel_attention.2}
  #allocation0 [shape = 'u32[]', space=smem, size = 0x4, offset = 0x4, fixed_abs, tag = 'smem constant byte address 0x4 - core index']
  #allocation1 [shape = 'u32[144,128]{1,0:T(1,128)}', space=vmem, size = 0x12000, scoped, tag = 'internal scratch']
  #allocation2 [shape = 'f32[128,128]{1,0:T(8,128)}', space=vmem, size = 0x10000, scoped, tag = 'scratch operand']
  #allocation3 [shape = 'f32[128,128]{1,0:T(8,128)}', space=vmem, size = 0x10000, scoped, tag = 'scratch operand']
  %s0 = inlined_call_operand.vmem [shape: f32[2,128,2048], index: 0, kind: input, shape index: {}]
  %s1 = inlined_call_operand.vmem [shape: f32[8,128], index: 1, kind: input, shape index: {}]
  %s2 = inlined_call_operand.vmem [shape: f32[128,8], index: 2, kind: input, shape index: {}]
  %s3 = inlined_call_operand.vmem [shape: f32[2,128,1], index: 3, kind: output, shape index: {}]
  %s4 = sld [smem:[#allocation0]]
  $region57: #{channel_attention.2} parent=0
    _
  %s6 = ssub.s32 1, %s4
  %s7 = scalar_select 0, %s6, %s4
  loop: start=0, step=1, limit=4
  $region2: #{channel_attention.2} parent=0 // loop_pre_header
    _
  $region3: #{channel_attention.2} parent=0 // loop_header
    %s9 = sphi 0, %s13
    %p10 = scmp.ge.s32.totalorder %s9, 4
    %s16 = sphi 0, %s28
    %s17 = sphi 0, %s24
    %s18 = sphi 0, %s16
    %s19 = sphi 0, %s17
    %s20 = sphi 0, %s18
    %s21 = sphi 0, %s19
    %s33 = sphi 0, %s35
    %s36 = sphi 0, %s33
    %s37 = sphi 0, %s36
    %s53 = sphi 0, %s37
    %s57 = sphi 0, %s57
    %s59 = sphi 0, %s57
    %s60 = sphi 0, %s59
    %s74 = sphi 0, %s60
    %s78 = sphi 0, %s78
    %s80 = sphi 0, %s78
    %s81 = sphi 0, %s80
    %s95 = sphi 0, %s81
    %s101 = sphi 0, %s103
    %s104 = sphi 0, %s101
    %s105 = sphi 0, %s104
    %s121 = sphi 0, %s105
  $region4: #{channel_attention.2} parent=0 // loop_header_branch
    %12 = sbr.rel (%p10) target = $region8
  $region5: #{channel_attention.2} parent=0 // loop_body
    %s14 = ssub.s32 %s9, 1
    %s15 = ssub.s32 %s9, 2
    %s22 = sadd.s32 1, %s17
    %p23 = scmp.ge.s32.totalorder %s22, 1
    %s24 = scalar_select %p23, 0, %s22
    %s25 = sadd.s32 1, %s16
    %s26 = scalar_select %p23, %s25, %s16
    %p27 = scmp.ge.s32.totalorder %s26, 2
    %s28 = scalar_select %p27, 0, %s26
    %s29 = ssub.s32 %s16, %s28
    %s30 = ssub.s32 %s17, %s24
    %s31 = sor.u32 %s29, %s30
    %p32 = scmp.eq.s32.totalorder %s31, 0
    %s34 = sadd.s32 %s33, 1
    %s35 = scalar_select %p32, %s33, %s34
    %p38 = pneg %p32
    %p39 = scmp.eq.s32.totalorder %s9, 1
    %p40 = por %p38, %p39
    %p41 = scmp.ne.s32.totalorder %s33, %s36
    %p42 = scmp.eq.s32.totalorder %s9, 0
    %p43 = por %p41, %p42
    %p44 = scmp.ne.s32.totalorder %s33, %s36
    %p45 = scmp.eq.s32.totalorder %s14, 1
    %p46 = por %p44, %p45
    %p47 = scmp.ne.s32.totalorder %s36, %s37
    %p48 = scmp.eq.s32.totalorder %s14, 0
    %p49 = por %p47, %p48
    %p50 = scmp.ne.s32.totalorder %s36, %s37
    %p51 = scmp.eq.s32.totalorder %s15, 1
    %p52 = por %p50, %p51
    %p54 = scmp.ne.s32.totalorder %s37, %s53
    %p55 = scmp.eq.s32.totalorder %s15, 0
    %p56 = por %p54, %p55
    %s58 = sadd.s32 %s57, 1
    %p61 = scmp.eq.s32.totalorder %s9, 1
    %p62 = scmp.ne.s32.totalorder %s57, %s59
    %p63 = scmp.eq.s32.totalorder %s9, 0
    %p64 = por %p62, %p63
    %p65 = scmp.ne.s32.totalorder %s57, %s59
    %p66 = scmp.eq.s32.totalorder %s14, 1
    %p67 = por %p65, %p66
    %p68 = scmp.ne.s32.totalorder %s59, %s60
    %p69 = scmp.eq.s32.totalorder %s14, 0
    %p70 = por %p68, %p69
    %p71 = scmp.ne.s32.totalorder %s59, %s60
    %p72 = scmp.eq.s32.totalorder %s15, 1
    %p73 = por %p71, %p72
    %p75 = scmp.ne.s32.totalorder %s60, %s74
    %p76 = scmp.eq.s32.totalorder %s15, 0
    %p77 = por %p75, %p76
    %s79 = sadd.s32 %s78, 1
    %p82 = scmp.eq.s32.totalorder %s9, 1
    %p83 = scmp.ne.s32.totalorder %s78, %s80
    %p84 = scmp.eq.s32.totalorder %s9, 0
    %p85 = por %p83, %p84
    %p86 = scmp.ne.s32.totalorder %s78, %s80
    %p87 = scmp.eq.s32.totalorder %s14, 1
    %p88 = por %p86, %p87
    %p89 = scmp.ne.s32.totalorder %s80, %s81
    %p90 = scmp.eq.s32.totalorder %s14, 0
    %p91 = por %p89, %p90
    %p92 = scmp.ne.s32.totalorder %s80, %s81
    %p93 = scmp.eq.s32.totalorder %s15, 1
    %p94 = por %p92, %p93
    %p96 = scmp.ne.s32.totalorder %s81, %s95
    %p97 = scmp.eq.s32.totalorder %s15, 0
    %p98 = por %p96, %p97
    %s99 = ssub.s32 %s16, %s28
    %p100 = scmp.eq.s32.totalorder %s99, 0
    %s102 = sadd.s32 %s101, 1
    %s103 = scalar_select %p100, %s101, %s102
    %p106 = pneg %p100
    %p107 = scmp.eq.s32.totalorder %s9, 1
    %p108 = por %p106, %p107
    %p109 = scmp.ne.s32.totalorder %s101, %s104
    %p110 = scmp.eq.s32.totalorder %s9, 0
    %p111 = por %p109, %p110
    %p112 = scmp.ne.s32.totalorder %s101, %s104
    %p113 = scmp.eq.s32.totalorder %s14, 1
    %p114 = por %p112, %p113
    %p115 = scmp.ne.s32.totalorder %s104, %s105
    %p116 = scmp.eq.s32.totalorder %s14, 0
    %p117 = por %p115, %p116
    %p118 = scmp.ne.s32.totalorder %s104, %s105
    %p119 = scmp.eq.s32.totalorder %s15, 1
    %p120 = por %p118, %p119
    %p122 = scmp.ne.s32.totalorder %s105, %s121
    %p123 = scmp.eq.s32.totalorder %s15, 0
    %p124 = por %p122, %p123
    %p125 = scmp.le.s32.totalorder 1, %s9
    %p126 = scmp.lt.s32.totalorder %s9, 3
    %p127 = pnand %p125, %p126
    %p128 = pneg %p127
    // Predicated region
    $region9: #{channel_attention.2} parent=5 // pred_check
      _
    $region10: #{channel_attention.2} parent=5 // pred_check_branch
      %130 = sbr.rel (%p127) target = $region12
    $region11: #{channel_attention.2} parent=5 // pred_region
      %s131 = ssub.s32 %s9, 1
      // Predicated region
      $region13: #{channel_attention.2} parent=11 // pred_check
        %p132 = pneg %p70
      $region14: #{channel_attention.2} parent=11 // pred_check_branch
        %134 = sbr.rel (%p132) target = $region16
      $region15: #{channel_attention.2} parent=11 // pred_region
        _
      $region16: #{channel_attention.2} parent=11 // pred_fallthru
        _
      // Predicated region
      $region17: #{channel_attention.2} parent=11 // pred_check
        %p135 = pneg %p91
      $region18: #{channel_attention.2} parent=11 // pred_check_branch
        %137 = sbr.rel (%p135) target = $region20
      $region19: #{channel_attention.2} parent=11 // pred_region
        _
      $region20: #{channel_attention.2} parent=11 // pred_fallthru
        _
    $region12: #{channel_attention.2} parent=5 // pred_fallthru
      _
    %p138 = scmp.lt.s32.totalorder %s9, 2
    // Predicated region
    $region21: #{channel_attention.2} parent=5 // pred_check
      %p139 = pneg %p138
    $region22: #{channel_attention.2} parent=5 // pred_check_branch
      %141 = sbr.rel (%p139) target = $region24
    $region23: #{channel_attention.2} parent=5 // pred_region
      // Predicated region
      $region25: #{channel_attention.2} parent=23 // pred_check
        %p142 = pneg %p43
      $region26: #{channel_attention.2} parent=23 // pred_check_branch
        %144 = sbr.rel (%p142) target = $region28
      $region27: #{channel_attention.2} parent=23 // pred_region
        %s145 = smul.u32 16, %s17
        %p146 = scmp.lt.s32.totalorder %s16, 1
        %s147 = scalar_select %p146, %s16, 1
        %p148 = scmp.lt.s32.totalorder %s145, 15
        %s149 = scalar_select %p148, %s145, 15
        %s150 = smul.addr %s147, 256
        %s151 = sadd.s32 %s149, %s150
        %s152 = smul.addr %s151, 8
        %s153 = scalar_lea.vmem %s0, %s152
        %s154 = smul.u32 16, %s17
      $region28: #{channel_attention.2} parent=23 // pred_fallthru
        _
    $region24: #{channel_attention.2} parent=5 // pred_fallthru
      _
    %p155 = scmp.le.s32.totalorder 1, %s9
    %p156 = scmp.lt.s32.totalorder %s9, 3
    %p157 = pnand %p155, %p156
    %p158 = pneg %p157
    // Predicated region
    $region29: #{channel_attention.2} parent=5 // pred_check
      _
    $region30: #{channel_attention.2} parent=5 // pred_check_branch
      %160 = sbr.rel (%p157) target = $region32
    $region31: #{channel_attention.2} parent=5 // pred_region
      %s161 = ssub.s32 %s9, 1
      %s162 = smul.u32 16, %s19
      %p163 = scmp.lt.s32.totalorder %s18, 1
      %s164 = scalar_select %p163, %s18, 1
      %p165 = scmp.lt.s32.totalorder %s162, 15
      %s166 = scalar_select %p165, %s162, 15
      %s167 = smul.addr %s164, 256
      %s168 = sadd.s32 %s166, %s167
      %s169 = smul.addr %s168, 8
      %s170 = scalar_lea.vmem %s0, %s169
      %p171 = pneg %p49
      %p172 = pneg %p46
      %p173 = pneg %p70
      %p174 = pneg %p67
      %p175 = pneg %p91
      %p176 = pneg %p88
      %p177 = pneg %p117
      %p178 = pneg %p114
      %p179 = scmp.lt.s32.totalorder %s18, 1
      %s180 = scalar_select %p179, %s18, 1
      %s181 = smul.addr %s180, 16
      %s182 = smul.addr %s181, 8
      %s183 = scalar_lea.vmem %s3, %s182
      %s184 = smul.u32 16, %s19
      %p185 = scmp.lt.s32.totalorder %s18, 1
      %s186 = scalar_select %p185, %s18, 1
      %p187 = scmp.lt.s32.totalorder %s184, 15
      %s188 = scalar_select %p187, %s184, 15
      %s189 = smul.addr %s186, 256
      %s190 = sadd.s32 %s188, %s189
      %s191 = smul.addr %s190, 8
      %s192 = scalar_lea.vmem %s0, %s191
      %s193 = smul.u32 16, %s19
      %p194 = scmp.lt.s32.totalorder %s18, 1
      %s195 = scalar_select %p194, %s18, 1
      %s196 = smul.addr %s195, 16
      %s197 = smul.addr %s196, 8
      %s198 = scalar_lea.vmem %s3, %s197
      %v199 = vld [vmem:[%s192] sm:$0xff]
      %v200 = vld [vmem:[%s192 + $0x8] sm:$0xff]
      %v201 = vld [vmem:[%s192 + $0x10] sm:$0xff]
      %v202 = vld [vmem:[%s192 + $0x18] sm:$0xff]
      %v203 = vld [vmem:[%s192 + $0x20] sm:$0xff]
      %v204 = vld [vmem:[%s192 + $0x28] sm:$0xff]
      %v205 = vld [vmem:[%s192 + $0x30] sm:$0xff]
      %v206 = vld [vmem:[%s192 + $0x38] sm:$0xff]
      %v207 = vld [vmem:[%s192 + $0x40] sm:$0xff]
      %v208 = vld [vmem:[%s192 + $0x48] sm:$0xff]
      %v209 = vld [vmem:[%s192 + $0x50] sm:$0xff]
      %v210 = vld [vmem:[%s192 + $0x58] sm:$0xff]
      %v211 = vld [vmem:[%s192 + $0x60] sm:$0xff]
      %v212 = vld [vmem:[%s192 + $0x68] sm:$0xff]
      %v213 = vld [vmem:[%s192 + $0x70] sm:$0xff]
      %v214 = vld [vmem:[%s192 + $0x78] sm:$0xff]
      %v215 = vld [vmem:[%s192 + $0x80] sm:$0xff]
      %v216 = vld [vmem:[%s192 + $0x88] sm:$0xff]
      %v217 = vld [vmem:[%s192 + $0x90] sm:$0xff]
      %v218 = vld [vmem:[%s192 + $0x98] sm:$0xff]
      %v219 = vld [vmem:[%s192 + $0xa0] sm:$0xff]
      %v220 = vld [vmem:[%s192 + $0xa8] sm:$0xff]
      %v221 = vld [vmem:[%s192 + $0xb0] sm:$0xff]
      %v222 = vld [vmem:[%s192 + $0xb8] sm:$0xff]
      %v223 = vld [vmem:[%s192 + $0xc0] sm:$0xff]
      %v224 = vld [vmem:[%s192 + $0xc8] sm:$0xff]
      %v225 = vld [vmem:[%s192 + $0xd0] sm:$0xff]
      %v226 = vld [vmem:[%s192 + $0xd8] sm:$0xff]
      %v227 = vld [vmem:[%s192 + $0xe0] sm:$0xff]
      %v228 = vld [vmem:[%s192 + $0xe8] sm:$0xff]
      %v229 = vld [vmem:[%s192 + $0xf0] sm:$0xff]
      %v230 = vld [vmem:[%s192 + $0xf8] sm:$0xff]
      %v231 = vld [vmem:[%s192 + $0x100] sm:$0xff]
      %v232 = vld [vmem:[%s192 + $0x108] sm:$0xff]
      %v233 = vld [vmem:[%s192 + $0x110] sm:$0xff]
      %v234 = vld [vmem:[%s192 + $0x118] sm:$0xff]
      %v235 = vld [vmem:[%s192 + $0x120] sm:$0xff]
      %v236 = vld [vmem:[%s192 + $0x128] sm:$0xff]
      %v237 = vld [vmem:[%s192 + $0x130] sm:$0xff]
      %v238 = vld [vmem:[%s192 + $0x138] sm:$0xff]
      %v239 = vld [vmem:[%s192 + $0x140] sm:$0xff]
      %v240 = vld [vmem:[%s192 + $0x148] sm:$0xff]
      %v241 = vld [vmem:[%s192 + $0x150] sm:$0xff]
      %v242 = vld [vmem:[%s192 + $0x158] sm:$0xff]
      %v243 = vld [vmem:[%s192 + $0x160] sm:$0xff]
      %v244 = vld [vmem:[%s192 + $0x168] sm:$0xff]
      %v245 = vld [vmem:[%s192 + $0x170] sm:$0xff]
      %v246 = vld [vmem:[%s192 + $0x178] sm:$0xff]
      %v247 = vld [vmem:[%s192 + $0x180] sm:$0xff]
      %v248 = vld [vmem:[%s192 + $0x188] sm:$0xff]
      %v249 = vld [vmem:[%s192 + $0x190] sm:$0xff]
      %v250 = vld [vmem:[%s192 + $0x198] sm:$0xff]
      %v251 = vld [vmem:[%s192 + $0x1a0] sm:$0xff]
      %v252 = vld [vmem:[%s192 + $0x1a8] sm:$0xff]
      %v253 = vld [vmem:[%s192 + $0x1b0] sm:$0xff]
      %v254 = vld [vmem:[%s192 + $0x1b8] sm:$0xff]
      %v255 = vld [vmem:[%s192 + $0x1c0] sm:$0xff]
      %v256 = vld [vmem:[%s192 + $0x1c8] sm:$0xff]
      %v257 = vld [vmem:[%s192 + $0x1d0] sm:$0xff]
      %v258 = vld [vmem:[%s192 + $0x1d8] sm:$0xff]
      %v259 = vld [vmem:[%s192 + $0x1e0] sm:$0xff]
      %v260 = vld [vmem:[%s192 + $0x1e8] sm:$0xff]
      %v261 = vld [vmem:[%s192 + $0x1f0] sm:$0xff]
      %v262 = vld [vmem:[%s192 + $0x1f8] sm:$0xff]
      %v263 = vld [vmem:[%s192 + $0x200] sm:$0xff]
      %v264 = vld [vmem:[%s192 + $0x208] sm:$0xff]
      %v265 = vld [vmem:[%s192 + $0x210] sm:$0xff]
      %v266 = vld [vmem:[%s192 + $0x218] sm:$0xff]
      %v267 = vld [vmem:[%s192 + $0x220] sm:$0xff]
      %v268 = vld [vmem:[%s192 + $0x228] sm:$0xff]
      %v269 = vld [vmem:[%s192 + $0x230] sm:$0xff]
      %v270 = vld [vmem:[%s192 + $0x238] sm:$0xff]
      %v271 = vld [vmem:[%s192 + $0x240] sm:$0xff]
      %v272 = vld [vmem:[%s192 + $0x248] sm:$0xff]
      %v273 = vld [vmem:[%s192 + $0x250] sm:$0xff]
      %v274 = vld [vmem:[%s192 + $0x258] sm:$0xff]
      %v275 = vld [vmem:[%s192 + $0x260] sm:$0xff]
      %v276 = vld [vmem:[%s192 + $0x268] sm:$0xff]
      %v277 = vld [vmem:[%s192 + $0x270] sm:$0xff]
      %v278 = vld [vmem:[%s192 + $0x278] sm:$0xff]
      %v279 = vld [vmem:[%s192 + $0x280] sm:$0xff]
      %v280 = vld [vmem:[%s192 + $0x288] sm:$0xff]
      %v281 = vld [vmem:[%s192 + $0x290] sm:$0xff]
      %v282 = vld [vmem:[%s192 + $0x298] sm:$0xff]
      %v283 = vld [vmem:[%s192 + $0x2a0] sm:$0xff]
      %v284 = vld [vmem:[%s192 + $0x2a8] sm:$0xff]
      %v285 = vld [vmem:[%s192 + $0x2b0] sm:$0xff]
      %v286 = vld [vmem:[%s192 + $0x2b8] sm:$0xff]
      %v287 = vld [vmem:[%s192 + $0x2c0] sm:$0xff]
      %v288 = vld [vmem:[%s192 + $0x2c8] sm:$0xff]
      %v289 = vld [vmem:[%s192 + $0x2d0] sm:$0xff]
      %v290 = vld [vmem:[%s192 + $0x2d8] sm:$0xff]
      %v291 = vld [vmem:[%s192 + $0x2e0] sm:$0xff]
      %v292 = vld [vmem:[%s192 + $0x2e8] sm:$0xff]
      %v293 = vld [vmem:[%s192 + $0x2f0] sm:$0xff]
      %v294 = vld [vmem:[%s192 + $0x2f8] sm:$0xff]
      %v295 = vld [vmem:[%s192 + $0x300] sm:$0xff]
      %v296 = vld [vmem:[%s192 + $0x308] sm:$0xff]
      %v297 = vld [vmem:[%s192 + $0x310] sm:$0xff]
      %v298 = vld [vmem:[%s192 + $0x318] sm:$0xff]
      %v299 = vld [vmem:[%s192 + $0x320] sm:$0xff]
      %v300 = vld [vmem:[%s192 + $0x328] sm:$0xff]
      %v301 = vld [vmem:[%s192 + $0x330] sm:$0xff]
      %v302 = vld [vmem:[%s192 + $0x338] sm:$0xff]
      %v303 = vld [vmem:[%s192 + $0x340] sm:$0xff]
      %v304 = vld [vmem:[%s192 + $0x348] sm:$0xff]
      %v305 = vld [vmem:[%s192 + $0x350] sm:$0xff]
      %v306 = vld [vmem:[%s192 + $0x358] sm:$0xff]
      %v307 = vld [vmem:[%s192 + $0x360] sm:$0xff]
      %v308 = vld [vmem:[%s192 + $0x368] sm:$0xff]
      %v309 = vld [vmem:[%s192 + $0x370] sm:$0xff]
      %v310 = vld [vmem:[%s192 + $0x378] sm:$0xff]
      %v311 = vld [vmem:[%s192 + $0x380] sm:$0xff]
      %v312 = vld [vmem:[%s192 + $0x388] sm:$0xff]
      %v313 = vld [vmem:[%s192 + $0x390] sm:$0xff]
      %v314 = vld [vmem:[%s192 + $0x398] sm:$0xff]
      %v315 = vld [vmem:[%s192 + $0x3a0] sm:$0xff]
      %v316 = vld [vmem:[%s192 + $0x3a8] sm:$0xff]
      %v317 = vld [vmem:[%s192 + $0x3b0] sm:$0xff]
      %v318 = vld [vmem:[%s192 + $0x3b8] sm:$0xff]
      %v319 = vld [vmem:[%s192 + $0x3c0] sm:$0xff]
      %v320 = vld [vmem:[%s192 + $0x3c8] sm:$0xff]
      %v321 = vld [vmem:[%s192 + $0x3d0] sm:$0xff]
      %v322 = vld [vmem:[%s192 + $0x3d8] sm:$0xff]
      %v323 = vld [vmem:[%s192 + $0x3e0] sm:$0xff]
      %v324 = vld [vmem:[%s192 + $0x3e8] sm:$0xff]
      %v325 = vld [vmem:[%s192 + $0x3f0] sm:$0xff]
      %v326 = vld [vmem:[%s192 + $0x3f8] sm:$0xff]
      %v327 = vld [vmem:[%s192 + $0x400] sm:$0xff]
      %v328 = vld [vmem:[%s192 + $0x408] sm:$0xff]
      %v329 = vld [vmem:[%s192 + $0x410] sm:$0xff]
      %v330 = vld [vmem:[%s192 + $0x418] sm:$0xff]
      %v331 = vld [vmem:[%s192 + $0x420] sm:$0xff]
      %v332 = vld [vmem:[%s192 + $0x428] sm:$0xff]
      %v333 = vld [vmem:[%s192 + $0x430] sm:$0xff]
      %v334 = vld [vmem:[%s192 + $0x438] sm:$0xff]
      %v335 = vld [vmem:[%s192 + $0x440] sm:$0xff]
      %v336 = vld [vmem:[%s192 + $0x448] sm:$0xff]
      %v337 = vld [vmem:[%s192 + $0x450] sm:$0xff]
      %v338 = vld [vmem:[%s192 + $0x458] sm:$0xff]
      %v339 = vld [vmem:[%s192 + $0x460] sm:$0xff]
      %v340 = vld [vmem:[%s192 + $0x468] sm:$0xff]
      %v341 = vld [vmem:[%s192 + $0x470] sm:$0xff]
      %v342 = vld [vmem:[%s192 + $0x478] sm:$0xff]
      %v343 = vld [vmem:[%s192 + $0x480] sm:$0xff]
      %v344 = vld [vmem:[%s192 + $0x488] sm:$0xff]
      %v345 = vld [vmem:[%s192 + $0x490] sm:$0xff]
      %v346 = vld [vmem:[%s192 + $0x498] sm:$0xff]
      %v347 = vld [vmem:[%s192 + $0x4a0] sm:$0xff]
      %v348 = vld [vmem:[%s192 + $0x4a8] sm:$0xff]
      %v349 = vld [vmem:[%s192 + $0x4b0] sm:$0xff]
      %v350 = vld [vmem:[%s192 + $0x4b8] sm:$0xff]
      %v351 = vld [vmem:[%s192 + $0x4c0] sm:$0xff]
      %v352 = vld [vmem:[%s192 + $0x4c8] sm:$0xff]
      %v353 = vld [vmem:[%s192 + $0x4d0] sm:$0xff]
      %v354 = vld [vmem:[%s192 + $0x4d8] sm:$0xff]
      %v355 = vld [vmem:[%s192 + $0x4e0] sm:$0xff]
      %v356 = vld [vmem:[%s192 + $0x4e8] sm:$0xff]
      %v357 = vld [vmem:[%s192 + $0x4f0] sm:$0xff]
      %v358 = vld [vmem:[%s192 + $0x4f8] sm:$0xff]
      %v359 = vld [vmem:[%s192 + $0x500] sm:$0xff]
      %v360 = vld [vmem:[%s192 + $0x508] sm:$0xff]
      %v361 = vld [vmem:[%s192 + $0x510] sm:$0xff]
      %v362 = vld [vmem:[%s192 + $0x518] sm:$0xff]
      %v363 = vld [vmem:[%s192 + $0x520] sm:$0xff]
      %v364 = vld [vmem:[%s192 + $0x528] sm:$0xff]
      %v365 = vld [vmem:[%s192 + $0x530] sm:$0xff]
      %v366 = vld [vmem:[%s192 + $0x538] sm:$0xff]
      %v367 = vld [vmem:[%s192 + $0x540] sm:$0xff]
      %v368 = vld [vmem:[%s192 + $0x548] sm:$0xff]
      %v369 = vld [vmem:[%s192 + $0x550] sm:$0xff]
      %v370 = vld [vmem:[%s192 + $0x558] sm:$0xff]
      %v371 = vld [vmem:[%s192 + $0x560] sm:$0xff]
      %v372 = vld [vmem:[%s192 + $0x568] sm:$0xff]
      %v373 = vld [vmem:[%s192 + $0x570] sm:$0xff]
      %v374 = vld [vmem:[%s192 + $0x578] sm:$0xff]
      %v375 = vld [vmem:[%s192 + $0x580] sm:$0xff]
      %v376 = vld [vmem:[%s192 + $0x588] sm:$0xff]
      %v377 = vld [vmem:[%s192 + $0x590] sm:$0xff]
      %v378 = vld [vmem:[%s192 + $0x598] sm:$0xff]
      %v379 = vld [vmem:[%s192 + $0x5a0] sm:$0xff]
      %v380 = vld [vmem:[%s192 + $0x5a8] sm:$0xff]
      %v381 = vld [vmem:[%s192 + $0x5b0] sm:$0xff]
      %v382 = vld [vmem:[%s192 + $0x5b8] sm:$0xff]
      %v383 = vld [vmem:[%s192 + $0x5c0] sm:$0xff]
      %v384 = vld [vmem:[%s192 + $0x5c8] sm:$0xff]
      %v385 = vld [vmem:[%s192 + $0x5d0] sm:$0xff]
      %v386 = vld [vmem:[%s192 + $0x5d8] sm:$0xff]
      %v387 = vld [vmem:[%s192 + $0x5e0] sm:$0xff]
      %v388 = vld [vmem:[%s192 + $0x5e8] sm:$0xff]
      %v389 = vld [vmem:[%s192 + $0x5f0] sm:$0xff]
      %v390 = vld [vmem:[%s192 + $0x5f8] sm:$0xff]
      %v391 = vld [vmem:[%s192 + $0x600] sm:$0xff]
      %v392 = vld [vmem:[%s192 + $0x608] sm:$0xff]
      %v393 = vld [vmem:[%s192 + $0x610] sm:$0xff]
      %v394 = vld [vmem:[%s192 + $0x618] sm:$0xff]
      %v395 = vld [vmem:[%s192 + $0x620] sm:$0xff]
      %v396 = vld [vmem:[%s192 + $0x628] sm:$0xff]
      %v397 = vld [vmem:[%s192 + $0x630] sm:$0xff]
      %v398 = vld [vmem:[%s192 + $0x638] sm:$0xff]
      %v399 = vld [vmem:[%s192 + $0x640] sm:$0xff]
      %v400 = vld [vmem:[%s192 + $0x648] sm:$0xff]
      %v401 = vld [vmem:[%s192 + $0x650] sm:$0xff]
      %v402 = vld [vmem:[%s192 + $0x658] sm:$0xff]
      %v403 = vld [vmem:[%s192 + $0x660] sm:$0xff]
      %v404 = vld [vmem:[%s192 + $0x668] sm:$0xff]
      %v405 = vld [vmem:[%s192 + $0x670] sm:$0xff]
      %v406 = vld [vmem:[%s192 + $0x678] sm:$0xff]
      %v407 = vld [vmem:[%s192 + $0x680] sm:$0xff]
      %v408 = vld [vmem:[%s192 + $0x688] sm:$0xff]
      %v409 = vld [vmem:[%s192 + $0x690] sm:$0xff]
      %v410 = vld [vmem:[%s192 + $0x698] sm:$0xff]
      %v411 = vld [vmem:[%s192 + $0x6a0] sm:$0xff]
      %v412 = vld [vmem:[%s192 + $0x6a8] sm:$0xff]
      %v413 = vld [vmem:[%s192 + $0x6b0] sm:$0xff]
      %v414 = vld [vmem:[%s192 + $0x6b8] sm:$0xff]
      %v415 = vld [vmem:[%s192 + $0x6c0] sm:$0xff]
      %v416 = vld [vmem:[%s192 + $0x6c8] sm:$0xff]
      %v417 = vld [vmem:[%s192 + $0x6d0] sm:$0xff]
      %v418 = vld [vmem:[%s192 + $0x6d8] sm:$0xff]
      %v419 = vld [vmem:[%s192 + $0x6e0] sm:$0xff]
      %v420 = vld [vmem:[%s192 + $0x6e8] sm:$0xff]
      %v421 = vld [vmem:[%s192 + $0x6f0] sm:$0xff]
      %v422 = vld [vmem:[%s192 + $0x6f8] sm:$0xff]
      %v423 = vld [vmem:[%s192 + $0x700] sm:$0xff]
      %v424 = vld [vmem:[%s192 + $0x708] sm:$0xff]
      %v425 = vld [vmem:[%s192 + $0x710] sm:$0xff]
      %v426 = vld [vmem:[%s192 + $0x718] sm:$0xff]
      %v427 = vld [vmem:[%s192 + $0x720] sm:$0xff]
      %v428 = vld [vmem:[%s192 + $0x728] sm:$0xff]
      %v429 = vld [vmem:[%s192 + $0x730] sm:$0xff]
      %v430 = vld [vmem:[%s192 + $0x738] sm:$0xff]
      %v431 = vld [vmem:[%s192 + $0x740] sm:$0xff]
      %v432 = vld [vmem:[%s192 + $0x748] sm:$0xff]
      %v433 = vld [vmem:[%s192 + $0x750] sm:$0xff]
      %v434 = vld [vmem:[%s192 + $0x758] sm:$0xff]
      %v435 = vld [vmem:[%s192 + $0x760] sm:$0xff]
      %v436 = vld [vmem:[%s192 + $0x768] sm:$0xff]
      %v437 = vld [vmem:[%s192 + $0x770] sm:$0xff]
      %v438 = vld [vmem:[%s192 + $0x778] sm:$0xff]
      %v439 = vld [vmem:[%s192 + $0x780] sm:$0xff]
      %v440 = vld [vmem:[%s192 + $0x788] sm:$0xff]
      %v441 = vld [vmem:[%s192 + $0x790] sm:$0xff]
      %v442 = vld [vmem:[%s192 + $0x798] sm:$0xff]
      %v443 = vld [vmem:[%s192 + $0x7a0] sm:$0xff]
      %v444 = vld [vmem:[%s192 + $0x7a8] sm:$0xff]
      %v445 = vld [vmem:[%s192 + $0x7b0] sm:$0xff]
      %v446 = vld [vmem:[%s192 + $0x7b8] sm:$0xff]
      %v447 = vld [vmem:[%s192 + $0x7c0] sm:$0xff]
      %v448 = vld [vmem:[%s192 + $0x7c8] sm:$0xff]
      %v449 = vld [vmem:[%s192 + $0x7d0] sm:$0xff]
      %v450 = vld [vmem:[%s192 + $0x7d8] sm:$0xff]
      %v451 = vld [vmem:[%s192 + $0x7e0] sm:$0xff]
      %v452 = vld [vmem:[%s192 + $0x7e8] sm:$0xff]
      %v453 = vld [vmem:[%s192 + $0x7f0] sm:$0xff]
      %v454 = vld [vmem:[%s192 + $0x7f8] sm:$0xff]
      %v455 = vadd.f32 %v199, %v200
      %v456 = vadd.f32 %v215, %v216
      %v457 = vadd.f32 %v231, %v232
      %v458 = vadd.f32 %v247, %v248
      %v459 = vadd.f32 %v263, %v264
      %v460 = vadd.f32 %v279, %v280
      %v461 = vadd.f32 %v295, %v296
      %v462 = vadd.f32 %v311, %v312
      %v463 = vadd.f32 %v327, %v328
      %v464 = vadd.f32 %v343, %v344
      %v465 = vadd.f32 %v359, %v360
      %v466 = vadd.f32 %v375, %v376
      %v467 = vadd.f32 %v391, %v392
      %v468 = vadd.f32 %v407, %v408
      %v469 = vadd.f32 %v423, %v424
      %v470 = vadd.f32 %v439, %v440
      %v471 = vmax.f32 %v199, %v200
      %v472 = vmax.f32 %v215, %v216
      %v473 = vmax.f32 %v231, %v232
      %v474 = vmax.f32 %v247, %v248
      %v475 = vmax.f32 %v263, %v264
      %v476 = vmax.f32 %v279, %v280
      %v477 = vmax.f32 %v295, %v296
      %v478 = vmax.f32 %v311, %v312
      %v479 = vmax.f32 %v327, %v328
      %v480 = vmax.f32 %v343, %v344
      %v481 = vmax.f32 %v359, %v360
      %v482 = vmax.f32 %v375, %v376
      %v483 = vmax.f32 %v391, %v392
      %v484 = vmax.f32 %v407, %v408
      %v485 = vmax.f32 %v423, %v424
      %v486 = vmax.f32 %v439, %v440
      %v487 = vadd.f32 %v455, %v201
      %v488 = vadd.f32 %v456, %v217
      %v489 = vadd.f32 %v457, %v233
      %v490 = vadd.f32 %v458, %v249
      %v491 = vadd.f32 %v459, %v265
      %v492 = vadd.f32 %v460, %v281
      %v493 = vadd.f32 %v461, %v297
      %v494 = vadd.f32 %v462, %v313
      %v495 = vadd.f32 %v463, %v329
      %v496 = vadd.f32 %v464, %v345
      %v497 = vadd.f32 %v465, %v361
      %v498 = vadd.f32 %v466, %v377
      %v499 = vadd.f32 %v467, %v393
      %v500 = vadd.f32 %v468, %v409
      %v501 = vadd.f32 %v469, %v425
      %v502 = vadd.f32 %v470, %v441
      %v503 = vmax.f32 %v471, %v201
      %v504 = vmax.f32 %v472, %v217
      %v505 = vmax.f32 %v473, %v233
      %v506 = vmax.f32 %v474, %v249
      %v507 = vmax.f32 %v475, %v265
      %v508 = vmax.f32 %v476, %v281
      %v509 = vmax.f32 %v477, %v297
      %v510 = vmax.f32 %v478, %v313
      %v511 = vmax.f32 %v479, %v329
      %v512 = vmax.f32 %v480, %v345
      %v513 = vmax.f32 %v481, %v361
      %v514 = vmax.f32 %v482, %v377
      %v515 = vmax.f32 %v483, %v393
      %v516 = vmax.f32 %v484, %v409
      %v517 = vmax.f32 %v485, %v425
      %v518 = vmax.f32 %v486, %v441
      %v519 = vadd.f32 %v487, %v202
      %v520 = vadd.f32 %v488, %v218
      %v521 = vadd.f32 %v489, %v234
      %v522 = vadd.f32 %v490, %v250
      %v523 = vadd.f32 %v491, %v266
      %v524 = vadd.f32 %v492, %v282
      %v525 = vadd.f32 %v493, %v298
      %v526 = vadd.f32 %v494, %v314
      %v527 = vadd.f32 %v495, %v330
      %v528 = vadd.f32 %v496, %v346
      %v529 = vadd.f32 %v497, %v362
      %v530 = vadd.f32 %v498, %v378
      %v531 = vadd.f32 %v499, %v394
      %v532 = vadd.f32 %v500, %v410
      %v533 = vadd.f32 %v501, %v426
      %v534 = vadd.f32 %v502, %v442
      %v535 = vmax.f32 %v503, %v202
      %v536 = vmax.f32 %v504, %v218
      %v537 = vmax.f32 %v505, %v234
      %v538 = vmax.f32 %v506, %v250
      %v539 = vmax.f32 %v507, %v266
      %v540 = vmax.f32 %v508, %v282
      %v541 = vmax.f32 %v509, %v298
      %v542 = vmax.f32 %v510, %v314
      %v543 = vmax.f32 %v511, %v330
      %v544 = vmax.f32 %v512, %v346
      %v545 = vmax.f32 %v513, %v362
      %v546 = vmax.f32 %v514, %v378
      %v547 = vmax.f32 %v515, %v394
      %v548 = vmax.f32 %v516, %v410
      %v549 = vmax.f32 %v517, %v426
      %v550 = vmax.f32 %v518, %v442
      %v551 = vadd.f32 %v519, %v203
      %v552 = vadd.f32 %v520, %v219
      %v553 = vadd.f32 %v521, %v235
      %v554 = vadd.f32 %v522, %v251
      %v555 = vadd.f32 %v523, %v267
      %v556 = vadd.f32 %v524, %v283
      %v557 = vadd.f32 %v525, %v299
      %v558 = vadd.f32 %v526, %v315
      %v559 = vadd.f32 %v527, %v331
      %v560 = vadd.f32 %v528, %v347
      %v561 = vadd.f32 %v529, %v363
      %v562 = vadd.f32 %v530, %v379
      %v563 = vadd.f32 %v531, %v395
      %v564 = vadd.f32 %v532, %v411
      %v565 = vadd.f32 %v533, %v427
      %v566 = vadd.f32 %v534, %v443
      %v567 = vmax.f32 %v535, %v203
      %v568 = vmax.f32 %v536, %v219
      %v569 = vmax.f32 %v537, %v235
      %v570 = vmax.f32 %v538, %v251
      %v571 = vmax.f32 %v539, %v267
      %v572 = vmax.f32 %v540, %v283
      %v573 = vmax.f32 %v541, %v299
      %v574 = vmax.f32 %v542, %v315
      %v575 = vmax.f32 %v543, %v331
      %v576 = vmax.f32 %v544, %v347
      %v577 = vmax.f32 %v545, %v363
      %v578 = vmax.f32 %v546, %v379
      %v579 = vmax.f32 %v547, %v395
      %v580 = vmax.f32 %v548, %v411
      %v581 = vmax.f32 %v549, %v427
      %v582 = vmax.f32 %v550, %v443
      %v583 = vadd.f32 %v551, %v204
      %v584 = vadd.f32 %v552, %v220
      %v585 = vadd.f32 %v553, %v236
      %v586 = vadd.f32 %v554, %v252
      %v587 = vadd.f32 %v555, %v268
      %v588 = vadd.f32 %v556, %v284
      %v589 = vadd.f32 %v557, %v300
      %v590 = vadd.f32 %v558, %v316
      %v591 = vadd.f32 %v559, %v332
      %v592 = vadd.f32 %v560, %v348
      %v593 = vadd.f32 %v561, %v364
      %v594 = vadd.f32 %v562, %v380
      %v595 = vadd.f32 %v563, %v396
      %v596 = vadd.f32 %v564, %v412
      %v597 = vadd.f32 %v565, %v428
      %v598 = vadd.f32 %v566, %v444
      %v599 = vmax.f32 %v567, %v204
      %v600 = vmax.f32 %v568, %v220
      %v601 = vmax.f32 %v569, %v236
      %v602 = vmax.f32 %v570, %v252
      %v603 = vmax.f32 %v571, %v268
      %v604 = vmax.f32 %v572, %v284
      %v605 = vmax.f32 %v573, %v300
      %v606 = vmax.f32 %v574, %v316
      %v607 = vmax.f32 %v575, %v332
      %v608 = vmax.f32 %v576, %v348
      %v609 = vmax.f32 %v577, %v364
      %v610 = vmax.f32 %v578, %v380
      %v611 = vmax.f32 %v579, %v396
      %v612 = vmax.f32 %v580, %v412
      %v613 = vmax.f32 %v581, %v428
      %v614 = vmax.f32 %v582, %v444
      %v615 = vadd.f32 %v583, %v205
      %v616 = vadd.f32 %v584, %v221
      %v617 = vadd.f32 %v585, %v237
      %v618 = vadd.f32 %v586, %v253
      %v619 = vadd.f32 %v587, %v269
      %v620 = vadd.f32 %v588, %v285
      %v621 = vadd.f32 %v589, %v301
      %v622 = vadd.f32 %v590, %v317
      %v623 = vadd.f32 %v591, %v333
      %v624 = vadd.f32 %v592, %v349
      %v625 = vadd.f32 %v593, %v365
      %v626 = vadd.f32 %v594, %v381
      %v627 = vadd.f32 %v595, %v397
      %v628 = vadd.f32 %v596, %v413
      %v629 = vadd.f32 %v597, %v429
      %v630 = vadd.f32 %v598, %v445
      %v631 = vmax.f32 %v599, %v205
      %v632 = vmax.f32 %v600, %v221
      %v633 = vmax.f32 %v601, %v237
      %v634 = vmax.f32 %v602, %v253
      %v635 = vmax.f32 %v603, %v269
      %v636 = vmax.f32 %v604, %v285
      %v637 = vmax.f32 %v605, %v301
      %v638 = vmax.f32 %v606, %v317
      %v639 = vmax.f32 %v607, %v333
      %v640 = vmax.f32 %v608, %v349
      %v641 = vmax.f32 %v609, %v365
      %v642 = vmax.f32 %v610, %v381
      %v643 = vmax.f32 %v611, %v397
      %v644 = vmax.f32 %v612, %v413
      %v645 = vmax.f32 %v613, %v429
      %v646 = vmax.f32 %v614, %v445
      %v647 = vadd.f32 %v615, %v206
      %v648 = vadd.f32 %v616, %v222
      %v649 = vadd.f32 %v617, %v238
      %v650 = vadd.f32 %v618, %v254
      %v651 = vadd.f32 %v619, %v270
      %v652 = vadd.f32 %v620, %v286
      %v653 = vadd.f32 %v621, %v302
      %v654 = vadd.f32 %v622, %v318
      %v655 = vadd.f32 %v623, %v334
      %v656 = vadd.f32 %v624, %v350
      %v657 = vadd.f32 %v625, %v366
      %v658 = vadd.f32 %v626, %v382
      %v659 = vadd.f32 %v627, %v398
      %v660 = vadd.f32 %v628, %v414
      %v661 = vadd.f32 %v629, %v430
      %v662 = vadd.f32 %v630, %v446
      %v663 = vmax.f32 %v631, %v206
      %v664 = vmax.f32 %v632, %v222
      %v665 = vmax.f32 %v633, %v238
      %v666 = vmax.f32 %v634, %v254
      %v667 = vmax.f32 %v635, %v270
      %v668 = vmax.f32 %v636, %v286
      %v669 = vmax.f32 %v637, %v302
      %v670 = vmax.f32 %v638, %v318
      %v671 = vmax.f32 %v639, %v334
      %v672 = vmax.f32 %v640, %v350
      %v673 = vmax.f32 %v641, %v366
      %v674 = vmax.f32 %v642, %v382
      %v675 = vmax.f32 %v643, %v398
      %v676 = vmax.f32 %v644, %v414
      %v677 = vmax.f32 %v645, %v430
      %v678 = vmax.f32 %v646, %v446
      %v679 = vadd.f32 %v647, %v207
      %v680 = vadd.f32 %v648, %v223
      %v681 = vadd.f32 %v649, %v239
      %v682 = vadd.f32 %v650, %v255
      %v683 = vadd.f32 %v651, %v271
      %v684 = vadd.f32 %v652, %v287
      %v685 = vadd.f32 %v653, %v303
      %v686 = vadd.f32 %v654, %v319
      %v687 = vadd.f32 %v655, %v335
      %v688 = vadd.f32 %v656, %v351
      %v689 = vadd.f32 %v657, %v367
      %v690 = vadd.f32 %v658, %v383
      %v691 = vadd.f32 %v659, %v399
      %v692 = vadd.f32 %v660, %v415
      %v693 = vadd.f32 %v661, %v431
      %v694 = vadd.f32 %v662, %v447
      %v695 = vmax.f32 %v663, %v207
      %v696 = vmax.f32 %v664, %v223
      %v697 = vmax.f32 %v665, %v239
      %v698 = vmax.f32 %v666, %v255
      %v699 = vmax.f32 %v667, %v271
      %v700 = vmax.f32 %v668, %v287
      %v701 = vmax.f32 %v669, %v303
      %v702 = vmax.f32 %v670, %v319
      %v703 = vmax.f32 %v671, %v335
      %v704 = vmax.f32 %v672, %v351
      %v705 = vmax.f32 %v673, %v367
      %v706 = vmax.f32 %v674, %v383
      %v707 = vmax.f32 %v675, %v399
      %v708 = vmax.f32 %v676, %v415
      %v709 = vmax.f32 %v677, %v431
      %v710 = vmax.f32 %v678, %v447
      %v711 = vadd.f32 %v679, %v208
      %v712 = vadd.f32 %v680, %v224
      %v713 = vadd.f32 %v681, %v240
      %v714 = vadd.f32 %v682, %v256
      %v715 = vadd.f32 %v683, %v272
      %v716 = vadd.f32 %v684, %v288
      %v717 = vadd.f32 %v685, %v304
      %v718 = vadd.f32 %v686, %v320
      %v719 = vadd.f32 %v687, %v336
      %v720 = vadd.f32 %v688, %v352
      %v721 = vadd.f32 %v689, %v368
      %v722 = vadd.f32 %v690, %v384
      %v723 = vadd.f32 %v691, %v400
      %v724 = vadd.f32 %v692, %v416
      %v725 = vadd.f32 %v693, %v432
      %v726 = vadd.f32 %v694, %v448
      %v727 = vmax.f32 %v695, %v208
      %v728 = vmax.f32 %v696, %v224
      %v729 = vmax.f32 %v697, %v240
      %v730 = vmax.f32 %v698, %v256
      %v731 = vmax.f32 %v699, %v272
      %v732 = vmax.f32 %v700, %v288
      %v733 = vmax.f32 %v701, %v304
      %v734 = vmax.f32 %v702, %v320
      %v735 = vmax.f32 %v703, %v336
      %v736 = vmax.f32 %v704, %v352
      %v737 = vmax.f32 %v705, %v368
      %v738 = vmax.f32 %v706, %v384
      %v739 = vmax.f32 %v707, %v400
      %v740 = vmax.f32 %v708, %v416
      %v741 = vmax.f32 %v709, %v432
      %v742 = vmax.f32 %v710, %v448
      %v743 = vadd.f32 %v711, %v209
      %v744 = vadd.f32 %v712, %v225
      %v745 = vadd.f32 %v713, %v241
      %v746 = vadd.f32 %v714, %v257
      %v747 = vadd.f32 %v715, %v273
      %v748 = vadd.f32 %v716, %v289
      %v749 = vadd.f32 %v717, %v305
      %v750 = vadd.f32 %v718, %v321
      %v751 = vadd.f32 %v719, %v337
      %v752 = vadd.f32 %v720, %v353
      %v753 = vadd.f32 %v721, %v369
      %v754 = vadd.f32 %v722, %v385
      %v755 = vadd.f32 %v723, %v401
      %v756 = vadd.f32 %v724, %v417
      %v757 = vadd.f32 %v725, %v433
      %v758 = vadd.f32 %v726, %v449
      %v759 = vmax.f32 %v727, %v209
      %v760 = vmax.f32 %v728, %v225
      %v761 = vmax.f32 %v729, %v241
      %v762 = vmax.f32 %v730, %v257
      %v763 = vmax.f32 %v731, %v273
      %v764 = vmax.f32 %v732, %v289
      %v765 = vmax.f32 %v733, %v305
      %v766 = vmax.f32 %v734, %v321
      %v767 = vmax.f32 %v735, %v337
      %v768 = vmax.f32 %v736, %v353
      %v769 = vmax.f32 %v737, %v369
      %v770 = vmax.f32 %v738, %v385
      %v771 = vmax.f32 %v739, %v401
      %v772 = vmax.f32 %v740, %v417
      %v773 = vmax.f32 %v741, %v433
      %v774 = vmax.f32 %v742, %v449
      %v775 = vadd.f32 %v743, %v210
      %v776 = vadd.f32 %v744, %v226
      %v777 = vadd.f32 %v745, %v242
      %v778 = vadd.f32 %v746, %v258
      %v779 = vadd.f32 %v747, %v274
      %v780 = vadd.f32 %v748, %v290
      %v781 = vadd.f32 %v749, %v306
      %v782 = vadd.f32 %v750, %v322
      %v783 = vadd.f32 %v751, %v338
      %v784 = vadd.f32 %v752, %v354
      %v785 = vadd.f32 %v753, %v370
      %v786 = vadd.f32 %v754, %v386
      %v787 = vadd.f32 %v755, %v402
      %v788 = vadd.f32 %v756, %v418
      %v789 = vadd.f32 %v757, %v434
      %v790 = vadd.f32 %v758, %v450
      %v791 = vmax.f32 %v759, %v210
      %v792 = vmax.f32 %v760, %v226
      %v793 = vmax.f32 %v761, %v242
      %v794 = vmax.f32 %v762, %v258
      %v795 = vmax.f32 %v763, %v274
      %v796 = vmax.f32 %v764, %v290
      %v797 = vmax.f32 %v765, %v306
      %v798 = vmax.f32 %v766, %v322
      %v799 = vmax.f32 %v767, %v338
      %v800 = vmax.f32 %v768, %v354
      %v801 = vmax.f32 %v769, %v370
      %v802 = vmax.f32 %v770, %v386
      %v803 = vmax.f32 %v771, %v402
      %v804 = vmax.f32 %v772, %v418
      %v805 = vmax.f32 %v773, %v434
      %v806 = vmax.f32 %v774, %v450
      %v807 = vadd.f32 %v775, %v211
      %v808 = vadd.f32 %v776, %v227
      %v809 = vadd.f32 %v777, %v243
      %v810 = vadd.f32 %v778, %v259
      %v811 = vadd.f32 %v779, %v275
      %v812 = vadd.f32 %v780, %v291
      %v813 = vadd.f32 %v781, %v307
      %v814 = vadd.f32 %v782, %v323
      %v815 = vadd.f32 %v783, %v339
      %v816 = vadd.f32 %v784, %v355
      %v817 = vadd.f32 %v785, %v371
      %v818 = vadd.f32 %v786, %v387
      %v819 = vadd.f32 %v787, %v403
      %v820 = vadd.f32 %v788, %v419
      %v821 = vadd.f32 %v789, %v435
      %v822 = vadd.f32 %v790, %v451
      %v823 = vmax.f32 %v791, %v211
      %v824 = vmax.f32 %v792, %v227
      %v825 = vmax.f32 %v793, %v243
      %v826 = vmax.f32 %v794, %v259
      %v827 = vmax.f32 %v795, %v275
      %v828 = vmax.f32 %v796, %v291
      %v829 = vmax.f32 %v797, %v307
      %v830 = vmax.f32 %v798, %v323
      %v831 = vmax.f32 %v799, %v339
      %v832 = vmax.f32 %v800, %v355
      %v833 = vmax.f32 %v801, %v371
      %v834 = vmax.f32 %v802, %v387
      %v835 = vmax.f32 %v803, %v403
      %v836 = vmax.f32 %v804, %v419
      %v837 = vmax.f32 %v805, %v435
      %v838 = vmax.f32 %v806, %v451
      %v839 = vadd.f32 %v807, %v212
      %v840 = vadd.f32 %v808, %v228
      %v841 = vadd.f32 %v809, %v244
      %v842 = vadd.f32 %v810, %v260
      %v843 = vadd.f32 %v811, %v276
      %v844 = vadd.f32 %v812, %v292
      %v845 = vadd.f32 %v813, %v308
      %v846 = vadd.f32 %v814, %v324
      %v847 = vadd.f32 %v815, %v340
      %v848 = vadd.f32 %v816, %v356
      %v849 = vadd.f32 %v817, %v372
      %v850 = vadd.f32 %v818, %v388
      %v851 = vadd.f32 %v819, %v404
      %v852 = vadd.f32 %v820, %v420
      %v853 = vadd.f32 %v821, %v436
      %v854 = vadd.f32 %v822, %v452
      %v855 = vmax.f32 %v823, %v212
      %v856 = vmax.f32 %v824, %v228
      %v857 = vmax.f32 %v825, %v244
      %v858 = vmax.f32 %v826, %v260
      %v859 = vmax.f32 %v827, %v276
      %v860 = vmax.f32 %v828, %v292
      %v861 = vmax.f32 %v829, %v308
      %v862 = vmax.f32 %v830, %v324
      %v863 = vmax.f32 %v831, %v340
      %v864 = vmax.f32 %v832, %v356
      %v865 = vmax.f32 %v833, %v372
      %v866 = vmax.f32 %v834, %v388
      %v867 = vmax.f32 %v835, %v404
      %v868 = vmax.f32 %v836, %v420
      %v869 = vmax.f32 %v837, %v436
      %v870 = vmax.f32 %v838, %v452
      %v871 = vadd.f32 %v839, %v213
      %v872 = vadd.f32 %v840, %v229
      %v873 = vadd.f32 %v841, %v245
      %v874 = vadd.f32 %v842, %v261
      %v875 = vadd.f32 %v843, %v277
      %v876 = vadd.f32 %v844, %v293
      %v877 = vadd.f32 %v845, %v309
      %v878 = vadd.f32 %v846, %v325
      %v879 = vadd.f32 %v847, %v341
      %v880 = vadd.f32 %v848, %v357
      %v881 = vadd.f32 %v849, %v373
      %v882 = vadd.f32 %v850, %v389
      %v883 = vadd.f32 %v851, %v405
      %v884 = vadd.f32 %v852, %v421
      %v885 = vadd.f32 %v853, %v437
      %v886 = vadd.f32 %v854, %v453
      %v887 = vmax.f32 %v855, %v213
      %v888 = vmax.f32 %v856, %v229
      %v889 = vmax.f32 %v857, %v245
      %v890 = vmax.f32 %v858, %v261
      %v891 = vmax.f32 %v859, %v277
      %v892 = vmax.f32 %v860, %v293
      %v893 = vmax.f32 %v861, %v309
      %v894 = vmax.f32 %v862, %v325
      %v895 = vmax.f32 %v863, %v341
      %v896 = vmax.f32 %v864, %v357
      %v897 = vmax.f32 %v865, %v373
      %v898 = vmax.f32 %v866, %v389
      %v899 = vmax.f32 %v867, %v405
      %v900 = vmax.f32 %v868, %v421
      %v901 = vmax.f32 %v869, %v437
      %v902 = vmax.f32 %v870, %v453
      %v903 = vadd.f32 %v871, %v214
      %v904 = vadd.f32 %v872, %v230
      %v905 = vadd.f32 %v873, %v246
      %v906 = vadd.f32 %v874, %v262
      %v907 = vadd.f32 %v875, %v278
      %v908 = vadd.f32 %v876, %v294
      %v909 = vadd.f32 %v877, %v310
      %v910 = vadd.f32 %v878, %v326
      %v911 = vadd.f32 %v879, %v342
      %v912 = vadd.f32 %v880, %v358
      %v913 = vadd.f32 %v881, %v374
      %v914 = vadd.f32 %v882, %v390
      %v915 = vadd.f32 %v883, %v406
      %v916 = vadd.f32 %v884, %v422
      %v917 = vadd.f32 %v885, %v438
      %v918 = vadd.f32 %v886, %v454
      %v919 = vmax.f32 %v887, %v214
      %v920 = vmax.f32 %v888, %v230
      %v921 = vmax.f32 %v889, %v246
      %v922 = vmax.f32 %v890, %v262
      %v923 = vmax.f32 %v891, %v278
      %v924 = vmax.f32 %v892, %v294
      %v925 = vmax.f32 %v893, %v310
      %v926 = vmax.f32 %v894, %v326
      %v927 = vmax.f32 %v895, %v342
      %v928 = vmax.f32 %v896, %v358
      %v929 = vmax.f32 %v897, %v374
      %v930 = vmax.f32 %v898, %v390
      %v931 = vmax.f32 %v899, %v406
      %v932 = vmax.f32 %v900, %v422
      %v933 = vmax.f32 %v901, %v438
      %v934 = vmax.f32 %v902, %v454
      %p935 = scmp.eq.s32.totalorder %s19, 0
      // Predicated region
      $region33: #{channel_attention.2} parent=31 // pred_check
        %p936 = pneg %p935
      $region34: #{channel_attention.2} parent=31 // pred_check_branch
        %938 = sbr.rel (%p936) target = $region36
      $region35: #{channel_attention.2} parent=31 // pred_region
        %939 = vst [vmem:[#allocation2] sm:$0xff] %v903
        %940 = vst [vmem:[#allocation2 + $0x8] sm:$0xff] %v904
        %941 = vst [vmem:[#allocation2 + $0x10] sm:$0xff] %v905
        %942 = vst [vmem:[#allocation2 + $0x18] sm:$0xff] %v906
        %943 = vst [vmem:[#allocation2 + $0x20] sm:$0xff] %v907
        %944 = vst [vmem:[#allocation2 + $0x28] sm:$0xff] %v908
        %945 = vst [vmem:[#allocation2 + $0x30] sm:$0xff] %v909
        %946 = vst [vmem:[#allocation2 + $0x38] sm:$0xff] %v910
        %947 = vst [vmem:[#allocation2 + $0x40] sm:$0xff] %v911
        %948 = vst [vmem:[#allocation2 + $0x48] sm:$0xff] %v912
        %949 = vst [vmem:[#allocation2 + $0x50] sm:$0xff] %v913
        %950 = vst [vmem:[#allocation2 + $0x58] sm:$0xff] %v914
        %951 = vst [vmem:[#allocation2 + $0x60] sm:$0xff] %v915
        %952 = vst [vmem:[#allocation2 + $0x68] sm:$0xff] %v916
        %953 = vst [vmem:[#allocation2 + $0x70] sm:$0xff] %v917
        %954 = vst [vmem:[#allocation2 + $0x78] sm:$0xff] %v918
        %955 = vst [vmem:[#allocation3] sm:$0xff] %v919
        %956 = vst [vmem:[#allocation3 + $0x8] sm:$0xff] %v920
        %957 = vst [vmem:[#allocation3 + $0x10] sm:$0xff] %v921
        %958 = vst [vmem:[#allocation3 + $0x18] sm:$0xff] %v922
        %959 = vst [vmem:[#allocation3 + $0x20] sm:$0xff] %v923
        %960 = vst [vmem:[#allocation3 + $0x28] sm:$0xff] %v924
        %961 = vst [vmem:[#allocation3 + $0x30] sm:$0xff] %v925
        %962 = vst [vmem:[#allocation3 + $0x38] sm:$0xff] %v926
        %963 = vst [vmem:[#allocation3 + $0x40] sm:$0xff] %v927
        %964 = vst [vmem:[#allocation3 + $0x48] sm:$0xff] %v928
        %965 = vst [vmem:[#allocation3 + $0x50] sm:$0xff] %v929
        %966 = vst [vmem:[#allocation3 + $0x58] sm:$0xff] %v930
        %967 = vst [vmem:[#allocation3 + $0x60] sm:$0xff] %v931
        %968 = vst [vmem:[#allocation3 + $0x68] sm:$0xff] %v932
        %969 = vst [vmem:[#allocation3 + $0x70] sm:$0xff] %v933
        %970 = vst [vmem:[#allocation3 + $0x78] sm:$0xff] %v934
      $region36: #{channel_attention.2} parent=31 // pred_fallthru
        _
      %p971 = scmp.gt.s32.totalorder %s19, 0
      // Predicated region
      $region37: #{channel_attention.2} parent=31 // pred_check
        %p972 = pneg %p971
      $region38: #{channel_attention.2} parent=31 // pred_check_branch
        %974 = sbr.rel (%p972) target = $region40
      $region39: #{channel_attention.2} parent=31 // pred_region
        %v975 = vld [vmem:[#allocation2] sm:$0xff]
        %v976 = vld [vmem:[#allocation2 + $0x8] sm:$0xff]
        %v977 = vld [vmem:[#allocation2 + $0x10] sm:$0xff]
        %v978 = vld [vmem:[#allocation2 + $0x18] sm:$0xff]
        %v979 = vld [vmem:[#allocation2 + $0x20] sm:$0xff]
        %v980 = vld [vmem:[#allocation2 + $0x28] sm:$0xff]
        %v981 = vld [vmem:[#allocation2 + $0x30] sm:$0xff]
        %v982 = vld [vmem:[#allocation2 + $0x38] sm:$0xff]
        %v983 = vld [vmem:[#allocation2 + $0x40] sm:$0xff]
        %v984 = vld [vmem:[#allocation2 + $0x48] sm:$0xff]
        %v985 = vld [vmem:[#allocation2 + $0x50] sm:$0xff]
        %v986 = vld [vmem:[#allocation2 + $0x58] sm:$0xff]
        %v987 = vld [vmem:[#allocation2 + $0x60] sm:$0xff]
        %v988 = vld [vmem:[#allocation2 + $0x68] sm:$0xff]
        %v989 = vld [vmem:[#allocation2 + $0x70] sm:$0xff]
        %v990 = vld [vmem:[#allocation2 + $0x78] sm:$0xff]
        %v991 = vadd.f32 %v975, %v903
        %v992 = vadd.f32 %v976, %v904
        %v993 = vadd.f32 %v977, %v905
        %v994 = vadd.f32 %v978, %v906
        %v995 = vadd.f32 %v979, %v907
        %v996 = vadd.f32 %v980, %v908
        %v997 = vadd.f32 %v981, %v909
        %v998 = vadd.f32 %v982, %v910
        %v999 = vadd.f32 %v983, %v911
        %v1000 = vadd.f32 %v984, %v912
        %v1001 = vadd.f32 %v985, %v913
        %v1002 = vadd.f32 %v986, %v914
        %v1003 = vadd.f32 %v987, %v915
        %v1004 = vadd.f32 %v988, %v916
        %v1005 = vadd.f32 %v989, %v917
        %v1006 = vadd.f32 %v990, %v918
        %1007 = vst [vmem:[#allocation2] sm:$0xff] %v991
        %1008 = vst [vmem:[#allocation2 + $0x8] sm:$0xff] %v992
        %1009 = vst [vmem:[#allocation2 + $0x10] sm:$0xff] %v993
        %1010 = vst [vmem:[#allocation2 + $0x18] sm:$0xff] %v994
        %1011 = vst [vmem:[#allocation2 + $0x20] sm:$0xff] %v995
        %1012 = vst [vmem:[#allocation2 + $0x28] sm:$0xff] %v996
        %1013 = vst [vmem:[#allocation2 + $0x30] sm:$0xff] %v997
        %1014 = vst [vmem:[#allocation2 + $0x38] sm:$0xff] %v998
        %1015 = vst [vmem:[#allocation2 + $0x40] sm:$0xff] %v999
        %1016 = vst [vmem:[#allocation2 + $0x48] sm:$0xff] %v1000
        %1017 = vst [vmem:[#allocation2 + $0x50] sm:$0xff] %v1001
        %1018 = vst [vmem:[#allocation2 + $0x58] sm:$0xff] %v1002
        %1019 = vst [vmem:[#allocation2 + $0x60] sm:$0xff] %v1003
        %1020 = vst [vmem:[#allocation2 + $0x68] sm:$0xff] %v1004
        %1021 = vst [vmem:[#allocation2 + $0x70] sm:$0xff] %v1005
        %1022 = vst [vmem:[#allocation2 + $0x78] sm:$0xff] %v1006
        %v1023 = vld [vmem:[#allocation3] sm:$0xff]
        %v1024 = vld [vmem:[#allocation3 + $0x8] sm:$0xff]
        %v1025 = vld [vmem:[#allocation3 + $0x10] sm:$0xff]
        %v1026 = vld [vmem:[#allocation3 + $0x18] sm:$0xff]
        %v1027 = vld [vmem:[#allocation3 + $0x20] sm:$0xff]
        %v1028 = vld [vmem:[#allocation3 + $0x28] sm:$0xff]
        %v1029 = vld [vmem:[#allocation3 + $0x30] sm:$0xff]
        %v1030 = vld [vmem:[#allocation3 + $0x38] sm:$0xff]
        %v1031 = vld [vmem:[#allocation3 + $0x40] sm:$0xff]
        %v1032 = vld [vmem:[#allocation3 + $0x48] sm:$0xff]
        %v1033 = vld [vmem:[#allocation3 + $0x50] sm:$0xff]
        %v1034 = vld [vmem:[#allocation3 + $0x58] sm:$0xff]
        %v1035 = vld [vmem:[#allocation3 + $0x60] sm:$0xff]
        %v1036 = vld [vmem:[#allocation3 + $0x68] sm:$0xff]
        %v1037 = vld [vmem:[#allocation3 + $0x70] sm:$0xff]
        %v1038 = vld [vmem:[#allocation3 + $0x78] sm:$0xff]
        %v1039 = vmax.f32 %v1023, %v919
        %v1040 = vmax.f32 %v1024, %v920
        %v1041 = vmax.f32 %v1025, %v921
        %v1042 = vmax.f32 %v1026, %v922
        %v1043 = vmax.f32 %v1027, %v923
        %v1044 = vmax.f32 %v1028, %v924
        %v1045 = vmax.f32 %v1029, %v925
        %v1046 = vmax.f32 %v1030, %v926
        %v1047 = vmax.f32 %v1031, %v927
        %v1048 = vmax.f32 %v1032, %v928
        %v1049 = vmax.f32 %v1033, %v929
        %v1050 = vmax.f32 %v1034, %v930
        %v1051 = vmax.f32 %v1035, %v931
        %v1052 = vmax.f32 %v1036, %v932
        %v1053 = vmax.f32 %v1037, %v933
        %v1054 = vmax.f32 %v1038, %v934
        %1055 = vst [vmem:[#allocation3] sm:$0xff] %v1039
        %1056 = vst [vmem:[#allocation3 + $0x8] sm:$0xff] %v1040
        %1057 = vst [vmem:[#allocation3 + $0x10] sm:$0xff] %v1041
        %1058 = vst [vmem:[#allocation3 + $0x18] sm:$0xff] %v1042
        %1059 = vst [vmem:[#allocation3 + $0x20] sm:$0xff] %v1043
        %1060 = vst [vmem:[#allocation3 + $0x28] sm:$0xff] %v1044
        %1061 = vst [vmem:[#allocation3 + $0x30] sm:$0xff] %v1045
        %1062 = vst [vmem:[#allocation3 + $0x38] sm:$0xff] %v1046
        %1063 = vst [vmem:[#allocation3 + $0x40] sm:$0xff] %v1047
        %1064 = vst [vmem:[#allocation3 + $0x48] sm:$0xff] %v1048
        %1065 = vst [vmem:[#allocation3 + $0x50] sm:$0xff] %v1049
        %1066 = vst [vmem:[#allocation3 + $0x58] sm:$0xff] %v1050
        %1067 = vst [vmem:[#allocation3 + $0x60] sm:$0xff] %v1051
        %1068 = vst [vmem:[#allocation3 + $0x68] sm:$0xff] %v1052
        %1069 = vst [vmem:[#allocation3 + $0x70] sm:$0xff] %v1053
        %1070 = vst [vmem:[#allocation3 + $0x78] sm:$0xff] %v1054
      $region40: #{channel_attention.2} parent=31 // pred_fallthru
        _
      // Predicated region
      $region41: #{channel_attention.2} parent=31 // pred_check
        %p1071 = pneg %p935
      $region42: #{channel_attention.2} parent=31 // pred_check_branch
        %1073 = sbr.rel (%p1071) target = $region44
      $region43: #{channel_attention.2} parent=31 // pred_region
        %v1074 = vld [vmem:[#allocation2] sm:$0xff]
        %v1075 = vld [vmem:[#allocation2 + $0x8] sm:$0xff]
        %v1076 = vld [vmem:[#allocation2 + $0x10] sm:$0xff]
        %v1077 = vld [vmem:[#allocation2 + $0x18] sm:$0xff]
        %v1078 = vld [vmem:[#allocation2 + $0x20] sm:$0xff]
        %v1079 = vld [vmem:[#allocation2 + $0x28] sm:$0xff]
        %v1080 = vld [vmem:[#allocation2 + $0x30] sm:$0xff]
        %v1081 = vld [vmem:[#allocation2 + $0x38] sm:$0xff]
        %v1082 = vld [vmem:[#allocation2 + $0x40] sm:$0xff]
        %v1083 = vld [vmem:[#allocation2 + $0x48] sm:$0xff]
        %v1084 = vld [vmem:[#allocation2 + $0x50] sm:$0xff]
        %v1085 = vld [vmem:[#allocation2 + $0x58] sm:$0xff]
        %v1086 = vld [vmem:[#allocation2 + $0x60] sm:$0xff]
        %v1087 = vld [vmem:[#allocation2 + $0x68] sm:$0xff]
        %v1088 = vld [vmem:[#allocation2 + $0x70] sm:$0xff]
        %v1089 = vld [vmem:[#allocation2 + $0x78] sm:$0xff]
        %1090 = vadd.xlane.f32.xlu0 %v1074
        %v1091 = vpop.xlane.xlu0 %1090
        %1092 = vadd.xlane.f32.xlu0 %v1075
        %v1093 = vpop.xlane.xlu0 %1092
        %1094 = vadd.xlane.f32.xlu0 %v1076
        %v1095 = vpop.xlane.xlu0 %1094
        %1096 = vadd.xlane.f32.xlu0 %v1077
        %v1097 = vpop.xlane.xlu0 %1096
        %1098 = vadd.xlane.f32.xlu0 %v1078
        %v1099 = vpop.xlane.xlu0 %1098
        %1100 = vadd.xlane.f32.xlu0 %v1079
        %v1101 = vpop.xlane.xlu0 %1100
        %1102 = vadd.xlane.f32.xlu0 %v1080
        %v1103 = vpop.xlane.xlu0 %1102
        %1104 = vadd.xlane.f32.xlu0 %v1081
        %v1105 = vpop.xlane.xlu0 %1104
        %1106 = vadd.xlane.f32.xlu0 %v1082
        %v1107 = vpop.xlane.xlu0 %1106
        %1108 = vadd.xlane.f32.xlu0 %v1083
        %v1109 = vpop.xlane.xlu0 %1108
        %1110 = vadd.xlane.f32.xlu0 %v1084
        %v1111 = vpop.xlane.xlu0 %1110
        %1112 = vadd.xlane.f32.xlu0 %v1085
        %v1113 = vpop.xlane.xlu0 %1112
        %1114 = vadd.xlane.f32.xlu0 %v1086
        %v1115 = vpop.xlane.xlu0 %1114
        %1116 = vadd.xlane.f32.xlu0 %v1087
        %v1117 = vpop.xlane.xlu0 %1116
        %1118 = vadd.xlane.f32.xlu0 %v1088
        %v1119 = vpop.xlane.xlu0 %1118
        %1120 = vadd.xlane.f32.xlu0 %v1089
        %v1121 = vpop.xlane.xlu0 %1120
        %v1122 = vmul.f32 %v1091, 0.00048828125
        %v1123 = vmul.f32 %v1093, 0.00048828125
        %v1124 = vmul.f32 %v1095, 0.00048828125
        %v1125 = vmul.f32 %v1097, 0.00048828125
        %v1126 = vmul.f32 %v1099, 0.00048828125
        %v1127 = vmul.f32 %v1101, 0.00048828125
        %v1128 = vmul.f32 %v1103, 0.00048828125
        %v1129 = vmul.f32 %v1105, 0.00048828125
        %v1130 = vmul.f32 %v1107, 0.00048828125
        %v1131 = vmul.f32 %v1109, 0.00048828125
        %v1132 = vmul.f32 %v1111, 0.00048828125
        %v1133 = vmul.f32 %v1113, 0.00048828125
        %v1134 = vmul.f32 %v1115, 0.00048828125
        %v1135 = vmul.f32 %v1117, 0.00048828125
        %v1136 = vmul.f32 %v1119, 0.00048828125
        %v1137 = vmul.f32 %v1121, 0.00048828125
        %v1138 = vld [vmem:[#allocation3] sm:$0xff]
        %v1139 = vld [vmem:[#allocation3 + $0x8] sm:$0xff]
        %v1140 = vld [vmem:[#allocation3 + $0x10] sm:$0xff]
        %v1141 = vld [vmem:[#allocation3 + $0x18] sm:$0xff]
        %v1142 = vld [vmem:[#allocation3 + $0x20] sm:$0xff]
        %v1143 = vld [vmem:[#allocation3 + $0x28] sm:$0xff]
        %v1144 = vld [vmem:[#allocation3 + $0x30] sm:$0xff]
        %v1145 = vld [vmem:[#allocation3 + $0x38] sm:$0xff]
        %v1146 = vld [vmem:[#allocation3 + $0x40] sm:$0xff]
        %v1147 = vld [vmem:[#allocation3 + $0x48] sm:$0xff]
        %v1148 = vld [vmem:[#allocation3 + $0x50] sm:$0xff]
        %v1149 = vld [vmem:[#allocation3 + $0x58] sm:$0xff]
        %v1150 = vld [vmem:[#allocation3 + $0x60] sm:$0xff]
        %v1151 = vld [vmem:[#allocation3 + $0x68] sm:$0xff]
        %v1152 = vld [vmem:[#allocation3 + $0x70] sm:$0xff]
        %v1153 = vld [vmem:[#allocation3 + $0x78] sm:$0xff]
        %1154 = vmax.xlane.f32.xlu0 %v1138
        %v1155 = vpop.xlane.xlu0 %1154
        %1156 = vmax.xlane.f32.xlu0 %v1139
        %v1157 = vpop.xlane.xlu0 %1156
        %1158 = vmax.xlane.f32.xlu0 %v1140
        %v1159 = vpop.xlane.xlu0 %1158
        %1160 = vmax.xlane.f32.xlu0 %v1141
        %v1161 = vpop.xlane.xlu0 %1160
        %1162 = vmax.xlane.f32.xlu0 %v1142
        %v1163 = vpop.xlane.xlu0 %1162
        %1164 = vmax.xlane.f32.xlu0 %v1143
        %v1165 = vpop.xlane.xlu0 %1164
        %1166 = vmax.xlane.f32.xlu0 %v1144
        %v1167 = vpop.xlane.xlu0 %1166
        %1168 = vmax.xlane.f32.xlu0 %v1145
        %v1169 = vpop.xlane.xlu0 %1168
        %1170 = vmax.xlane.f32.xlu0 %v1146
        %v1171 = vpop.xlane.xlu0 %1170
        %1172 = vmax.xlane.f32.xlu0 %v1147
        %v1173 = vpop.xlane.xlu0 %1172
        %1174 = vmax.xlane.f32.xlu0 %v1148
        %v1175 = vpop.xlane.xlu0 %1174
        %1176 = vmax.xlane.f32.xlu0 %v1149
        %v1177 = vpop.xlane.xlu0 %1176
        %1178 = vmax.xlane.f32.xlu0 %v1150
        %v1179 = vpop.xlane.xlu0 %1178
        %1180 = vmax.xlane.f32.xlu0 %v1151
        %v1181 = vpop.xlane.xlu0 %1180
        %1182 = vmax.xlane.f32.xlu0 %v1152
        %v1183 = vpop.xlane.xlu0 %1182
        %1184 = vmax.xlane.f32.xlu0 %v1153
        %v1185 = vpop.xlane.xlu0 %1184
        %v1186 = vld [vmem:[%s1] sm:$0xff]
        %v1187 = vld [vmem:[%s2] sm:$0xff]
        %v1188 = vld [vmem:[%s2 + $0x8] sm:$0xff]
        %v1189 = vld [vmem:[%s2 + $0x10] sm:$0xff]
        %v1190 = vld [vmem:[%s2 + $0x18] sm:$0xff]
        %v1191 = vld [vmem:[%s2 + $0x20] sm:$0xff]
        %v1192 = vld [vmem:[%s2 + $0x28] sm:$0xff]
        %v1193 = vld [vmem:[%s2 + $0x30] sm:$0xff]
        %v1194 = vld [vmem:[%s2 + $0x38] sm:$0xff]
        %v1195 = vld [vmem:[%s2 + $0x40] sm:$0xff]
        %v1196 = vld [vmem:[%s2 + $0x48] sm:$0xff]
        %v1197 = vld [vmem:[%s2 + $0x50] sm:$0xff]
        %v1198 = vld [vmem:[%s2 + $0x58] sm:$0xff]
        %v1199 = vld [vmem:[%s2 + $0x60] sm:$0xff]
        %v1200 = vld [vmem:[%s2 + $0x68] sm:$0xff]
        %v1201 = vld [vmem:[%s2 + $0x70] sm:$0xff]
        %v1202 = vld [vmem:[%s2 + $0x78] sm:$0xff]
        %1203 = vmatprep.subr.mxu0 0.0
        %1204 = vmatpush1.msra.mxu0 %v1122
        %1205 = vmatprep.subr.mxu0 0.0
        %1206 = vmatpush1.msra.mxu0 %v1123
        %1207 = vmatprep.subr.mxu0 0.0
        %1208 = vmatpush1.msra.mxu0 %v1124
        %1209 = vmatprep.subr.mxu0 0.0
        %1210 = vmatpush1.msra.mxu0 %v1125
        %1211 = vmatprep.subr.mxu0 0.0
        %1212 = vmatpush1.msra.mxu0 %v1126
        %1213 = vmatprep.subr.mxu0 0.0
        %1214 = vmatpush1.msra.mxu0 %v1127
        %1215 = vmatprep.subr.mxu0 0.0
        %1216 = vmatpush1.msra.mxu0 %v1128
        %1217 = vmatprep.subr.mxu0 0.0
        %1218 = vmatpush1.msra.mxu0 %v1129
        %1219 = vmatprep.subr.mxu0 0.0
        %1220 = vmatpush1.msra.mxu0 %v1130
        %1221 = vmatprep.subr.mxu0 0.0
        %1222 = vmatpush1.msra.mxu0 %v1131
        %1223 = vmatprep.subr.mxu0 0.0
        %1224 = vmatpush1.msra.mxu0 %v1132
        %1225 = vmatprep.subr.mxu0 0.0
        %1226 = vmatpush1.msra.mxu0 %v1133
        %1227 = vmatprep.subr.mxu0 0.0
        %1228 = vmatpush1.msra.mxu0 %v1134
        %1229 = vmatprep.subr.mxu0 0.0
        %1230 = vmatpush1.msra.mxu0 %v1135
        %1231 = vmatprep.subr.mxu0 0.0
        %1232 = vmatpush1.msra.mxu0 %v1136
        %1233 = vmatprep.subr.mxu0 0.0
        %1234 = vmatpush1.msra.mxu0 %v1137
        %1235 = vmatprep.subr.mxu0 0.0
        %1236 = vmatpush1.msra.mxu0 0.0
        %1237 = vmatprep.subr.mxu0 0.0
        %1238 = vmatpush1.msra.mxu0 0.0
        %1239 = vmatprep.subr.mxu0 0.0
        %1240 = vmatpush1.msra.mxu0 0.0
        %1241 = vmatprep.subr.mxu0 0.0
        %1242 = vmatpush1.msra.mxu0 0.0
        %1243 = vmatprep.subr.mxu0 0.0
        %1244 = vmatpush1.msra.mxu0 0.0
        %1245 = vmatprep.subr.mxu0 0.0
        %1246 = vmatpush1.msra.mxu0 0.0
        %1247 = vmatprep.subr.mxu0 0.0
        %1248 = vmatpush1.msra.mxu0 0.0
        %1249 = vmatprep.subr.mxu0 0.0
        %1250 = vmatpush1.msra.mxu0 0.0
        %1251 = vmatprep.subr.mxu0 0.0
        %1252 = vmatpush1.msra.mxu0 0.0
        %1253 = vmatprep.subr.mxu0 0.0
        %1254 = vmatpush1.msra.mxu0 0.0
        %1255 = vmatprep.subr.mxu0 0.0
        %1256 = vmatpush1.msra.mxu0 0.0
        %1257 = vmatprep.subr.mxu0 0.0
        %1258 = vmatpush1.msra.mxu0 0.0
        %1259 = vmatprep.subr.mxu0 0.0
        %1260 = vmatpush1.msra.mxu0 0.0
        %1261 = vmatprep.subr.mxu0 0.0
        %1262 = vmatpush1.msra.mxu0 0.0
        %1263 = vmatprep.subr.mxu0 0.0
        %1264 = vmatpush1.msra.mxu0 0.0
        %1265 = vmatprep.subr.mxu0 0.0
        %1266 = vmatpush1.msra.mxu0 0.0
        %1267 = vmatprep.mubr.f32.mxu0 0.0
        %1268 = vmatmul.mubr.f32.gmra.mrb[0].mxu0 %v1186
        %v1269 = vpop.f32.mrb[0].mxu0
        %v1270 = vadd.f32 0.0, %v1269
        %v1271 = vpop.f32.mrb[0].mxu0
        %1272 = vdwg.mxu0
        %v1273 = vmax.f32 %v1270, 0.0
        %1274 = vmatprep.subr.mxu0 0.0
        %1275 = vmatpush1.msra.mxu0 %v1155
        %1276 = vmatprep.subr.mxu0 0.0
        %1277 = vmatpush1.msra.mxu0 %v1157
        %1278 = vmatprep.subr.mxu0 0.0
        %1279 = vmatpush1.msra.mxu0 %v1159
        %1280 = vmatprep.subr.mxu0 0.0
        %1281 = vmatpush1.msra.mxu0 %v1161
        %1282 = vmatprep.subr.mxu0 0.0
        %1283 = vmatpush1.msra.mxu0 %v1163
        %1284 = vmatprep.subr.mxu0 0.0
        %1285 = vmatpush1.msra.mxu0 %v1165
        %1286 = vmatprep.subr.mxu0 0.0
        %1287 = vmatpush1.msra.mxu0 %v1167
        %1288 = vmatprep.subr.mxu0 0.0
        %1289 = vmatpush1.msra.mxu0 %v1169
        %1290 = vmatprep.subr.mxu0 0.0
        %1291 = vmatpush1.msra.mxu0 %v1171
        %1292 = vmatprep.subr.mxu0 0.0
        %1293 = vmatpush1.msra.mxu0 %v1173
        %1294 = vmatprep.subr.mxu0 0.0
        %1295 = vmatpush1.msra.mxu0 %v1175
        %1296 = vmatprep.subr.mxu0 0.0
        %1297 = vmatpush1.msra.mxu0 %v1177
        %1298 = vmatprep.subr.mxu0 0.0
        %1299 = vmatpush1.msra.mxu0 %v1179
        %1300 = vmatprep.subr.mxu0 0.0
        %1301 = vmatpush1.msra.mxu0 %v1181
        %1302 = vmatprep.subr.mxu0 0.0
        %1303 = vmatpush1.msra.mxu0 %v1183
        %1304 = vmatprep.subr.mxu0 0.0
        %1305 = vmatpush1.msra.mxu0 %v1185
        %1306 = vmatprep.subr.mxu0 0.0
        %1307 = vmatpush1.msra.mxu0 0.0
        %1308 = vmatprep.subr.mxu0 0.0
        %1309 = vmatpush1.msra.mxu0 0.0
        %1310 = vmatprep.subr.mxu0 0.0
        %1311 = vmatpush1.msra.mxu0 0.0
        %1312 = vmatprep.subr.mxu0 0.0
        %1313 = vmatpush1.msra.mxu0 0.0
        %1314 = vmatprep.subr.mxu0 0.0
        %1315 = vmatpush1.msra.mxu0 0.0
        %1316 = vmatprep.subr.mxu0 0.0
        %1317 = vmatpush1.msra.mxu0 0.0
        %1318 = vmatprep.subr.mxu0 0.0
        %1319 = vmatpush1.msra.mxu0 0.0
        %1320 = vmatprep.subr.mxu0 0.0
        %1321 = vmatpush1.msra.mxu0 0.0
        %1322 = vmatprep.subr.mxu0 0.0
        %1323 = vmatpush1.msra.mxu0 0.0
        %1324 = vmatprep.subr.mxu0 0.0
        %1325 = vmatpush1.msra.mxu0 0.0
        %1326 = vmatprep.subr.mxu0 0.0
        %1327 = vmatpush1.msra.mxu0 0.0
        %1328 = vmatprep.subr.mxu0 0.0
        %1329 = vmatpush1.msra.mxu0 0.0
        %1330 = vmatprep.subr.mxu0 0.0
        %1331 = vmatpush1.msra.mxu0 0.0
        %1332 = vmatprep.subr.mxu0 0.0
        %1333 = vmatpush1.msra.mxu0 0.0
        %1334 = vmatprep.subr.mxu0 0.0
        %1335 = vmatpush1.msra.mxu0 0.0
        %1336 = vmatprep.subr.mxu0 0.0
        %1337 = vmatpush1.msra.mxu0 0.0
        %1338 = vmatprep.mubr.f32.mxu0 0.0
        %1339 = vmatmul.mubr.f32.gmra.mrb[0].mxu0 %v1186
        %v1340 = vpop.f32.mrb[0].mxu0
        %v1341 = vadd.f32 0.0, %v1340
        %v1342 = vpop.f32.mrb[0].mxu0
        %1343 = vdwg.mxu0
        %v1344 = vmax.f32 %v1341, 0.0
        %vm1345 = vcmask 64512
        %v1347 = vsel %vm1345, %v1187, 0
        %v1350 = vsel %vm1345, %v1188, 0
        %v1353 = vsel %vm1345, %v1189, 0
        %v1356 = vsel %vm1345, %v1190, 0
        %v1359 = vsel %vm1345, %v1191, 0
        %v1362 = vsel %vm1345, %v1192, 0
        %v1365 = vsel %vm1345, %v1193, 0
        %v1368 = vsel %vm1345, %v1194, 0
        %v1371 = vsel %vm1345, %v1195, 0
        %v1374 = vsel %vm1345, %v1196, 0
        %v1377 = vsel %vm1345, %v1197, 0
        %v1380 = vsel %vm1345, %v1198, 0
        %v1383 = vsel %vm1345, %v1199, 0
        %v1386 = vsel %vm1345, %v1200, 0
        %v1389 = vsel %vm1345, %v1201, 0
        %v1392 = vsel %vm1345, %v1202, 0
        %1394 = vmatprep.subr.mxu0 0.0
        %1395 = vmatpush1.msra.mxu0 %v1344
        %1396 = vmatprep.subr.mxu0 0.0
        %1397 = vmatpush1.msra.mxu0 0.0
        %1398 = vmatprep.subr.mxu0 0.0
        %1399 = vmatpush1.msra.mxu0 0.0
        %1400 = vmatprep.subr.mxu0 0.0
        %1401 = vmatpush1.msra.mxu0 0.0
        %1402 = vmatprep.subr.mxu0 0.0
        %1403 = vmatpush1.msra.mxu0 0.0
        %1404 = vmatprep.subr.mxu0 0.0
        %1405 = vmatpush1.msra.mxu0 0.0
        %1406 = vmatprep.subr.mxu0 0.0
        %1407 = vmatpush1.msra.mxu0 0.0
        %1408 = vmatprep.subr.mxu0 0.0
        %1409 = vmatpush1.msra.mxu0 0.0
        %1410 = vmatprep.subr.mxu0 0.0
        %1411 = vmatpush1.msra.mxu0 0.0
        %1412 = vmatprep.subr.mxu0 0.0
        %1413 = vmatpush1.msra.mxu0 0.0
        %1414 = vmatprep.subr.mxu0 0.0
        %1415 = vmatpush1.msra.mxu0 0.0
        %1416 = vmatprep.subr.mxu0 0.0
        %1417 = vmatpush1.msra.mxu0 0.0
        %1418 = vmatprep.subr.mxu0 0.0
        %1419 = vmatpush1.msra.mxu0 0.0
        %1420 = vmatprep.subr.mxu0 0.0
        %1421 = vmatpush1.msra.mxu0 0.0
        %1422 = vmatprep.subr.mxu0 0.0
        %1423 = vmatpush1.msra.mxu0 0.0
        %1424 = vmatprep.subr.mxu0 0.0
        %1425 = vmatpush1.msra.mxu0 0.0
        %1426 = vmatprep.subr.mxu0 0.0
        %1427 = vmatpush1.msra.mxu0 0.0
        %1428 = vmatprep.subr.mxu0 0.0
        %1429 = vmatpush1.msra.mxu0 0.0
        %1430 = vmatprep.subr.mxu0 0.0
        %1431 = vmatpush1.msra.mxu0 0.0
        %1432 = vmatprep.subr.mxu0 0.0
        %1433 = vmatpush1.msra.mxu0 0.0
        %1434 = vmatprep.subr.mxu0 0.0
        %1435 = vmatpush1.msra.mxu0 0.0
        %1436 = vmatprep.subr.mxu0 0.0
        %1437 = vmatpush1.msra.mxu0 0.0
        %1438 = vmatprep.subr.mxu0 0.0
        %1439 = vmatpush1.msra.mxu0 0.0
        %1440 = vmatprep.subr.mxu0 0.0
        %1441 = vmatpush1.msra.mxu0 0.0
        %1442 = vmatprep.subr.mxu0 0.0
        %1443 = vmatpush1.msra.mxu0 0.0
        %1444 = vmatprep.subr.mxu0 0.0
        %1445 = vmatpush1.msra.mxu0 0.0
        %1446 = vmatprep.subr.mxu0 0.0
        %1447 = vmatpush1.msra.mxu0 0.0
        %1448 = vmatprep.subr.mxu0 0.0
        %1449 = vmatpush1.msra.mxu0 0.0
        %1450 = vmatprep.subr.mxu0 0.0
        %1451 = vmatpush1.msra.mxu0 0.0
        %1452 = vmatprep.subr.mxu0 0.0
        %1453 = vmatpush1.msra.mxu0 0.0
        %1454 = vmatprep.subr.mxu0 0.0
        %1455 = vmatpush1.msra.mxu0 0.0
        %1456 = vmatprep.subr.mxu0 0.0
        %1457 = vmatpush1.msra.mxu0 0.0
        %1458 = vmatprep.mubr.f32.mxu0 0.0
        %1459 = vmatmul.mubr.f32.gmra.mrb[0].mxu0 %v1347
        %v1460 = vpop.f32.mrb[0].mxu0
        %v1461 = vadd.f32 0.0, %v1460
        %v1462 = vpop.f32.mrb[0].mxu0
        %1463 = vmatprep.mubr.f32.mxu0 0.0
        %1464 = vmatmul.mubr.f32.gmra.mrb[0].mxu0 %v1350
        %v1465 = vpop.f32.mrb[0].mxu0
        %v1466 = vadd.f32 0.0, %v1465
        %v1467 = vpop.f32.mrb[0].mxu0
        %1468 = vmatprep.mubr.f32.mxu0 0.0
        %1469 = vmatmul.mubr.f32.gmra.mrb[0].mxu0 %v1353
        %v1470 = vpop.f32.mrb[0].mxu0
        %v1471 = vadd.f32 0.0, %v1470
        %v1472 = vpop.f32.mrb[0].mxu0
        %1473 = vmatprep.mubr.f32.mxu0 0.0
        %1474 = vmatmul.mubr.f32.gmra.mrb[0].mxu0 %v1356
        %v1475 = vpop.f32.mrb[0].mxu0
        %v1476 = vadd.f32 0.0, %v1475
        %v1477 = vpop.f32.mrb[0].mxu0
        %1478 = vmatprep.mubr.f32.mxu0 0.0
        %1479 = vmatmul.mubr.f32.gmra.mrb[0].mxu0 %v1359
        %v1480 = vpop.f32.mrb[0].mxu0
        %v1481 = vadd.f32 0.0, %v1480
        %v1482 = vpop.f32.mrb[0].mxu0
        %1483 = vmatprep.mubr.f32.mxu0 0.0
        %1484 = vmatmul.mubr.f32.gmra.mrb[0].mxu0 %v1362
        %v1485 = vpop.f32.mrb[0].mxu0
        %v1486 = vadd.f32 0.0, %v1485
        %v1487 = vpop.f32.mrb[0].mxu0
        %1488 = vmatprep.mubr.f32.mxu0 0.0
        %1489 = vmatmul.mubr.f32.gmra.mrb[0].mxu0 %v1365
        %v1490 = vpop.f32.mrb[0].mxu0
        %v1491 = vadd.f32 0.0, %v1490
        %v1492 = vpop.f32.mrb[0].mxu0
        %1493 = vmatprep.mubr.f32.mxu0 0.0
        %1494 = vmatmul.mubr.f32.gmra.mrb[0].mxu0 %v1368
        %v1495 = vpop.f32.mrb[0].mxu0
        %v1496 = vadd.f32 0.0, %v1495
        %v1497 = vpop.f32.mrb[0].mxu0
        %1498 = vmatprep.mubr.f32.mxu0 0.0
        %1499 = vmatmul.mubr.f32.gmra.mrb[0].mxu0 %v1371
        %v1500 = vpop.f32.mrb[0].mxu0
        %v1501 = vadd.f32 0.0, %v1500
        %v1502 = vpop.f32.mrb[0].mxu0
        %1503 = vmatprep.mubr.f32.mxu0 0.0
        %1504 = vmatmul.mubr.f32.gmra.mrb[0].mxu0 %v1374
        %v1505 = vpop.f32.mrb[0].mxu0
        %v1506 = vadd.f32 0.0, %v1505
        %v1507 = vpop.f32.mrb[0].mxu0
        %1508 = vmatprep.mubr.f32.mxu0 0.0
        %1509 = vmatmul.mubr.f32.gmra.mrb[0].mxu0 %v1377
        %v1510 = vpop.f32.mrb[0].mxu0
        %v1511 = vadd.f32 0.0, %v1510
        %v1512 = vpop.f32.mrb[0].mxu0
        %1513 = vmatprep.mubr.f32.mxu0 0.0
        %1514 = vmatmul.mubr.f32.gmra.mrb[0].mxu0 %v1380
        %v1515 = vpop.f32.mrb[0].mxu0
        %v1516 = vadd.f32 0.0, %v1515
        %v1517 = vpop.f32.mrb[0].mxu0
        %1518 = vmatprep.mubr.f32.mxu0 0.0
        %1519 = vmatmul.mubr.f32.gmra.mrb[0].mxu0 %v1383
        %v1520 = vpop.f32.mrb[0].mxu0
        %v1521 = vadd.f32 0.0, %v1520
        %v1522 = vpop.f32.mrb[0].mxu0
        %1523 = vmatprep.mubr.f32.mxu0 0.0
        %1524 = vmatmul.mubr.f32.gmra.mrb[0].mxu0 %v1386
        %v1525 = vpop.f32.mrb[0].mxu0
        %v1526 = vadd.f32 0.0, %v1525
        %v1527 = vpop.f32.mrb[0].mxu0
        %1528 = vmatprep.mubr.f32.mxu0 0.0
        %1529 = vmatmul.mubr.f32.gmra.mrb[0].mxu0 %v1389
        %v1530 = vpop.f32.mrb[0].mxu0
        %v1531 = vadd.f32 0.0, %v1530
        %v1532 = vpop.f32.mrb[0].mxu0
        %1533 = vmatprep.mubr.f32.mxu0 0.0
        %1534 = vmatmul.mubr.f32.gmra.mrb[0].mxu0 %v1392
        %v1535 = vpop.f32.mrb[0].mxu0
        %v1536 = vadd.f32 0.0, %v1535
        %v1537 = vpop.f32.mrb[0].mxu0
        %1538 = vdwg.mxu0
        %1539 = vmatprep.subr.mxu0 0.0
        %1540 = vmatpush1.msra.mxu0 %v1273
        %1541 = vmatprep.subr.mxu0 0.0
        %1542 = vmatpush1.msra.mxu0 0.0
        %1543 = vmatprep.subr.mxu0 0.0
        %1544 = vmatpush1.msra.mxu0 0.0
        %1545 = vmatprep.subr.mxu0 0.0
        %1546 = vmatpush1.msra.mxu0 0.0
        %1547 = vmatprep.subr.mxu0 0.0
        %1548 = vmatpush1.msra.mxu0 0.0
        %1549 = vmatprep.subr.mxu0 0.0
        %1550 = vmatpush1.msra.mxu0 0.0
        %1551 = vmatprep.subr.mxu0 0.0
        %1552 = vmatpush1.msra.mxu0 0.0
        %1553 = vmatprep.subr.mxu0 0.0
        %1554 = vmatpush1.msra.mxu0 0.0
        %1555 = vmatprep.subr.mxu0 0.0
        %1556 = vmatpush1.msra.mxu0 0.0
        %1557 = vmatprep.subr.mxu0 0.0
        %1558 = vmatpush1.msra.mxu0 0.0
        %1559 = vmatprep.subr.mxu0 0.0
        %1560 = vmatpush1.msra.mxu0 0.0
        %1561 = vmatprep.subr.mxu0 0.0
        %1562 = vmatpush1.msra.mxu0 0.0
        %1563 = vmatprep.subr.mxu0 0.0
        %1564 = vmatpush1.msra.mxu0 0.0
        %1565 = vmatprep.subr.mxu0 0.0
        %1566 = vmatpush1.msra.mxu0 0.0
        %1567 = vmatprep.subr.mxu0 0.0
        %1568 = vmatpush1.msra.mxu0 0.0
        %1569 = vmatprep.subr.mxu0 0.0
        %1570 = vmatpush1.msra.mxu0 0.0
        %1571 = vmatprep.subr.mxu0 0.0
        %1572 = vmatpush1.msra.mxu0 0.0
        %1573 = vmatprep.subr.mxu0 0.0
        %1574 = vmatpush1.msra.mxu0 0.0
        %1575 = vmatprep.subr.mxu0 0.0
        %1576 = vmatpush1.msra.mxu0 0.0
        %1577 = vmatprep.subr.mxu0 0.0
        %1578 = vmatpush1.msra.mxu0 0.0
        %1579 = vmatprep.subr.mxu0 0.0
        %1580 = vmatpush1.msra.mxu0 0.0
        %1581 = vmatprep.subr.mxu0 0.0
        %1582 = vmatpush1.msra.mxu0 0.0
        %1583 = vmatprep.subr.mxu0 0.0
        %1584 = vmatpush1.msra.mxu0 0.0
        %1585 = vmatprep.subr.mxu0 0.0
        %1586 = vmatpush1.msra.mxu0 0.0
        %1587 = vmatprep.subr.mxu0 0.0
        %1588 = vmatpush1.msra.mxu0 0.0
        %1589 = vmatprep.subr.mxu0 0.0
        %1590 = vmatpush1.msra.mxu0 0.0
        %1591 = vmatprep.subr.mxu0 0.0
        %1592 = vmatpush1.msra.mxu0 0.0
        %1593 = vmatprep.subr.mxu0 0.0
        %1594 = vmatpush1.msra.mxu0 0.0
        %1595 = vmatprep.subr.mxu0 0.0
        %1596 = vmatpush1.msra.mxu0 0.0
        %1597 = vmatprep.subr.mxu0 0.0
        %1598 = vmatpush1.msra.mxu0 0.0
        %1599 = vmatprep.subr.mxu0 0.0
        %1600 = vmatpush1.msra.mxu0 0.0
        %1601 = vmatprep.subr.mxu0 0.0
        %1602 = vmatpush1.msra.mxu0 0.0
        %1603 = vmatprep.mubr.f32.mxu0 0.0
        %1604 = vmatmul.mubr.f32.gmra.mrb[0].mxu0 %v1347
        %v1605 = vpop.f32.mrb[0].mxu0
        %v1606 = vadd.f32 %v1461, %v1605
        %v1607 = vpop.f32.mrb[0].mxu0
        %1608 = vmatprep.mubr.f32.mxu0 0.0
        %1609 = vmatmul.mubr.f32.gmra.mrb[0].mxu0 %v1350
        %v1610 = vpop.f32.mrb[0].mxu0
        %v1611 = vadd.f32 %v1466, %v1610
        %v1612 = vpop.f32.mrb[0].mxu0
        %1613 = vmatprep.mubr.f32.mxu0 0.0
        %1614 = vmatmul.mubr.f32.gmra.mrb[0].mxu0 %v1353
        %v1615 = vpop.f32.mrb[0].mxu0
        %v1616 = vadd.f32 %v1471, %v1615
        %v1617 = vpop.f32.mrb[0].mxu0
        %1618 = vmatprep.mubr.f32.mxu0 0.0
        %1619 = vmatmul.mubr.f32.gmra.mrb[0].mxu0 %v1356
        %v1620 = vpop.f32.mrb[0].mxu0
        %v1621 = vadd.f32 %v1476, %v1620
        %v1622 = vpop.f32.mrb[0].mxu0
        %1623 = vmatprep.mubr.f32.mxu0 0.0
        %1624 = vmatmul.mubr.f32.gmra.mrb[0].mxu0 %v1359
        %v1625 = vpop.f32.mrb[0].mxu0
        %v1626 = vadd.f32 %v1481, %v1625
        %v1627 = vpop.f32.mrb[0].mxu0
        %1628 = vmatprep.mubr.f32.mxu0 0.0
        %1629 = vmatmul.mubr.f32.gmra.mrb[0].mxu0 %v1362
        %v1630 = vpop.f32.mrb[0].mxu0
        %v1631 = vadd.f32 %v1486, %v1630
        %v1632 = vpop.f32.mrb[0].mxu0
        %1633 = vmatprep.mubr.f32.mxu0 0.0
        %1634 = vmatmul.mubr.f32.gmra.mrb[0].mxu0 %v1365
        %v1635 = vpop.f32.mrb[0].mxu0
        %v1636 = vadd.f32 %v1491, %v1635
        %v1637 = vpop.f32.mrb[0].mxu0
        %1638 = vmatprep.mubr.f32.mxu0 0.0
        %1639 = vmatmul.mubr.f32.gmra.mrb[0].mxu0 %v1368
        %v1640 = vpop.f32.mrb[0].mxu0
        %v1641 = vadd.f32 %v1496, %v1640
        %v1642 = vpop.f32.mrb[0].mxu0
        %1643 = vmatprep.mubr.f32.mxu0 0.0
        %1644 = vmatmul.mubr.f32.gmra.mrb[0].mxu0 %v1371
        %v1645 = vpop.f32.mrb[0].mxu0
        %v1646 = vadd.f32 %v1501, %v1645
        %v1647 = vpop.f32.mrb[0].mxu0
        %1648 = vmatprep.mubr.f32.mxu0 0.0
        %1649 = vmatmul.mubr.f32.gmra.mrb[0].mxu0 %v1374
        %v1650 = vpop.f32.mrb[0].mxu0
        %v1651 = vadd.f32 %v1506, %v1650
        %v1652 = vpop.f32.mrb[0].mxu0
        %1653 = vmatprep.mubr.f32.mxu0 0.0
        %1654 = vmatmul.mubr.f32.gmra.mrb[0].mxu0 %v1377
        %v1655 = vpop.f32.mrb[0].mxu0
        %v1656 = vadd.f32 %v1511, %v1655
        %v1657 = vpop.f32.mrb[0].mxu0
        %1658 = vmatprep.mubr.f32.mxu0 0.0
        %1659 = vmatmul.mubr.f32.gmra.mrb[0].mxu0 %v1380
        %v1660 = vpop.f32.mrb[0].mxu0
        %v1661 = vadd.f32 %v1516, %v1660
        %v1662 = vpop.f32.mrb[0].mxu0
        %1663 = vmatprep.mubr.f32.mxu0 0.0
        %1664 = vmatmul.mubr.f32.gmra.mrb[0].mxu0 %v1383
        %v1665 = vpop.f32.mrb[0].mxu0
        %v1666 = vadd.f32 %v1521, %v1665
        %v1667 = vpop.f32.mrb[0].mxu0
        %1668 = vmatprep.mubr.f32.mxu0 0.0
        %1669 = vmatmul.mubr.f32.gmra.mrb[0].mxu0 %v1386
        %v1670 = vpop.f32.mrb[0].mxu0
        %v1671 = vadd.f32 %v1526, %v1670
        %v1672 = vpop.f32.mrb[0].mxu0
        %1673 = vmatprep.mubr.f32.mxu0 0.0
        %1674 = vmatmul.mubr.f32.gmra.mrb[0].mxu0 %v1389
        %v1675 = vpop.f32.mrb[0].mxu0
        %v1676 = vadd.f32 %v1531, %v1675
        %v1677 = vpop.f32.mrb[0].mxu0
        %1678 = vmatprep.mubr.f32.mxu0 0.0
        %1679 = vmatmul.mubr.f32.gmra.mrb[0].mxu0 %v1392
        %v1680 = vpop.f32.mrb[0].mxu0
        %v1681 = vadd.f32 %v1536, %v1680
        %v1682 = vpop.f32.mrb[0].mxu0
        %1683 = vdwg.mxu0
        %v1684 = vxor.u32 %v1606, 2147483648
        %v1685 = vxor.u32 %v1611, 2147483648
        %v1686 = vxor.u32 %v1616, 2147483648
        %v1687 = vxor.u32 %v1621, 2147483648
        %v1688 = vxor.u32 %v1626, 2147483648
        %v1689 = vxor.u32 %v1631, 2147483648
        %v1690 = vxor.u32 %v1636, 2147483648
        %v1691 = vxor.u32 %v1641, 2147483648
        %v1692 = vxor.u32 %v1646, 2147483648
        %v1693 = vxor.u32 %v1651, 2147483648
        %v1694 = vxor.u32 %v1656, 2147483648
        %v1695 = vxor.u32 %v1661, 2147483648
        %v1696 = vxor.u32 %v1666, 2147483648
        %v1697 = vxor.u32 %v1671, 2147483648
        %v1698 = vxor.u32 %v1676, 2147483648
        %v1699 = vxor.u32 %v1681, 2147483648
        %v1700 = vmul.f32 %v1684, 1.442695
        %v1701 = vpow.pop %v1700
        %v1702 = vmul.f32 %v1685, 1.442695
        %v1703 = vpow.pop %v1702
        %v1704 = vmul.f32 %v1686, 1.442695
        %v1705 = vpow.pop %v1704
        %v1706 = vmul.f32 %v1687, 1.442695
        %v1707 = vpow.pop %v1706
        %v1708 = vmul.f32 %v1688, 1.442695
        %v1709 = vpow.pop %v1708
        %v1710 = vmul.f32 %v1689, 1.442695
        %v1711 = vpow.pop %v1710
        %v1712 = vmul.f32 %v1690, 1.442695
        %v1713 = vpow.pop %v1712
        %v1714 = vmul.f32 %v1691, 1.442695
        %v1715 = vpow.pop %v1714
        %v1716 = vmul.f32 %v1692, 1.442695
        %v1717 = vpow.pop %v1716
        %v1718 = vmul.f32 %v1693, 1.442695
        %v1719 = vpow.pop %v1718
        %v1720 = vmul.f32 %v1694, 1.442695
        %v1721 = vpow.pop %v1720
        %v1722 = vmul.f32 %v1695, 1.442695
        %v1723 = vpow.pop %v1722
        %v1724 = vmul.f32 %v1696, 1.442695
        %v1725 = vpow.pop %v1724
        %v1726 = vmul.f32 %v1697, 1.442695
        %v1727 = vpow.pop %v1726
        %v1728 = vmul.f32 %v1698, 1.442695
        %v1729 = vpow.pop %v1728
        %v1730 = vmul.f32 %v1699, 1.442695
        %v1731 = vpow.pop %v1730
        %v1732 = vadd.f32 %v1701, 1.0
        %v1733 = vadd.f32 %v1703, 1.0
        %v1734 = vadd.f32 %v1705, 1.0
        %v1735 = vadd.f32 %v1707, 1.0
        %v1736 = vadd.f32 %v1709, 1.0
        %v1737 = vadd.f32 %v1711, 1.0
        %v1738 = vadd.f32 %v1713, 1.0
        %v1739 = vadd.f32 %v1715, 1.0
        %v1740 = vadd.f32 %v1717, 1.0
        %v1741 = vadd.f32 %v1719, 1.0
        %v1742 = vadd.f32 %v1721, 1.0
        %v1743 = vadd.f32 %v1723, 1.0
        %v1744 = vadd.f32 %v1725, 1.0
        %v1745 = vadd.f32 %v1727, 1.0
        %v1746 = vadd.f32 %v1729, 1.0
        %v1747 = vadd.f32 %v1731, 1.0
        %v1748 = vrcp.pop %v1732
        %v1749 = vmul.f32 1.0, %v1748
        %v1750 = vrcp.pop %v1733
        %v1751 = vmul.f32 1.0, %v1750
        %v1752 = vrcp.pop %v1734
        %v1753 = vmul.f32 1.0, %v1752
        %v1754 = vrcp.pop %v1735
        %v1755 = vmul.f32 1.0, %v1754
        %v1756 = vrcp.pop %v1736
        %v1757 = vmul.f32 1.0, %v1756
        %v1758 = vrcp.pop %v1737
        %v1759 = vmul.f32 1.0, %v1758
        %v1760 = vrcp.pop %v1738
        %v1761 = vmul.f32 1.0, %v1760
        %v1762 = vrcp.pop %v1739
        %v1763 = vmul.f32 1.0, %v1762
        %v1764 = vrcp.pop %v1740
        %v1765 = vmul.f32 1.0, %v1764
        %v1766 = vrcp.pop %v1741
        %v1767 = vmul.f32 1.0, %v1766
        %v1768 = vrcp.pop %v1742
        %v1769 = vmul.f32 1.0, %v1768
        %v1770 = vrcp.pop %v1743
        %v1771 = vmul.f32 1.0, %v1770
        %v1772 = vrcp.pop %v1744
        %v1773 = vmul.f32 1.0, %v1772
        %v1774 = vrcp.pop %v1745
        %v1775 = vmul.f32 1.0, %v1774
        %v1776 = vrcp.pop %v1746
        %v1777 = vmul.f32 1.0, %v1776
        %v1778 = vrcp.pop %v1747
        %v1779 = vmul.f32 1.0, %v1778
        %vm1780 = vcmask 7168
        %1781 = vst.msk [vmem:[%s198] sm:$0xff] %vm1780, %v1749
        %1782 = vst.msk [vmem:[%s198 + $0x8] sm:$0xff] %vm1780, %v1751
        %1783 = vst.msk [vmem:[%s198 + $0x10] sm:$0xff] %vm1780, %v1753
        %1784 = vst.msk [vmem:[%s198 + $0x18] sm:$0xff] %vm1780, %v1755
        %1785 = vst.msk [vmem:[%s198 + $0x20] sm:$0xff] %vm1780, %v1757
        %1786 = vst.msk [vmem:[%s198 + $0x28] sm:$0xff] %vm1780, %v1759
        %1787 = vst.msk [vmem:[%s198 + $0x30] sm:$0xff] %vm1780, %v1761
        %1788 = vst.msk [vmem:[%s198 + $0x38] sm:$0xff] %vm1780, %v1763
        %1789 = vst.msk [vmem:[%s198 + $0x40] sm:$0xff] %vm1780, %v1765
        %1790 = vst.msk [vmem:[%s198 + $0x48] sm:$0xff] %vm1780, %v1767
        %1791 = vst.msk [vmem:[%s198 + $0x50] sm:$0xff] %vm1780, %v1769
        %1792 = vst.msk [vmem:[%s198 + $0x58] sm:$0xff] %vm1780, %v1771
        %1793 = vst.msk [vmem:[%s198 + $0x60] sm:$0xff] %vm1780, %v1773
        %1794 = vst.msk [vmem:[%s198 + $0x68] sm:$0xff] %vm1780, %v1775
        %1795 = vst.msk [vmem:[%s198 + $0x70] sm:$0xff] %vm1780, %v1777
        %1796 = vst.msk [vmem:[%s198 + $0x78] sm:$0xff] %vm1780, %v1779
      $region44: #{channel_attention.2} parent=31 // pred_fallthru
        _
      %p1797 = scmp.lt.s32.totalorder %s18, 1
      %s1798 = scalar_select %p1797, %s18, 1
      %s1799 = smul.addr %s1798, 16
      %s1800 = smul.addr %s1799, 8
      %s1801 = scalar_lea.vmem %s3, %s1800
      // Predicated region
      $region45: #{channel_attention.2} parent=31 // pred_check
        %p1802 = pneg %p114
      $region46: #{channel_attention.2} parent=31 // pred_check_branch
        %1804 = sbr.rel (%p1802) target = $region48
      $region47: #{channel_attention.2} parent=31 // pred_region
        _
      $region48: #{channel_attention.2} parent=31 // pred_fallthru
        _
    $region32: #{channel_attention.2} parent=5 // pred_fallthru
      _
    %p1805 = scmp.le.s32.totalorder 2, %s9
    // Predicated region
    $region49: #{channel_attention.2} parent=5 // pred_check
      %p1806 = pneg %p1805
    $region50: #{channel_attention.2} parent=5 // pred_check_branch
      %1808 = sbr.rel (%p1806) target = $region52
    $region51: #{channel_attention.2} parent=5 // pred_region
      %s1809 = ssub.s32 %s9, 2
      // Predicated region
      $region53: #{channel_attention.2} parent=51 // pred_check
        %p1810 = pneg %p120
      $region54: #{channel_attention.2} parent=51 // pred_check_branch
        %1812 = sbr.rel (%p1810) target = $region56
      $region55: #{channel_attention.2} parent=51 // pred_region
        %p1813 = scmp.lt.s32.totalorder %s20, 1
        %s1814 = scalar_select %p1813, %s20, 1
        %s1815 = smul.addr %s1814, 16
        %s1816 = smul.addr %s1815, 8
        %s1817 = scalar_lea.vmem %s3, %s1816
      $region56: #{channel_attention.2} parent=51 // pred_fallthru
        _
    $region52: #{channel_attention.2} parent=5 // pred_fallthru
      _
  $region6: #{channel_attention.2} parent=0 // loop_footer
    %s13 = sadd.s32 1, %s9
  $region7: #{channel_attention.2} parent=0 // loop_footer_branch
    %8 = sbr.rel target = $region3
  $region8: #{channel_attention.2} parent=0 // loop_exit
    _

</llo_original>
